<compile_context>
chip_gen: v7x
topology: tpu7x:2x2x1
jax: 0.10.0
libtpu: 0.0.40
codegen_flags: <defaults>
</compile_context>

<pallas_src>
import functools

import jax
import jax.numpy as jnp
from jax.experimental import pallas as pl
from jax.experimental.pallas import tpu as pltpu

IMG_DIM = 512            # CLIP image feature dim
TXT_DIM = 512            # CLIP text feature dim
FEAT_DIM = IMG_DIM + TXT_DIM   # 1024 (concatenated input slab)
HIDDEN = 256             # LSTM hidden size
GATES = 4 * HIDDEN       # 1024 (PyTorch LSTM gate layout: i | f | g | o)
GATES_PACKED = 3 * HIDDEN      # 768  (forget gate is dead: c0 == 0)
FUSED_IN = IMG_DIM + TXT_DIM + HIDDEN   # 1280
FUSED_OUT = 512
CLS_HID = 256
BN_EPS = 1e-5


def disdrive_kernel(feat_ref,
                    w_txt_ref, b_gates_ref,
                    wf_img_ref, wf_lstm_ref, b_fuse_ref,
                    wc1_ref, bc1_ref, wc2_ref, bc2_ref,
                    out_ref, *, gate_dtype):
    feats = feat_ref[...]                     # (TB, 1024) bf16 = [img | txt]
    img = feats[:, :IMG_DIM]
    txt = feats[:, IMG_DIM:]

    # --- merged text matmul: [i|g|o LSTM gates | BN-folded fusion(text)] ----
    # One (TB,512) x (512,1280) MXU pass; the dead forget-gate columns were
    # removed at pack time.
    txt_proj = jnp.dot(txt, w_txt_ref[...],
                       preferred_element_type=jnp.float32)      # (TB, 1280)
    gates = (txt_proj[:, :GATES_PACKED] + b_gates_ref[...]).astype(gate_dtype)
    fused_txt = txt_proj[:, GATES_PACKED:]                       # (TB, 512) f32

    # --- single-step LSTM cell (seq_len == 1, h0 = c0 = 0) ------------------
    # f * c0 == 0 -> forget gate elided; W_hh @ h0 vanishes as well.
    i = jax.nn.sigmoid(gates[:, 0 * HIDDEN:1 * HIDDEN])
    g = jnp.tanh(gates[:, 1 * HIDDEN:2 * HIDDEN])
    o = jax.nn.sigmoid(gates[:, 2 * HIDDEN:3 * HIDDEN])
    h = (o * jnp.tanh(i * g)).astype(jnp.bfloat16)               # (TB, 256)

    # Attention over a length-1 sequence: softmax over a size-1 dim == 1.0,
    # so the Attention block is exactly the identity on h.

    # --- MultiModalFusion Linear(1280->512) with BN folded in, + ReLU -------
    # (Dropout(0.2) == identity in eval.)
    fused = (jnp.dot(img, wf_img_ref[...], preferred_element_type=jnp.float32)
             + fused_txt
             + jnp.dot(h, wf_lstm_ref[...], preferred_element_type=jnp.float32)
             + b_fuse_ref[...])                                  # (TB, 512)
    act = jnp.maximum(fused, 0.0).astype(jnp.bfloat16)

    # --- classifier: Linear(512->256)+ReLU (+Dropout=id) + Linear(256->1) ---
    h1 = jnp.maximum(
        jnp.dot(act, wc1_ref[...], preferred_element_type=jnp.float32)
        + bc1_ref[...],
        0.0)                                                     # (TB, 256) f32
    # Final Linear(256->1), emitted lane-dense as a (1, TB) row:
    # (1,256) x (TB,256)^T contraction, batch lands on the 128-lane axis.
    logits = jax.lax.dot_general(wc2_ref[...], h1,
                                 (((1,), (1,)), ((), ())),
                                 preferred_element_type=jnp.float32)  # (1, TB)
    out_ref[...] = (logits + bc2_ref[...]).astype(out_ref.dtype)


def _cdiv(a, b):
    return -(-a // b)


def _round_up(x, m):
    return _cdiv(x, m) * m


def _choose_tiling(B, block_b):
    """Balanced batch tiles.

    * >= 2 tiles once B >= 256 so the "parallel" grid axis can shard across
      both v7x TensorCores (each tile still holds >= 128 real rows).
    * Multi-tile TB is 128-aligned so the (1, TB) lane-dense output blocks
      satisfy the (8, 128) layout rule; single-tile TB is just sublane padded.
    """
    nt = max(1, _cdiv(B, block_b))
    if nt == 1 and B >= 256:
        nt = 2
    if nt > 1:
        tb = _round_up(_cdiv(B, nt), 128)
        nt = _cdiv(B, tb)
        if nt == 1:                      # rounding collapsed it back to 1 tile
            tb = _round_up(B, 8)
    else:
        tb = _round_up(max(B, 1), 8)
    return tb, nt


def _gate_dtype():
    """bf16 gate math on chips with a bf16 VPU/EUP (v6e/v7x), f32 otherwise."""
    try:
        kind = jax.devices()[0].device_kind.lower()
    except Exception:
        return jnp.float32
    if "v6" in kind or "v7" in kind or "7x" in kind:
        return jnp.bfloat16
    return jnp.float32


@functools.partial(jax.jit, static_argnames=("block_b",))
def disdrive_forward(image_features, text_features, params, *, block_b=512):
    """Pallas wrapper. image_features/text_features: (B, 512) float32/bf16."""
    B = image_features.shape[0]
    TB, nt = _choose_tiling(B, block_b)
    padded_B = TB * nt

    # Single contiguous bf16 input slab [img | txt] -> one streamed DMA/step.
    feats = jnp.concatenate(
        [image_features.astype(jnp.bfloat16),
         text_features.astype(jnp.bfloat16)], axis=1)            # (B, 1024)
    if padded_B != B:
        feats = jnp.pad(feats, ((0, padded_B - B), (0, 0)))

    weight_args = (
        params["w_txt"], params["b_gates"],
        params["wf_img"], params["wf_lstm"], params["b_fuse"],
        params["wc1"], params["bc1"], params["wc2"], params["bc2"],
    )

    batched = lambda i: (i, 0)     # streamed per batch tile
    lane_out = lambda i: (0, i)    # lane-dense output row
    const = lambda i: (0, 0)       # resident weights (block index never moves)

    in_specs = [pl.BlockSpec((TB, FEAT_DIM), batched)]
    in_specs += [pl.BlockSpec(tuple(w.shape), const) for w in weight_args]
    out_specs = pl.BlockSpec((1, TB), lane_out)

    weight_bytes = sum(int(w.size) * w.dtype.itemsize for w in weight_args)
    flops_per_row = 2 * (TXT_DIM * (GATES_PACKED + FUSED_OUT)
                         + IMG_DIM * FUSED_OUT
                         + HIDDEN * FUSED_OUT
                         + FUSED_OUT * CLS_HID
                         + CLS_HID)
    cost = pl.CostEstimate(
        flops=padded_B * flops_per_row,
        transcendentals=padded_B * 4 * HIDDEN,
        bytes_accessed=weight_bytes
        + padded_B * FEAT_DIM * 2    # bf16 input slab
        + padded_B * 4,              # f32 output
    )

    # VMEM budget from actual buffer sizes (double-buffered streamed tiles,
    # possibly double-buffered resident weights, f32 intermediates) plus
    # headroom for Mosaic internal scratch; capped at 32 MiB for v7x.
    vmem_need = (2 * TB * FEAT_DIM * 2                      # bf16 input tiles
                 + 2 * TB * 4                               # f32 output tiles
                 + 2 * weight_bytes                         # resident weights
                 + TB * (GATES_PACKED + 3 * FUSED_OUT + CLS_HID) * 4)
    vmem_limit = int(min(max(vmem_need + (8 << 20), 16 << 20), 32 << 20))

    kernel = functools.partial(disdrive_kernel, gate_dtype=_gate_dtype())
    out = pl.pallas_call(
        kernel,
        out_shape=jax.ShapeDtypeStruct((1, padded_B), jnp.float32),
        grid=(nt,),
        in_specs=in_specs,
        out_specs=out_specs,
        compiler_params=pltpu.CompilerParams(
            dimension_semantics=("parallel",),
            vmem_limit_bytes=vmem_limit),
        cost_estimate=cost,
    )(feats, *weight_args)
    return out.reshape(padded_B, 1)[:B]


def init_raw_params(key):
    """Deterministic synthetic parameters matching the nn.Module shapes."""
    ks = jax.random.split(key, 18)

    def nrm(k, shape, scale=0.02):
        return (scale * jax.random.normal(k, shape)).astype(jnp.float32)

    return dict(
        # nn.LSTM(512, 256, num_layers=1)
        w_ih=nrm(ks[0], (GATES, TXT_DIM)),
        w_hh=nrm(ks[1], (GATES, HIDDEN)),     # multiplies h0 == 0 -> elided
        b_ih=nrm(ks[2], (GATES,)),
        b_hh=nrm(ks[3], (GATES,)),
        # Attention Linear(256, 1) -- identity for seq_len == 1
        w_attn=nrm(ks[4], (1, HIDDEN)),
        b_attn=nrm(ks[5], (1,)),
        # MultiModalFusion: Linear(1280, 512) + BatchNorm1d(512)
        w_fusion=nrm(ks[6], (FUSED_OUT, FUSED_IN)),
        b_fusion=nrm(ks[7], (FUSED_OUT,)),
        bn_gamma=(1.0 + nrm(ks[8], (FUSED_OUT,), 0.01)).astype(jnp.float32),
        bn_beta=nrm(ks[9], (FUSED_OUT,), 0.01),
        bn_mean=nrm(ks[10], (FUSED_OUT,), 0.01),
        bn_var=(1.0 + jnp.abs(nrm(ks[11], (FUSED_OUT,), 0.01))).astype(jnp.float32),
        # classifier: Linear(512, 256), Linear(256, 1)
        wc1=nrm(ks[12], (CLS_HID, FUSED_OUT)),
        bc1=nrm(ks[13], (CLS_HID,)),
        wc2=nrm(ks[14], (1, CLS_HID)),
        bc2=nrm(ks[15], (1,)),
    )


def pack_params(raw, weight_dtype=jnp.bfloat16):
    """Fold BN into fusion weights, drop dead forget gate, merge shared-text
    matmuls, cast weights to bf16 (biases stay f32)."""
    scale = raw["bn_gamma"] * jax.lax.rsqrt(raw["bn_var"] + BN_EPS)   # (512,)
    wf_t = raw["w_fusion"].T * scale[None, :]                          # (1280, 512)
    b_fuse = (raw["b_fusion"] - raw["bn_mean"]) * scale + raw["bn_beta"]

    # PyTorch LSTM gate rows are [i | f | g | o]; c0 == 0 makes f dead.
    w_ih_t = raw["w_ih"].T                                             # (512, 1024)
    b_all = raw["b_ih"] + raw["b_hh"]                                  # (1024,)
    keep = [(0, HIDDEN), (2 * HIDDEN, 3 * HIDDEN), (3 * HIDDEN, 4 * HIDDEN)]
    w_gates = jnp.concatenate([w_ih_t[:, a:b] for a, b in keep], axis=1)  # (512, 768)
    b_gates = jnp.concatenate([b_all[a:b] for a, b in keep], axis=0)      # (768,)

    # [i|g|o gates | BN-scaled fusion text-slice] share the text operand.
    w_txt = jnp.concatenate(
        [w_gates, wf_t[IMG_DIM:IMG_DIM + TXT_DIM]], axis=1)            # (512, 1280)

    return dict(
        w_txt=w_txt.astype(weight_dtype),
        b_gates=b_gates.reshape(1, GATES_PACKED).astype(jnp.float32),
        wf_img=wf_t[:IMG_DIM].astype(weight_dtype),                    # (512, 512)
        wf_lstm=wf_t[IMG_DIM + TXT_DIM:].astype(weight_dtype),         # (256, 512)
        b_fuse=b_fuse.reshape(1, FUSED_OUT).astype(jnp.float32),
        wc1=raw["wc1"].T.astype(weight_dtype),                         # (512, 256)
        bc1=raw["bc1"].reshape(1, CLS_HID).astype(jnp.float32),
        wc2=raw["wc2"].astype(jnp.float32),                            # (1, 256)
        bc2=raw["bc2"].reshape(1, 1).astype(jnp.float32),
    )


def disdrive_reference(image_features, text_features, raw):
    """Pure-JAX f32 reference with the full (un-simplified) module math."""
    # LSTM, one step, h0 = c0 = 0.
    gates = (text_features @ raw["w_ih"].T
             + jnp.zeros((text_features.shape[0], HIDDEN)) @ raw["w_hh"].T
             + raw["b_ih"] + raw["b_hh"])
    i = jax.nn.sigmoid(gates[:, 0 * HIDDEN:1 * HIDDEN])
    f = jax.nn.sigmoid(gates[:, 1 * HIDDEN:2 * HIDDEN])
    g = jnp.tanh(gates[:, 2 * HIDDEN:3 * HIDDEN])
    o = jax.nn.sigmoid(gates[:, 3 * HIDDEN:4 * HIDDEN])
    c = f * 0.0 + i * g
    h = o * jnp.tanh(c)
    # Attention over length-1 sequence (literal, == identity).
    scores = h[:, None, :] @ raw["w_attn"].T + raw["b_attn"]
    weights = jax.nn.softmax(scores, axis=1)
    attended = jnp.sum(weights * h[:, None, :], axis=1)
    # Fusion Linear + BatchNorm1d(eval) + ReLU (+Dropout = id).
    combined = jnp.concatenate([image_features, text_features, attended], axis=1)
    fused = combined @ raw["w_fusion"].T + raw["b_fusion"]
    bn = ((fused - raw["bn_mean"]) * jax.lax.rsqrt(raw["bn_var"] + BN_EPS)
          * raw["bn_gamma"] + raw["bn_beta"])
    act = jnp.maximum(bn, 0.0)
    # Classifier.
    h1 = jnp.maximum(act @ raw["wc1"].T + raw["bc1"], 0.0)
    return h1 @ raw["wc2"].T + raw["bc2"]


if __name__ == "__main__":
    key = jax.random.PRNGKey(0)
    k_img, k_txt, k_par = jax.random.split(key, 3)

    B = 2
    # TODO(synk): clip_model.encode_image / encode_text are an external frozen
    # CLIP backbone; the kernel starts from its 512-d encoded features.
    image_features = jax.random.normal(k_img, (B, IMG_DIM), dtype=jnp.float32)
    text_features = jax.random.normal(k_txt, (B, TXT_DIM), dtype=jnp.float32)

    raw = init_raw_params(k_par)
    params = pack_params(raw)

    out = disdrive_forward(image_features, text_features, params)
    out = jax.block_until_ready(out)

    ref = jax.block_until_ready(disdrive_reference(image_features, text_features, raw))
    assert out.shape == (B, 1)
    # bf16 weights/activations -> loosened tolerance vs. the f32 reference.
    assert jnp.allclose(out, ref, atol=2e-2, rtol=2e-2), (out, ref)

    print("KERNEL_OK")
</pallas_src>

<mosaic_0001>
module attributes {stable_mosaic.version = 11 : i64} {
  func.func @disdrive_kernel(%arg0: i32, %arg1: memref<8x1024xbf16, #tpu.memory_space<vmem>>, %arg2: memref<512x1280xbf16, #tpu.memory_space<vmem>>, %arg3: memref<1x768xf32, #tpu.memory_space<vmem>>, %arg4: memref<512x512xbf16, #tpu.memory_space<vmem>>, %arg5: memref<256x512xbf16, #tpu.memory_space<vmem>>, %arg6: memref<1x512xf32, #tpu.memory_space<vmem>>, %arg7: memref<512x256xbf16, #tpu.memory_space<vmem>>, %arg8: memref<1x256xf32, #tpu.memory_space<vmem>>, %arg9: memref<1x256xf32, #tpu.memory_space<vmem>>, %arg10: memref<1x1xf32, #tpu.memory_space<vmem>>, %arg11: memref<1x8xf32, #tpu.memory_space<vmem>>) attributes {dimension_semantics = [#tpu.dimension_semantics<parallel>], iteration_bounds = array<i64: 1>, scalar_prefetch = 0 : i64, scratch_operands = 0 : i64, tpu.core_type = #tpu.core_type<tc>, window_params = [{transform_indices = @transform_0, window_bounds = array<i64: 8, 1024>}, {pipeline_mode = #tpu.pipeline_mode<synchronous>, transform_indices = @transform_1, window_bounds = array<i64: 512, 1280>}, {pipeline_mode = #tpu.pipeline_mode<synchronous>, transform_indices = @transform_2, window_bounds = array<i64: 1, 768>}, {pipeline_mode = #tpu.pipeline_mode<synchronous>, transform_indices = @transform_3, window_bounds = array<i64: 512, 512>}, {pipeline_mode = #tpu.pipeline_mode<synchronous>, transform_indices = @transform_4, window_bounds = array<i64: 256, 512>}, {pipeline_mode = #tpu.pipeline_mode<synchronous>, transform_indices = @transform_5, window_bounds = array<i64: 1, 512>}, {pipeline_mode = #tpu.pipeline_mode<synchronous>, transform_indices = @transform_6, window_bounds = array<i64: 512, 256>}, {pipeline_mode = #tpu.pipeline_mode<synchronous>, transform_indices = @transform_7, window_bounds = array<i64: 1, 256>}, {pipeline_mode = #tpu.pipeline_mode<synchronous>, transform_indices = @transform_8, window_bounds = array<i64: 1, 256>}, {pipeline_mode = #tpu.pipeline_mode<synchronous>, transform_indices = @transform_9, window_bounds = array<i64: 1, 1>}, {transform_indices = @transform_10, window_bounds = array<i64: 1, 8>}]} {
    %c0 = arith.constant 0 : index
    %c0_0 = arith.constant 0 : index
    %0 = vector.load %arg1[%c0, %c0_0] : memref<8x1024xbf16, #tpu.memory_space<vmem>>, vector<8x1024xbf16>
    %1 = vector.extract_strided_slice %0 {offsets = [0, 0], sizes = [8, 512], strides = [1, 1]} : vector<8x1024xbf16> to vector<8x512xbf16>
    %2 = vector.extract_strided_slice %0 {offsets = [0, 512], sizes = [8, 512], strides = [1, 1]} : vector<8x1024xbf16> to vector<8x512xbf16>
    %c0_1 = arith.constant 0 : index
    %c0_2 = arith.constant 0 : index
    %3 = vector.load %arg2[%c0_1, %c0_2] : memref<512x1280xbf16, #tpu.memory_space<vmem>>, vector<512x1280xbf16>
    %cst = arith.constant dense<0.000000e+00> : vector<8x1280xf32>
    %4 = tpu.matmul %2, %3, %cst {dimension_numbers = #tpu.dot_dimension_numbers<[1], [0], [0], [1], [0, 0, 1, 1], [], []>} : vector<8x512xbf16>, vector<512x1280xbf16>, vector<8x1280xf32> -> vector<8x1280xf32>
    %5 = vector.extract_strided_slice %4 {offsets = [0, 0], sizes = [8, 768], strides = [1, 1]} : vector<8x1280xf32> to vector<8x768xf32>
    %c0_3 = arith.constant 0 : index
    %c0_4 = arith.constant 0 : index
    %6 = vector.load %arg3[%c0_3, %c0_4] : memref<1x768xf32, #tpu.memory_space<vmem>>, vector<1x768xf32>
    %7 = vector.broadcast %6 : vector<1x768xf32> to vector<8x768xf32>
    %8 = arith.addf %5, %7 : vector<8x768xf32>
    %9 = vector.extract_strided_slice %4 {offsets = [0, 768], sizes = [8, 512], strides = [1, 1]} : vector<8x1280xf32> to vector<8x512xf32>
    %10 = vector.extract_strided_slice %8 {offsets = [0, 0], sizes = [8, 256], strides = [1, 1]} : vector<8x768xf32> to vector<8x256xf32>
    %11 = arith.negf %10 : vector<8x256xf32>
    %12 = math.exp %11 : vector<8x256xf32>
    %cst_5 = arith.constant 1.000000e+00 : f32
    %13 = vector.broadcast %cst_5 : f32 to vector<8x256xf32>
    %14 = arith.addf %13, %12 : vector<8x256xf32>
    %15 = arith.divf %13, %14 : vector<8x256xf32>
    %16 = vector.extract_strided_slice %8 {offsets = [0, 256], sizes = [8, 256], strides = [1, 1]} : vector<8x768xf32> to vector<8x256xf32>
    %17 = math.tanh %16 : vector<8x256xf32>
    %18 = vector.extract_strided_slice %8 {offsets = [0, 512], sizes = [8, 256], strides = [1, 1]} : vector<8x768xf32> to vector<8x256xf32>
    %19 = arith.negf %18 : vector<8x256xf32>
    %20 = math.exp %19 : vector<8x256xf32>
    %cst_6 = arith.constant 1.000000e+00 : f32
    %21 = vector.broadcast %cst_6 : f32 to vector<8x256xf32>
    %22 = arith.addf %21, %20 : vector<8x256xf32>
    %23 = arith.divf %21, %22 : vector<8x256xf32>
    %24 = arith.mulf %15, %17 : vector<8x256xf32>
    %25 = math.tanh %24 : vector<8x256xf32>
    %26 = arith.mulf %23, %25 : vector<8x256xf32>
    %27 = arith.truncf %26 : vector<8x256xf32> to vector<8x256xbf16>
    %c0_7 = arith.constant 0 : index
    %c0_8 = arith.constant 0 : index
    %28 = vector.load %arg4[%c0_7, %c0_8] : memref<512x512xbf16, #tpu.memory_space<vmem>>, vector<512x512xbf16>
    %cst_9 = arith.constant dense<0.000000e+00> : vector<8x512xf32>
    %29 = tpu.matmul %1, %28, %cst_9 {dimension_numbers = #tpu.dot_dimension_numbers<[1], [0], [0], [1], [0, 0, 1, 1], [], []>} : vector<8x512xbf16>, vector<512x512xbf16>, vector<8x512xf32> -> vector<8x512xf32>
    %30 = arith.addf %29, %9 : vector<8x512xf32>
    %c0_10 = arith.constant 0 : index
    %c0_11 = arith.constant 0 : index
    %31 = vector.load %arg5[%c0_10, %c0_11] : memref<256x512xbf16, #tpu.memory_space<vmem>>, vector<256x512xbf16>
    %cst_12 = arith.constant dense<0.000000e+00> : vector<8x512xf32>
    %32 = tpu.matmul %27, %31, %cst_12 {dimension_numbers = #tpu.dot_dimension_numbers<[1], [0], [0], [1], [0, 0, 1, 1], [], []>} : vector<8x256xbf16>, vector<256x512xbf16>, vector<8x512xf32> -> vector<8x512xf32>
    %33 = arith.addf %30, %32 : vector<8x512xf32>
    %c0_13 = arith.constant 0 : index
    %c0_14 = arith.constant 0 : index
    %34 = vector.load %arg6[%c0_13, %c0_14] : memref<1x512xf32, #tpu.memory_space<vmem>>, vector<1x512xf32>
    %35 = vector.broadcast %34 : vector<1x512xf32> to vector<8x512xf32>
    %36 = arith.addf %33, %35 : vector<8x512xf32>
    %cst_15 = arith.constant 0.000000e+00 : f32
    %37 = vector.broadcast %cst_15 : f32 to vector<8x512xf32>
    %38 = arith.maximumf %36, %37 : vector<8x512xf32>
    %39 = arith.truncf %38 : vector<8x512xf32> to vector<8x512xbf16>
    %c0_16 = arith.constant 0 : index
    %c0_17 = arith.constant 0 : index
    %40 = vector.load %arg7[%c0_16, %c0_17] : memref<512x256xbf16, #tpu.memory_space<vmem>>, vector<512x256xbf16>
    %cst_18 = arith.constant dense<0.000000e+00> : vector<8x256xf32>
    %41 = tpu.matmul %39, %40, %cst_18 {dimension_numbers = #tpu.dot_dimension_numbers<[1], [0], [0], [1], [0, 0, 1, 1], [], []>} : vector<8x512xbf16>, vector<512x256xbf16>, vector<8x256xf32> -> vector<8x256xf32>
    %c0_19 = arith.constant 0 : index
    %c0_20 = arith.constant 0 : index
    %42 = vector.load %arg8[%c0_19, %c0_20] : memref<1x256xf32, #tpu.memory_space<vmem>>, vector<1x256xf32>
    %43 = vector.broadcast %42 : vector<1x256xf32> to vector<8x256xf32>
    %44 = arith.addf %41, %43 : vector<8x256xf32>
    %cst_21 = arith.constant 0.000000e+00 : f32
    %45 = vector.broadcast %cst_21 : f32 to vector<8x256xf32>
    %46 = arith.maximumf %44, %45 : vector<8x256xf32>
    %c0_22 = arith.constant 0 : index
    %c0_23 = arith.constant 0 : index
    %47 = vector.load %arg9[%c0_22, %c0_23] : memref<1x256xf32, #tpu.memory_space<vmem>>, vector<1x256xf32>
    %cst_24 = arith.constant dense<0.000000e+00> : vector<1x8xf32>
    %48 = tpu.matmul %47, %46, %cst_24 {dimension_numbers = #tpu.dot_dimension_numbers<[1], [1], [0], [0], [0, 0, 1, 0], [], []>} : vector<1x256xf32>, vector<8x256xf32>, vector<1x8xf32> -> vector<1x8xf32>
    %c0_25 = arith.constant 0 : index
    %c0_26 = arith.constant 0 : index
    %49 = vector.load %arg10[%c0_25, %c0_26] : memref<1x1xf32, #tpu.memory_space<vmem>>, vector<1x1xf32>
    %50 = vector.broadcast %49 : vector<1x1xf32> to vector<1x8xf32>
    %51 = arith.addf %48, %50 : vector<1x8xf32>
    %c0_27 = arith.constant 0 : index
    %c0_28 = arith.constant 0 : index
    %52 = vector.load %arg11[%c0_27, %c0_28] : memref<1x8xf32, #tpu.memory_space<vmem>>, vector<1x8xf32>
    tpu.vector_store %arg11[%c0_27, %c0_28], %51 {strides = array<i32>} : memref<1x8xf32, #tpu.memory_space<vmem>>, vector<1x8xf32>,
    return
  }
  func.func @transform_0(%arg0: i32) -> (i32, i32) {
    %c0_i32 = arith.constant 0 : i32
    %c0_i32_0 = arith.constant 0 : i32
    return %arg0, %c0_i32 : i32, i32
  }
  func.func @transform_1(%arg0: i32) -> (i32, i32) {
    %c0_i32 = arith.constant 0 : i32
    %c0_i32_0 = arith.constant 0 : i32
    %c0_i32_1 = arith.constant 0 : i32
    return %c0_i32, %c0_i32_0 : i32, i32
  }
  func.func @transform_2(%arg0: i32) -> (i32, i32) {
    %c0_i32 = arith.constant 0 : i32
    %c0_i32_0 = arith.constant 0 : i32
    %c0_i32_1 = arith.constant 0 : i32
    return %c0_i32, %c0_i32_0 : i32, i32
  }
  func.func @transform_3(%arg0: i32) -> (i32, i32) {
    %c0_i32 = arith.constant 0 : i32
    %c0_i32_0 = arith.constant 0 : i32
    %c0_i32_1 = arith.constant 0 : i32
    return %c0_i32, %c0_i32_0 : i32, i32
  }
  func.func @transform_4(%arg0: i32) -> (i32, i32) {
    %c0_i32 = arith.constant 0 : i32
    %c0_i32_0 = arith.constant 0 : i32
    %c0_i32_1 = arith.constant 0 : i32
    return %c0_i32, %c0_i32_0 : i32, i32
  }
  func.func @transform_5(%arg0: i32) -> (i32, i32) {
    %c0_i32 = arith.constant 0 : i32
    %c0_i32_0 = arith.constant 0 : i32
    %c0_i32_1 = arith.constant 0 : i32
    return %c0_i32, %c0_i32_0 : i32, i32
  }
  func.func @transform_6(%arg0: i32) -> (i32, i32) {
    %c0_i32 = arith.constant 0 : i32
    %c0_i32_0 = arith.constant 0 : i32
    %c0_i32_1 = arith.constant 0 : i32
    return %c0_i32, %c0_i32_0 : i32, i32
  }
  func.func @transform_7(%arg0: i32) -> (i32, i32) {
    %c0_i32 = arith.constant 0 : i32
    %c0_i32_0 = arith.constant 0 : i32
    %c0_i32_1 = arith.constant 0 : i32
    return %c0_i32, %c0_i32_0 : i32, i32
  }
  func.func @transform_8(%arg0: i32) -> (i32, i32) {
    %c0_i32 = arith.constant 0 : i32
    %c0_i32_0 = arith.constant 0 : i32
    %c0_i32_1 = arith.constant 0 : i32
    return %c0_i32, %c0_i32_0 : i32, i32
  }
  func.func @transform_9(%arg0: i32) -> (i32, i32) {
    %c0_i32 = arith.constant 0 : i32
    %c0_i32_0 = arith.constant 0 : i32
    %c0_i32_1 = arith.constant 0 : i32
    return %c0_i32, %c0_i32_0 : i32, i32
  }
  func.func @transform_10(%arg0: i32) -> (i32, i32) {
    %c0_i32 = arith.constant 0 : i32
    %c0_i32_0 = arith.constant 0 : i32
    return %c0_i32, %arg0 : i32, i32
  }
}

</mosaic_0001>

<llo_original>
// kernel: disdrive_forward.1
$region0: #{disdrive_forward.1}
  #allocation0 [shape = 'u32[]', space=smem, size = 0x4, offset = 0x4, fixed_abs, tag = 'smem constant byte address 0x4 - core index']
  #allocation1 [shape = 'u32[144,128]{1,0:T(1,128)}', space=vmem, size = 0x12000, scoped, tag = 'internal scratch']
  #allocation2 [shape = 'f32[1,1]{1,0:T(1,128)S(1)}', space=vmem, size = 0x200, scoped, tag = 'scoped memory for disdrive_forward.1']
  %s0 = inlined_call_operand.vmem [shape: bf16[8,1024], index: 0, kind: input, shape index: {}]
  %s1 = inlined_call_operand.hbm [shape: bf16[512,1280], index: 1, kind: input, shape index: {}]
  %s2 = inlined_call_operand.hbm [shape: f32[1,768], index: 2, kind: input, shape index: {}]
  %s3 = inlined_call_operand.hbm [shape: bf16[512,512], index: 3, kind: input, shape index: {}]
  %s4 = inlined_call_operand.hbm [shape: bf16[256,512], index: 4, kind: input, shape index: {}]
  %s5 = inlined_call_operand.hbm [shape: f32[1,512], index: 5, kind: input, shape index: {}]
  %s6 = inlined_call_operand.hbm [shape: bf16[512,256], index: 6, kind: input, shape index: {}]
  %s7 = inlined_call_operand.hbm [shape: f32[1,256], index: 7, kind: input, shape index: {}]
  %s8 = inlined_call_operand.hbm [shape: f32[1,256], index: 8, kind: input, shape index: {}]
  %s9 = inlined_call_operand.<no memory space> [shape: f32[1,1], index: 9, kind: input, shape index: {}]
  %s10 = inlined_call_operand.vmem [shape: f32[1,8], index: 10, kind: output, shape index: {}]
  %s11 = sld [smem:[#allocation0]]
  $region82: #{disdrive_forward.1} parent=0
    _
  %s13 = ssub.s32 1, %s11
  %s14 = scalar_select 0, %s13, %s11
  %v15 = vstv %s9
  %16 = vst [vmem:[#allocation2] sm:$0x1] %v15
  $region1: #{disdrive_forward.1} parent=0
    #allocation3 [shape = 'u8[1310720]{0}', space=vmem, size = 0x140000, scoped, tag = 'input window, operand 1, single buffered']
    #allocation4 [shape = 's32[1]{0}', space=sflag, size = 0x4, scoped, tag = 'scoped memory for disdrive_forward.1']
    #allocation5 [shape = 'u8[3072]{0}', space=vmem, size = 0xc00, scoped, tag = 'input window, operand 2, single buffered']
    #allocation6 [shape = 's32[1]{0}', space=sflag, size = 0x4, scoped, tag = 'scoped memory for disdrive_forward.1']
    #allocation7 [shape = 'u8[524288]{0}', space=vmem, size = 0x80000, scoped, tag = 'input window, operand 3, single buffered']
    #allocation8 [shape = 'u8[262144]{0}', space=vmem, size = 0x40000, scoped, tag = 'input window, operand 4, single buffered']
    #allocation9 [shape = 's32[1]{0}', space=sflag, size = 0x4, scoped, tag = 'scoped memory for disdrive_forward.1']
    #allocation10 [shape = 'u8[2048]{0}', space=vmem, size = 0x800, scoped, tag = 'input window, operand 5, single buffered']
    #allocation11 [shape = 'u8[262144]{0}', space=vmem, size = 0x40000, scoped, tag = 'input window, operand 6, single buffered']
    #allocation12 [shape = 's32[1]{0}', space=sflag, size = 0x4, scoped, tag = 'scoped memory for disdrive_forward.1']
    #allocation13 [shape = 'u8[1024]{0}', space=vmem, size = 0x400, scoped, tag = 'input window, operand 7, single buffered']
    #allocation14 [shape = 'u8[1024]{0}', space=vmem, size = 0x400, scoped, tag = 'input window, operand 8, single buffered']
    #allocation15 [shape = 's32[1]{0}', space=sflag, size = 0x4, scoped, tag = 'scoped memory for disdrive_forward.1']
    %17 = vsyncpa [#allocation4], 0
    %18 = vsyncpa [#allocation6], 0
    %19 = vsyncpa [#allocation9], 0
    %20 = vsyncpa [#allocation12], 0
    %21 = vsyncpa [#allocation15], 0
    // Predicated region
    $region2: #{disdrive_forward.1} parent=1 // pred_check
      _
    $region3: #{disdrive_forward.1} parent=1 // pred_check_branch
      %23 = sbr.rel (0) target = $region5
    $region4: #{disdrive_forward.1} parent=1 // pred_region
      _
    $region5: #{disdrive_forward.1} parent=1 // pred_fallthru
      _
    // Predicated region
    $region6: #{disdrive_forward.1} parent=1 // pred_check
      _
    $region7: #{disdrive_forward.1} parent=1 // pred_check_branch
      %25 = sbr.rel (0) target = $region9
    $region8: #{disdrive_forward.1} parent=1 // pred_region
      %s27 = ssub.s32 40960, 40960
      %28 = vsyncadd [#allocation4], %s27
      %s29 = sshll.u32 [#allocation3], 4
      %s30 = int_to_ptr.vmem [resolvable:$true] %s29
      %35 = dma.hbm_to_vmem [thread:$0]  %s1, 40960, %s30, [#allocation4], 640, 640, 40
    $region9: #{disdrive_forward.1} parent=1 // pred_fallthru
      _
    // Predicated region
    $region10: #{disdrive_forward.1} parent=1 // pred_check
      _
    $region11: #{disdrive_forward.1} parent=1 // pred_check_branch
      %37 = sbr.rel (0) target = $region13
    $region12: #{disdrive_forward.1} parent=1 // pred_region
      %s39 = ssub.s32 96, 96
      %40 = vsyncadd [#allocation6], %s39
      %s42 = sshll.u32 [#allocation5], 4
      %s43 = int_to_ptr.vmem [resolvable:$true] %s42
      %45 = dma.hbm_to_vmem [thread:$0]  %s2, 96, %s43, [#allocation6]
    $region13: #{disdrive_forward.1} parent=1 // pred_fallthru
      _
    // Predicated region
    $region14: #{disdrive_forward.1} parent=1 // pred_check
      _
    $region15: #{disdrive_forward.1} parent=1 // pred_check_branch
      %47 = sbr.rel (0) target = $region17
    $region16: #{disdrive_forward.1} parent=1 // pred_region
      %s49 = ssub.s32 16384, 16384
      %50 = vsyncadd [#allocation6], %s49
      %s51 = sshll.u32 [#allocation7], 4
      %s52 = int_to_ptr.vmem [resolvable:$true] %s51
      %57 = dma.hbm_to_vmem [thread:$0]  %s3, 16384, %s52, [#allocation6], 256, 256, 16
    $region17: #{disdrive_forward.1} parent=1 // pred_fallthru
      _
    // Predicated region
    $region18: #{disdrive_forward.1} parent=1 // pred_check
      _
    $region19: #{disdrive_forward.1} parent=1 // pred_check_branch
      %59 = sbr.rel (0) target = $region21
    $region20: #{disdrive_forward.1} parent=1 // pred_region
      %s61 = ssub.s32 8192, 8192
      %62 = vsyncadd [#allocation9], %s61
      %s63 = sshll.u32 [#allocation8], 4
      %s64 = int_to_ptr.vmem [resolvable:$true] %s63
      %69 = dma.hbm_to_vmem [thread:$0]  %s4, 8192, %s64, [#allocation9], 256, 256, 16
    $region21: #{disdrive_forward.1} parent=1 // pred_fallthru
      _
    // Predicated region
    $region22: #{disdrive_forward.1} parent=1 // pred_check
      _
    $region23: #{disdrive_forward.1} parent=1 // pred_check_branch
      %71 = sbr.rel (0) target = $region25
    $region24: #{disdrive_forward.1} parent=1 // pred_region
      %s73 = ssub.s32 64, 64
      %74 = vsyncadd [#allocation9], %s73
      %s76 = sshll.u32 [#allocation10], 4
      %s77 = int_to_ptr.vmem [resolvable:$true] %s76
      %79 = dma.hbm_to_vmem [thread:$0]  %s5, 64, %s77, [#allocation9]
    $region25: #{disdrive_forward.1} parent=1 // pred_fallthru
      _
    // Predicated region
    $region26: #{disdrive_forward.1} parent=1 // pred_check
      _
    $region27: #{disdrive_forward.1} parent=1 // pred_check_branch
      %81 = sbr.rel (0) target = $region29
    $region28: #{disdrive_forward.1} parent=1 // pred_region
      %s83 = ssub.s32 8192, 8192
      %84 = vsyncadd [#allocation12], %s83
      %s85 = sshll.u32 [#allocation11], 4
      %s86 = int_to_ptr.vmem [resolvable:$true] %s85
      %91 = dma.hbm_to_vmem [thread:$0]  %s6, 8192, %s86, [#allocation12], 128, 128, 8
    $region29: #{disdrive_forward.1} parent=1 // pred_fallthru
      _
    // Predicated region
    $region30: #{disdrive_forward.1} parent=1 // pred_check
      _
    $region31: #{disdrive_forward.1} parent=1 // pred_check_branch
      %93 = sbr.rel (0) target = $region33
    $region32: #{disdrive_forward.1} parent=1 // pred_region
      %s95 = ssub.s32 32, 32
      %96 = vsyncadd [#allocation12], %s95
      %s98 = sshll.u32 [#allocation13], 4
      %s99 = int_to_ptr.vmem [resolvable:$true] %s98
      %101 = dma.hbm_to_vmem [thread:$0]  %s7, 32, %s99, [#allocation12]
    $region33: #{disdrive_forward.1} parent=1 // pred_fallthru
      _
    // Predicated region
    $region34: #{disdrive_forward.1} parent=1 // pred_check
      _
    $region35: #{disdrive_forward.1} parent=1 // pred_check_branch
      %103 = sbr.rel (0) target = $region37
    $region36: #{disdrive_forward.1} parent=1 // pred_region
      %s105 = ssub.s32 32, 32
      %106 = vsyncadd [#allocation15], %s105
      %s108 = sshll.u32 [#allocation14], 4
      %s109 = int_to_ptr.vmem [resolvable:$true] %s108
      %111 = dma.hbm_to_vmem [thread:$0]  %s8, 32, %s109, [#allocation15]
    $region37: #{disdrive_forward.1} parent=1 // pred_fallthru
      _
    // Predicated region
    $region38: #{disdrive_forward.1} parent=1 // pred_check
      _
    $region39: #{disdrive_forward.1} parent=1 // pred_check_branch
      %113 = sbr.rel (0) target = $region41
    $region40: #{disdrive_forward.1} parent=1 // pred_region
      _
    $region41: #{disdrive_forward.1} parent=1 // pred_fallthru
      _
    // Predicated region
    $region42: #{disdrive_forward.1} parent=1 // pred_check
      _
    $region43: #{disdrive_forward.1} parent=1 // pred_check_branch
      %115 = sbr.rel (0) target = $region45
    $region44: #{disdrive_forward.1} parent=1 // pred_region
      %116 = dma.done [#allocation4], 40960
    $region45: #{disdrive_forward.1} parent=1 // pred_fallthru
      _
    // Predicated region
    $region46: #{disdrive_forward.1} parent=1 // pred_check
      _
    $region47: #{disdrive_forward.1} parent=1 // pred_check_branch
      %118 = sbr.rel (0) target = $region49
    $region48: #{disdrive_forward.1} parent=1 // pred_region
      %119 = dma.done [#allocation6], 96
    $region49: #{disdrive_forward.1} parent=1 // pred_fallthru
      _
    // Predicated region
    $region50: #{disdrive_forward.1} parent=1 // pred_check
      _
    $region51: #{disdrive_forward.1} parent=1 // pred_check_branch
      %121 = sbr.rel (0) target = $region53
    $region52: #{disdrive_forward.1} parent=1 // pred_region
      %122 = dma.done [#allocation6], 16384
    $region53: #{disdrive_forward.1} parent=1 // pred_fallthru
      _
    // Predicated region
    $region54: #{disdrive_forward.1} parent=1 // pred_check
      _
    $region55: #{disdrive_forward.1} parent=1 // pred_check_branch
      %124 = sbr.rel (0) target = $region57
    $region56: #{disdrive_forward.1} parent=1 // pred_region
      %125 = dma.done [#allocation9], 8192
    $region57: #{disdrive_forward.1} parent=1 // pred_fallthru
      _
    // Predicated region
    $region58: #{disdrive_forward.1} parent=1 // pred_check
      _
    $region59: #{disdrive_forward.1} parent=1 // pred_check_branch
      %127 = sbr.rel (0) target = $region61
    $region60: #{disdrive_forward.1} parent=1 // pred_region
      %128 = dma.done [#allocation9], 64
    $region61: #{disdrive_forward.1} parent=1 // pred_fallthru
      _
    // Predicated region
    $region62: #{disdrive_forward.1} parent=1 // pred_check
      _
    $region63: #{disdrive_forward.1} parent=1 // pred_check_branch
      %130 = sbr.rel (0) target = $region65
    $region64: #{disdrive_forward.1} parent=1 // pred_region
      %131 = dma.done [#allocation12], 8192
    $region65: #{disdrive_forward.1} parent=1 // pred_fallthru
      _
    // Predicated region
    $region66: #{disdrive_forward.1} parent=1 // pred_check
      _
    $region67: #{disdrive_forward.1} parent=1 // pred_check_branch
      %133 = sbr.rel (0) target = $region69
    $region68: #{disdrive_forward.1} parent=1 // pred_region
      %134 = dma.done [#allocation12], 32
    $region69: #{disdrive_forward.1} parent=1 // pred_fallthru
      _
    // Predicated region
    $region70: #{disdrive_forward.1} parent=1 // pred_check
      _
    $region71: #{disdrive_forward.1} parent=1 // pred_check_branch
      %136 = sbr.rel (0) target = $region73
    $region72: #{disdrive_forward.1} parent=1 // pred_region
      %137 = dma.done [#allocation15], 32
    $region73: #{disdrive_forward.1} parent=1 // pred_fallthru
      _
    %v138 = vld [vmem:[%s0] sm:$0xff]
    %v139 = vld [vmem:[%s0 + $0x8] sm:$0xff]
    %v140 = vld [vmem:[%s0 + $0x10] sm:$0xff]
    %v141 = vld [vmem:[%s0 + $0x18] sm:$0xff]
    %v142 = vld [vmem:[#allocation3] sm:$0xff]
    %v143 = vld [vmem:[#allocation3 + $0x8] sm:$0xff]
    %v144 = vld [vmem:[#allocation3 + $0x10] sm:$0xff]
    %v145 = vld [vmem:[#allocation3 + $0x18] sm:$0xff]
    %v146 = vld [vmem:[#allocation3 + $0x20] sm:$0xff]
    %v147 = vld [vmem:[#allocation3 + $0x28] sm:$0xff]
    %v148 = vld [vmem:[#allocation3 + $0x30] sm:$0xff]
    %v149 = vld [vmem:[#allocation3 + $0x38] sm:$0xff]
    %v150 = vld [vmem:[#allocation3 + $0x40] sm:$0xff]
    %v151 = vld [vmem:[#allocation3 + $0x48] sm:$0xff]
    %v152 = vld [vmem:[#allocation3 + $0x50] sm:$0xff]
    %v153 = vld [vmem:[#allocation3 + $0x58] sm:$0xff]
    %v154 = vld [vmem:[#allocation3 + $0x60] sm:$0xff]
    %v155 = vld [vmem:[#allocation3 + $0x68] sm:$0xff]
    %v156 = vld [vmem:[#allocation3 + $0x70] sm:$0xff]
    %v157 = vld [vmem:[#allocation3 + $0x78] sm:$0xff]
    %v158 = vld [vmem:[#allocation3 + $0x80] sm:$0xff]
    %v159 = vld [vmem:[#allocation3 + $0x88] sm:$0xff]
    %v160 = vld [vmem:[#allocation3 + $0x90] sm:$0xff]
    %v161 = vld [vmem:[#allocation3 + $0x98] sm:$0xff]
    %v162 = vld [vmem:[#allocation3 + $0xa0] sm:$0xff]
    %v163 = vld [vmem:[#allocation3 + $0xa8] sm:$0xff]
    %v164 = vld [vmem:[#allocation3 + $0xb0] sm:$0xff]
    %v165 = vld [vmem:[#allocation3 + $0xb8] sm:$0xff]
    %v166 = vld [vmem:[#allocation3 + $0xc0] sm:$0xff]
    %v167 = vld [vmem:[#allocation3 + $0xc8] sm:$0xff]
    %v168 = vld [vmem:[#allocation3 + $0xd0] sm:$0xff]
    %v169 = vld [vmem:[#allocation3 + $0xd8] sm:$0xff]
    %v170 = vld [vmem:[#allocation3 + $0xe0] sm:$0xff]
    %v171 = vld [vmem:[#allocation3 + $0xe8] sm:$0xff]
    %v172 = vld [vmem:[#allocation3 + $0xf0] sm:$0xff]
    %v173 = vld [vmem:[#allocation3 + $0xf8] sm:$0xff]
    %v174 = vld [vmem:[#allocation3 + $0x100] sm:$0xff]
    %v175 = vld [vmem:[#allocation3 + $0x108] sm:$0xff]
    %v176 = vld [vmem:[#allocation3 + $0x110] sm:$0xff]
    %v177 = vld [vmem:[#allocation3 + $0x118] sm:$0xff]
    %v178 = vld [vmem:[#allocation3 + $0x120] sm:$0xff]
    %v179 = vld [vmem:[#allocation3 + $0x128] sm:$0xff]
    %v180 = vld [vmem:[#allocation3 + $0x130] sm:$0xff]
    %v181 = vld [vmem:[#allocation3 + $0x138] sm:$0xff]
    %v182 = vld [vmem:[#allocation3 + $0x140] sm:$0xff]
    %v183 = vld [vmem:[#allocation3 + $0x148] sm:$0xff]
    %v184 = vld [vmem:[#allocation3 + $0x150] sm:$0xff]
    %v185 = vld [vmem:[#allocation3 + $0x158] sm:$0xff]
    %v186 = vld [vmem:[#allocation3 + $0x160] sm:$0xff]
    %v187 = vld [vmem:[#allocation3 + $0x168] sm:$0xff]
    %v188 = vld [vmem:[#allocation3 + $0x170] sm:$0xff]
    %v189 = vld [vmem:[#allocation3 + $0x178] sm:$0xff]
    %v190 = vld [vmem:[#allocation3 + $0x180] sm:$0xff]
    %v191 = vld [vmem:[#allocation3 + $0x188] sm:$0xff]
    %v192 = vld [vmem:[#allocation3 + $0x190] sm:$0xff]
    %v193 = vld [vmem:[#allocation3 + $0x198] sm:$0xff]
    %v194 = vld [vmem:[#allocation3 + $0x1a0] sm:$0xff]
    %v195 = vld [vmem:[#allocation3 + $0x1a8] sm:$0xff]
    %v196 = vld [vmem:[#allocation3 + $0x1b0] sm:$0xff]
    %v197 = vld [vmem:[#allocation3 + $0x1b8] sm:$0xff]
    %v198 = vld [vmem:[#allocation3 + $0x1c0] sm:$0xff]
    %v199 = vld [vmem:[#allocation3 + $0x1c8] sm:$0xff]
    %v200 = vld [vmem:[#allocation3 + $0x1d0] sm:$0xff]
    %v201 = vld [vmem:[#allocation3 + $0x1d8] sm:$0xff]
    %v202 = vld [vmem:[#allocation3 + $0x1e0] sm:$0xff]
    %v203 = vld [vmem:[#allocation3 + $0x1e8] sm:$0xff]
    %v204 = vld [vmem:[#allocation3 + $0x1f0] sm:$0xff]
    %v205 = vld [vmem:[#allocation3 + $0x1f8] sm:$0xff]
    %v206 = vld [vmem:[#allocation3 + $0x200] sm:$0xff]
    %v207 = vld [vmem:[#allocation3 + $0x208] sm:$0xff]
    %v208 = vld [vmem:[#allocation3 + $0x210] sm:$0xff]
    %v209 = vld [vmem:[#allocation3 + $0x218] sm:$0xff]
    %v210 = vld [vmem:[#allocation3 + $0x220] sm:$0xff]
    %v211 = vld [vmem:[#allocation3 + $0x228] sm:$0xff]
    %v212 = vld [vmem:[#allocation3 + $0x230] sm:$0xff]
    %v213 = vld [vmem:[#allocation3 + $0x238] sm:$0xff]
    %v214 = vld [vmem:[#allocation3 + $0x240] sm:$0xff]
    %v215 = vld [vmem:[#allocation3 + $0x248] sm:$0xff]
    %v216 = vld [vmem:[#allocation3 + $0x250] sm:$0xff]
    %v217 = vld [vmem:[#allocation3 + $0x258] sm:$0xff]
    %v218 = vld [vmem:[#allocation3 + $0x260] sm:$0xff]
    %v219 = vld [vmem:[#allocation3 + $0x268] sm:$0xff]
    %v220 = vld [vmem:[#allocation3 + $0x270] sm:$0xff]
    %v221 = vld [vmem:[#allocation3 + $0x278] sm:$0xff]
    %v222 = vld [vmem:[#allocation3 + $0x280] sm:$0xff]
    %v223 = vld [vmem:[#allocation3 + $0x288] sm:$0xff]
    %v224 = vld [vmem:[#allocation3 + $0x290] sm:$0xff]
    %v225 = vld [vmem:[#allocation3 + $0x298] sm:$0xff]
    %v226 = vld [vmem:[#allocation3 + $0x2a0] sm:$0xff]
    %v227 = vld [vmem:[#allocation3 + $0x2a8] sm:$0xff]
    %v228 = vld [vmem:[#allocation3 + $0x2b0] sm:$0xff]
    %v229 = vld [vmem:[#allocation3 + $0x2b8] sm:$0xff]
    %v230 = vld [vmem:[#allocation3 + $0x2c0] sm:$0xff]
    %v231 = vld [vmem:[#allocation3 + $0x2c8] sm:$0xff]
    %v232 = vld [vmem:[#allocation3 + $0x2d0] sm:$0xff]
    %v233 = vld [vmem:[#allocation3 + $0x2d8] sm:$0xff]
    %v234 = vld [vmem:[#allocation3 + $0x2e0] sm:$0xff]
    %v235 = vld [vmem:[#allocation3 + $0x2e8] sm:$0xff]
    %v236 = vld [vmem:[#allocation3 + $0x2f0] sm:$0xff]
    %v237 = vld [vmem:[#allocation3 + $0x2f8] sm:$0xff]
    %v238 = vld [vmem:[#allocation3 + $0x300] sm:$0xff]
    %v239 = vld [vmem:[#allocation3 + $0x308] sm:$0xff]
    %v240 = vld [vmem:[#allocation3 + $0x310] sm:$0xff]
    %v241 = vld [vmem:[#allocation3 + $0x318] sm:$0xff]
    %v242 = vld [vmem:[#allocation3 + $0x320] sm:$0xff]
    %v243 = vld [vmem:[#allocation3 + $0x328] sm:$0xff]
    %v244 = vld [vmem:[#allocation3 + $0x330] sm:$0xff]
    %v245 = vld [vmem:[#allocation3 + $0x338] sm:$0xff]
    %v246 = vld [vmem:[#allocation3 + $0x340] sm:$0xff]
    %v247 = vld [vmem:[#allocation3 + $0x348] sm:$0xff]
    %v248 = vld [vmem:[#allocation3 + $0x350] sm:$0xff]
    %v249 = vld [vmem:[#allocation3 + $0x358] sm:$0xff]
    %v250 = vld [vmem:[#allocation3 + $0x360] sm:$0xff]
    %v251 = vld [vmem:[#allocation3 + $0x368] sm:$0xff]
    %v252 = vld [vmem:[#allocation3 + $0x370] sm:$0xff]
    %v253 = vld [vmem:[#allocation3 + $0x378] sm:$0xff]
    %v254 = vld [vmem:[#allocation3 + $0x380] sm:$0xff]
    %v255 = vld [vmem:[#allocation3 + $0x388] sm:$0xff]
    %v256 = vld [vmem:[#allocation3 + $0x390] sm:$0xff]
    %v257 = vld [vmem:[#allocation3 + $0x398] sm:$0xff]
    %v258 = vld [vmem:[#allocation3 + $0x3a0] sm:$0xff]
    %v259 = vld [vmem:[#allocation3 + $0x3a8] sm:$0xff]
    %v260 = vld [vmem:[#allocation3 + $0x3b0] sm:$0xff]
    %v261 = vld [vmem:[#allocation3 + $0x3b8] sm:$0xff]
    %v262 = vld [vmem:[#allocation3 + $0x3c0] sm:$0xff]
    %v263 = vld [vmem:[#allocation3 + $0x3c8] sm:$0xff]
    %v264 = vld [vmem:[#allocation3 + $0x3d0] sm:$0xff]
    %v265 = vld [vmem:[#allocation3 + $0x3d8] sm:$0xff]
    %v266 = vld [vmem:[#allocation3 + $0x3e0] sm:$0xff]
    %v267 = vld [vmem:[#allocation3 + $0x3e8] sm:$0xff]
    %v268 = vld [vmem:[#allocation3 + $0x3f0] sm:$0xff]
    %v269 = vld [vmem:[#allocation3 + $0x3f8] sm:$0xff]
    %v270 = vld [vmem:[#allocation3 + $0x400] sm:$0xff]
    %v271 = vld [vmem:[#allocation3 + $0x408] sm:$0xff]
    %v272 = vld [vmem:[#allocation3 + $0x410] sm:$0xff]
    %v273 = vld [vmem:[#allocation3 + $0x418] sm:$0xff]
    %v274 = vld [vmem:[#allocation3 + $0x420] sm:$0xff]
    %v275 = vld [vmem:[#allocation3 + $0x428] sm:$0xff]
    %v276 = vld [vmem:[#allocation3 + $0x430] sm:$0xff]
    %v277 = vld [vmem:[#allocation3 + $0x438] sm:$0xff]
    %v278 = vld [vmem:[#allocation3 + $0x440] sm:$0xff]
    %v279 = vld [vmem:[#allocation3 + $0x448] sm:$0xff]
    %v280 = vld [vmem:[#allocation3 + $0x450] sm:$0xff]
    %v281 = vld [vmem:[#allocation3 + $0x458] sm:$0xff]
    %v282 = vld [vmem:[#allocation3 + $0x460] sm:$0xff]
    %v283 = vld [vmem:[#allocation3 + $0x468] sm:$0xff]
    %v284 = vld [vmem:[#allocation3 + $0x470] sm:$0xff]
    %v285 = vld [vmem:[#allocation3 + $0x478] sm:$0xff]
    %v286 = vld [vmem:[#allocation3 + $0x480] sm:$0xff]
    %v287 = vld [vmem:[#allocation3 + $0x488] sm:$0xff]
    %v288 = vld [vmem:[#allocation3 + $0x490] sm:$0xff]
    %v289 = vld [vmem:[#allocation3 + $0x498] sm:$0xff]
    %v290 = vld [vmem:[#allocation3 + $0x4a0] sm:$0xff]
    %v291 = vld [vmem:[#allocation3 + $0x4a8] sm:$0xff]
    %v292 = vld [vmem:[#allocation3 + $0x4b0] sm:$0xff]
    %v293 = vld [vmem:[#allocation3 + $0x4b8] sm:$0xff]
    %v294 = vld [vmem:[#allocation3 + $0x4c0] sm:$0xff]
    %v295 = vld [vmem:[#allocation3 + $0x4c8] sm:$0xff]
    %v296 = vld [vmem:[#allocation3 + $0x4d0] sm:$0xff]
    %v297 = vld [vmem:[#allocation3 + $0x4d8] sm:$0xff]
    %v298 = vld [vmem:[#allocation3 + $0x4e0] sm:$0xff]
    %v299 = vld [vmem:[#allocation3 + $0x4e8] sm:$0xff]
    %v300 = vld [vmem:[#allocation3 + $0x4f0] sm:$0xff]
    %v301 = vld [vmem:[#allocation3 + $0x4f8] sm:$0xff]
    %v302 = vld [vmem:[#allocation3 + $0x500] sm:$0xff]
    %v303 = vld [vmem:[#allocation3 + $0x508] sm:$0xff]
    %v304 = vld [vmem:[#allocation3 + $0x510] sm:$0xff]
    %v305 = vld [vmem:[#allocation3 + $0x518] sm:$0xff]
    %v306 = vld [vmem:[#allocation3 + $0x520] sm:$0xff]
    %v307 = vld [vmem:[#allocation3 + $0x528] sm:$0xff]
    %v308 = vld [vmem:[#allocation3 + $0x530] sm:$0xff]
    %v309 = vld [vmem:[#allocation3 + $0x538] sm:$0xff]
    %v310 = vld [vmem:[#allocation3 + $0x540] sm:$0xff]
    %v311 = vld [vmem:[#allocation3 + $0x548] sm:$0xff]
    %v312 = vld [vmem:[#allocation3 + $0x550] sm:$0xff]
    %v313 = vld [vmem:[#allocation3 + $0x558] sm:$0xff]
    %v314 = vld [vmem:[#allocation3 + $0x560] sm:$0xff]
    %v315 = vld [vmem:[#allocation3 + $0x568] sm:$0xff]
    %v316 = vld [vmem:[#allocation3 + $0x570] sm:$0xff]
    %v317 = vld [vmem:[#allocation3 + $0x578] sm:$0xff]
    %v318 = vld [vmem:[#allocation3 + $0x580] sm:$0xff]
    %v319 = vld [vmem:[#allocation3 + $0x588] sm:$0xff]
    %v320 = vld [vmem:[#allocation3 + $0x590] sm:$0xff]
    %v321 = vld [vmem:[#allocation3 + $0x598] sm:$0xff]
    %v322 = vld [vmem:[#allocation3 + $0x5a0] sm:$0xff]
    %v323 = vld [vmem:[#allocation3 + $0x5a8] sm:$0xff]
    %v324 = vld [vmem:[#allocation3 + $0x5b0] sm:$0xff]
    %v325 = vld [vmem:[#allocation3 + $0x5b8] sm:$0xff]
    %v326 = vld [vmem:[#allocation3 + $0x5c0] sm:$0xff]
    %v327 = vld [vmem:[#allocation3 + $0x5c8] sm:$0xff]
    %v328 = vld [vmem:[#allocation3 + $0x5d0] sm:$0xff]
    %v329 = vld [vmem:[#allocation3 + $0x5d8] sm:$0xff]
    %v330 = vld [vmem:[#allocation3 + $0x5e0] sm:$0xff]
    %v331 = vld [vmem:[#allocation3 + $0x5e8] sm:$0xff]
    %v332 = vld [vmem:[#allocation3 + $0x5f0] sm:$0xff]
    %v333 = vld [vmem:[#allocation3 + $0x5f8] sm:$0xff]
    %v334 = vld [vmem:[#allocation3 + $0x600] sm:$0xff]
    %v335 = vld [vmem:[#allocation3 + $0x608] sm:$0xff]
    %v336 = vld [vmem:[#allocation3 + $0x610] sm:$0xff]
    %v337 = vld [vmem:[#allocation3 + $0x618] sm:$0xff]
    %v338 = vld [vmem:[#allocation3 + $0x620] sm:$0xff]
    %v339 = vld [vmem:[#allocation3 + $0x628] sm:$0xff]
    %v340 = vld [vmem:[#allocation3 + $0x630] sm:$0xff]
    %v341 = vld [vmem:[#allocation3 + $0x638] sm:$0xff]
    %v342 = vld [vmem:[#allocation3 + $0x640] sm:$0xff]
    %v343 = vld [vmem:[#allocation3 + $0x648] sm:$0xff]
    %v344 = vld [vmem:[#allocation3 + $0x650] sm:$0xff]
    %v345 = vld [vmem:[#allocation3 + $0x658] sm:$0xff]
    %v346 = vld [vmem:[#allocation3 + $0x660] sm:$0xff]
    %v347 = vld [vmem:[#allocation3 + $0x668] sm:$0xff]
    %v348 = vld [vmem:[#allocation3 + $0x670] sm:$0xff]
    %v349 = vld [vmem:[#allocation3 + $0x678] sm:$0xff]
    %v350 = vld [vmem:[#allocation3 + $0x680] sm:$0xff]
    %v351 = vld [vmem:[#allocation3 + $0x688] sm:$0xff]
    %v352 = vld [vmem:[#allocation3 + $0x690] sm:$0xff]
    %v353 = vld [vmem:[#allocation3 + $0x698] sm:$0xff]
    %v354 = vld [vmem:[#allocation3 + $0x6a0] sm:$0xff]
    %v355 = vld [vmem:[#allocation3 + $0x6a8] sm:$0xff]
    %v356 = vld [vmem:[#allocation3 + $0x6b0] sm:$0xff]
    %v357 = vld [vmem:[#allocation3 + $0x6b8] sm:$0xff]
    %v358 = vld [vmem:[#allocation3 + $0x6c0] sm:$0xff]
    %v359 = vld [vmem:[#allocation3 + $0x6c8] sm:$0xff]
    %v360 = vld [vmem:[#allocation3 + $0x6d0] sm:$0xff]
    %v361 = vld [vmem:[#allocation3 + $0x6d8] sm:$0xff]
    %v362 = vld [vmem:[#allocation3 + $0x6e0] sm:$0xff]
    %v363 = vld [vmem:[#allocation3 + $0x6e8] sm:$0xff]
    %v364 = vld [vmem:[#allocation3 + $0x6f0] sm:$0xff]
    %v365 = vld [vmem:[#allocation3 + $0x6f8] sm:$0xff]
    %v366 = vld [vmem:[#allocation3 + $0x700] sm:$0xff]
    %v367 = vld [vmem:[#allocation3 + $0x708] sm:$0xff]
    %v368 = vld [vmem:[#allocation3 + $0x710] sm:$0xff]
    %v369 = vld [vmem:[#allocation3 + $0x718] sm:$0xff]
    %v370 = vld [vmem:[#allocation3 + $0x720] sm:$0xff]
    %v371 = vld [vmem:[#allocation3 + $0x728] sm:$0xff]
    %v372 = vld [vmem:[#allocation3 + $0x730] sm:$0xff]
    %v373 = vld [vmem:[#allocation3 + $0x738] sm:$0xff]
    %v374 = vld [vmem:[#allocation3 + $0x740] sm:$0xff]
    %v375 = vld [vmem:[#allocation3 + $0x748] sm:$0xff]
    %v376 = vld [vmem:[#allocation3 + $0x750] sm:$0xff]
    %v377 = vld [vmem:[#allocation3 + $0x758] sm:$0xff]
    %v378 = vld [vmem:[#allocation3 + $0x760] sm:$0xff]
    %v379 = vld [vmem:[#allocation3 + $0x768] sm:$0xff]
    %v380 = vld [vmem:[#allocation3 + $0x770] sm:$0xff]
    %v381 = vld [vmem:[#allocation3 + $0x778] sm:$0xff]
    %v382 = vld [vmem:[#allocation3 + $0x780] sm:$0xff]
    %v383 = vld [vmem:[#allocation3 + $0x788] sm:$0xff]
    %v384 = vld [vmem:[#allocation3 + $0x790] sm:$0xff]
    %v385 = vld [vmem:[#allocation3 + $0x798] sm:$0xff]
    %v386 = vld [vmem:[#allocation3 + $0x7a0] sm:$0xff]
    %v387 = vld [vmem:[#allocation3 + $0x7a8] sm:$0xff]
    %v388 = vld [vmem:[#allocation3 + $0x7b0] sm:$0xff]
    %v389 = vld [vmem:[#allocation3 + $0x7b8] sm:$0xff]
    %v390 = vld [vmem:[#allocation3 + $0x7c0] sm:$0xff]
    %v391 = vld [vmem:[#allocation3 + $0x7c8] sm:$0xff]
    %v392 = vld [vmem:[#allocation3 + $0x7d0] sm:$0xff]
    %v393 = vld [vmem:[#allocation3 + $0x7d8] sm:$0xff]
    %v394 = vld [vmem:[#allocation3 + $0x7e0] sm:$0xff]
    %v395 = vld [vmem:[#allocation3 + $0x7e8] sm:$0xff]
    %v396 = vld [vmem:[#allocation3 + $0x7f0] sm:$0xff]
    %v397 = vld [vmem:[#allocation3 + $0x7f8] sm:$0xff]
    %v398 = vld [vmem:[#allocation3 + $0x800] sm:$0xff]
    %v399 = vld [vmem:[#allocation3 + $0x808] sm:$0xff]
    %v400 = vld [vmem:[#allocation3 + $0x810] sm:$0xff]
    %v401 = vld [vmem:[#allocation3 + $0x818] sm:$0xff]
    %v402 = vld [vmem:[#allocation3 + $0x820] sm:$0xff]
    %v403 = vld [vmem:[#allocation3 + $0x828] sm:$0xff]
    %v404 = vld [vmem:[#allocation3 + $0x830] sm:$0xff]
    %v405 = vld [vmem:[#allocation3 + $0x838] sm:$0xff]
    %v406 = vld [vmem:[#allocation3 + $0x840] sm:$0xff]
    %v407 = vld [vmem:[#allocation3 + $0x848] sm:$0xff]
    %v408 = vld [vmem:[#allocation3 + $0x850] sm:$0xff]
    %v409 = vld [vmem:[#allocation3 + $0x858] sm:$0xff]
    %v410 = vld [vmem:[#allocation3 + $0x860] sm:$0xff]
    %v411 = vld [vmem:[#allocation3 + $0x868] sm:$0xff]
    %v412 = vld [vmem:[#allocation3 + $0x870] sm:$0xff]
    %v413 = vld [vmem:[#allocation3 + $0x878] sm:$0xff]
    %v414 = vld [vmem:[#allocation3 + $0x880] sm:$0xff]
    %v415 = vld [vmem:[#allocation3 + $0x888] sm:$0xff]
    %v416 = vld [vmem:[#allocation3 + $0x890] sm:$0xff]
    %v417 = vld [vmem:[#allocation3 + $0x898] sm:$0xff]
    %v418 = vld [vmem:[#allocation3 + $0x8a0] sm:$0xff]
    %v419 = vld [vmem:[#allocation3 + $0x8a8] sm:$0xff]
    %v420 = vld [vmem:[#allocation3 + $0x8b0] sm:$0xff]
    %v421 = vld [vmem:[#allocation3 + $0x8b8] sm:$0xff]
    %v422 = vld [vmem:[#allocation3 + $0x8c0] sm:$0xff]
    %v423 = vld [vmem:[#allocation3 + $0x8c8] sm:$0xff]
    %v424 = vld [vmem:[#allocation3 + $0x8d0] sm:$0xff]
    %v425 = vld [vmem:[#allocation3 + $0x8d8] sm:$0xff]
    %v426 = vld [vmem:[#allocation3 + $0x8e0] sm:$0xff]
    %v427 = vld [vmem:[#allocation3 + $0x8e8] sm:$0xff]
    %v428 = vld [vmem:[#allocation3 + $0x8f0] sm:$0xff]
    %v429 = vld [vmem:[#allocation3 + $0x8f8] sm:$0xff]
    %v430 = vld [vmem:[#allocation3 + $0x900] sm:$0xff]
    %v431 = vld [vmem:[#allocation3 + $0x908] sm:$0xff]
    %v432 = vld [vmem:[#allocation3 + $0x910] sm:$0xff]
    %v433 = vld [vmem:[#allocation3 + $0x918] sm:$0xff]
    %v434 = vld [vmem:[#allocation3 + $0x920] sm:$0xff]
    %v435 = vld [vmem:[#allocation3 + $0x928] sm:$0xff]
    %v436 = vld [vmem:[#allocation3 + $0x930] sm:$0xff]
    %v437 = vld [vmem:[#allocation3 + $0x938] sm:$0xff]
    %v438 = vld [vmem:[#allocation3 + $0x940] sm:$0xff]
    %v439 = vld [vmem:[#allocation3 + $0x948] sm:$0xff]
    %v440 = vld [vmem:[#allocation3 + $0x950] sm:$0xff]
    %v441 = vld [vmem:[#allocation3 + $0x958] sm:$0xff]
    %v442 = vld [vmem:[#allocation3 + $0x960] sm:$0xff]
    %v443 = vld [vmem:[#allocation3 + $0x968] sm:$0xff]
    %v444 = vld [vmem:[#allocation3 + $0x970] sm:$0xff]
    %v445 = vld [vmem:[#allocation3 + $0x978] sm:$0xff]
    %v446 = vld [vmem:[#allocation3 + $0x980] sm:$0xff]
    %v447 = vld [vmem:[#allocation3 + $0x988] sm:$0xff]
    %v448 = vld [vmem:[#allocation3 + $0x990] sm:$0xff]
    %v449 = vld [vmem:[#allocation3 + $0x998] sm:$0xff]
    %v450 = vld [vmem:[#allocation3 + $0x9a0] sm:$0xff]
    %v451 = vld [vmem:[#allocation3 + $0x9a8] sm:$0xff]
    %v452 = vld [vmem:[#allocation3 + $0x9b0] sm:$0xff]
    %v453 = vld [vmem:[#allocation3 + $0x9b8] sm:$0xff]
    %v454 = vld [vmem:[#allocation3 + $0x9c0] sm:$0xff]
    %v455 = vld [vmem:[#allocation3 + $0x9c8] sm:$0xff]
    %v456 = vld [vmem:[#allocation3 + $0x9d0] sm:$0xff]
    %v457 = vld [vmem:[#allocation3 + $0x9d8] sm:$0xff]
    %v458 = vld [vmem:[#allocation3 + $0x9e0] sm:$0xff]
    %v459 = vld [vmem:[#allocation3 + $0x9e8] sm:$0xff]
    %v460 = vld [vmem:[#allocation3 + $0x9f0] sm:$0xff]
    %v461 = vld [vmem:[#allocation3 + $0x9f8] sm:$0xff]
    %v464 = vunpack.c.l.b16 %v140
    %v465 = vunpack.c.h.b16 %v140
    %v466 = vunpack.c.l.b16 %v141
    %v467 = vunpack.c.h.b16 %v141
    %v468 = vpack.c.b16 %v464, %v464
    %v469 = vpack.c.b16 %v465, %v465
    %v470 = vpack.c.b16 %v466, %v466
    %v471 = vpack.c.b16 %v467, %v467
    %v796 = vunpack.c.l.b16 %v142
    %v797 = vunpack.c.h.b16 %v142
    %v798 = vunpack.c.l.b16 %v143
    %v799 = vunpack.c.h.b16 %v143
    %v800 = vunpack.c.l.b16 %v144
    %v801 = vunpack.c.h.b16 %v144
    %v802 = vunpack.c.l.b16 %v145
    %v803 = vunpack.c.h.b16 %v145
    %v804 = vunpack.c.l.b16 %v146
    %v805 = vunpack.c.h.b16 %v146
    %v806 = vunpack.c.l.b16 %v147
    %v807 = vunpack.c.h.b16 %v147
    %v808 = vunpack.c.l.b16 %v148
    %v809 = vunpack.c.h.b16 %v148
    %v810 = vunpack.c.l.b16 %v149
    %v811 = vunpack.c.h.b16 %v149
    %v812 = vunpack.c.l.b16 %v150
    %v813 = vunpack.c.h.b16 %v150
    %v814 = vunpack.c.l.b16 %v151
    %v815 = vunpack.c.h.b16 %v151
    %v816 = vunpack.c.l.b16 %v152
    %v817 = vunpack.c.h.b16 %v152
    %v818 = vunpack.c.l.b16 %v153
    %v819 = vunpack.c.h.b16 %v153
    %v820 = vunpack.c.l.b16 %v154
    %v821 = vunpack.c.h.b16 %v154
    %v822 = vunpack.c.l.b16 %v155
    %v823 = vunpack.c.h.b16 %v155
    %v824 = vunpack.c.l.b16 %v156
    %v825 = vunpack.c.h.b16 %v156
    %v826 = vunpack.c.l.b16 %v157
    %v827 = vunpack.c.h.b16 %v157
    %v828 = vunpack.c.l.b16 %v158
    %v829 = vunpack.c.h.b16 %v158
    %v830 = vunpack.c.l.b16 %v159
    %v831 = vunpack.c.h.b16 %v159
    %v832 = vunpack.c.l.b16 %v160
    %v833 = vunpack.c.h.b16 %v160
    %v834 = vunpack.c.l.b16 %v161
    %v835 = vunpack.c.h.b16 %v161
    %v836 = vunpack.c.l.b16 %v162
    %v837 = vunpack.c.h.b16 %v162
    %v838 = vunpack.c.l.b16 %v163
    %v839 = vunpack.c.h.b16 %v163
    %v840 = vunpack.c.l.b16 %v164
    %v841 = vunpack.c.h.b16 %v164
    %v842 = vunpack.c.l.b16 %v165
    %v843 = vunpack.c.h.b16 %v165
    %v844 = vunpack.c.l.b16 %v166
    %v845 = vunpack.c.h.b16 %v166
    %v846 = vunpack.c.l.b16 %v167
    %v847 = vunpack.c.h.b16 %v167
    %v848 = vunpack.c.l.b16 %v168
    %v849 = vunpack.c.h.b16 %v168
    %v850 = vunpack.c.l.b16 %v169
    %v851 = vunpack.c.h.b16 %v169
    %v852 = vunpack.c.l.b16 %v170
    %v853 = vunpack.c.h.b16 %v170
    %v854 = vunpack.c.l.b16 %v171
    %v855 = vunpack.c.h.b16 %v171
    %v856 = vunpack.c.l.b16 %v172
    %v857 = vunpack.c.h.b16 %v172
    %v858 = vunpack.c.l.b16 %v173
    %v859 = vunpack.c.h.b16 %v173
    %v860 = vunpack.c.l.b16 %v174
    %v861 = vunpack.c.h.b16 %v174
    %v862 = vunpack.c.l.b16 %v175
    %v863 = vunpack.c.h.b16 %v175
    %v864 = vunpack.c.l.b16 %v176
    %v865 = vunpack.c.h.b16 %v176
    %v866 = vunpack.c.l.b16 %v177
    %v867 = vunpack.c.h.b16 %v177
    %v868 = vunpack.c.l.b16 %v178
    %v869 = vunpack.c.h.b16 %v178
    %v870 = vunpack.c.l.b16 %v179
    %v871 = vunpack.c.h.b16 %v179
    %v872 = vunpack.c.l.b16 %v180
    %v873 = vunpack.c.h.b16 %v180
    %v874 = vunpack.c.l.b16 %v181
    %v875 = vunpack.c.h.b16 %v181
    %v876 = vunpack.c.l.b16 %v182
    %v877 = vunpack.c.h.b16 %v182
    %v878 = vunpack.c.l.b16 %v183
    %v879 = vunpack.c.h.b16 %v183
    %v880 = vunpack.c.l.b16 %v184
    %v881 = vunpack.c.h.b16 %v184
    %v882 = vunpack.c.l.b16 %v185
    %v883 = vunpack.c.h.b16 %v185
    %v884 = vunpack.c.l.b16 %v186
    %v885 = vunpack.c.h.b16 %v186
    %v886 = vunpack.c.l.b16 %v187
    %v887 = vunpack.c.h.b16 %v187
    %v888 = vunpack.c.l.b16 %v188
    %v889 = vunpack.c.h.b16 %v188
    %v890 = vunpack.c.l.b16 %v189
    %v891 = vunpack.c.h.b16 %v189
    %v892 = vunpack.c.l.b16 %v190
    %v893 = vunpack.c.h.b16 %v190
    %v894 = vunpack.c.l.b16 %v191
    %v895 = vunpack.c.h.b16 %v191
    %v896 = vunpack.c.l.b16 %v192
    %v897 = vunpack.c.h.b16 %v192
    %v898 = vunpack.c.l.b16 %v193
    %v899 = vunpack.c.h.b16 %v193
    %v900 = vunpack.c.l.b16 %v194
    %v901 = vunpack.c.h.b16 %v194
    %v902 = vunpack.c.l.b16 %v195
    %v903 = vunpack.c.h.b16 %v195
    %v904 = vunpack.c.l.b16 %v196
    %v905 = vunpack.c.h.b16 %v196
    %v906 = vunpack.c.l.b16 %v197
    %v907 = vunpack.c.h.b16 %v197
    %v908 = vunpack.c.l.b16 %v198
    %v909 = vunpack.c.h.b16 %v198
    %v910 = vunpack.c.l.b16 %v199
    %v911 = vunpack.c.h.b16 %v199
    %v912 = vunpack.c.l.b16 %v200
    %v913 = vunpack.c.h.b16 %v200
    %v914 = vunpack.c.l.b16 %v201
    %v915 = vunpack.c.h.b16 %v201
    %v916 = vunpack.c.l.b16 %v202
    %v917 = vunpack.c.h.b16 %v202
    %v918 = vunpack.c.l.b16 %v203
    %v919 = vunpack.c.h.b16 %v203
    %v920 = vunpack.c.l.b16 %v204
    %v921 = vunpack.c.h.b16 %v204
    %v922 = vunpack.c.l.b16 %v205
    %v923 = vunpack.c.h.b16 %v205
    %v924 = vunpack.c.l.b16 %v206
    %v925 = vunpack.c.h.b16 %v206
    %v926 = vunpack.c.l.b16 %v207
    %v927 = vunpack.c.h.b16 %v207
    %v928 = vunpack.c.l.b16 %v208
    %v929 = vunpack.c.h.b16 %v208
    %v930 = vunpack.c.l.b16 %v209
    %v931 = vunpack.c.h.b16 %v209
    %v932 = vunpack.c.l.b16 %v210
    %v933 = vunpack.c.h.b16 %v210
    %v934 = vunpack.c.l.b16 %v211
    %v935 = vunpack.c.h.b16 %v211
    %v936 = vunpack.c.l.b16 %v212
    %v937 = vunpack.c.h.b16 %v212
    %v938 = vunpack.c.l.b16 %v213
    %v939 = vunpack.c.h.b16 %v213
    %v940 = vunpack.c.l.b16 %v214
    %v941 = vunpack.c.h.b16 %v214
    %v942 = vunpack.c.l.b16 %v215
    %v943 = vunpack.c.h.b16 %v215
    %v944 = vunpack.c.l.b16 %v216
    %v945 = vunpack.c.h.b16 %v216
    %v946 = vunpack.c.l.b16 %v217
    %v947 = vunpack.c.h.b16 %v217
    %v948 = vunpack.c.l.b16 %v218
    %v949 = vunpack.c.h.b16 %v218
    %v950 = vunpack.c.l.b16 %v219
    %v951 = vunpack.c.h.b16 %v219
    %v952 = vunpack.c.l.b16 %v220
    %v953 = vunpack.c.h.b16 %v220
    %v954 = vunpack.c.l.b16 %v221
    %v955 = vunpack.c.h.b16 %v221
    %v956 = vunpack.c.l.b16 %v222
    %v957 = vunpack.c.h.b16 %v222
    %v958 = vunpack.c.l.b16 %v223
    %v959 = vunpack.c.h.b16 %v223
    %v960 = vunpack.c.l.b16 %v224
    %v961 = vunpack.c.h.b16 %v224
    %v962 = vunpack.c.l.b16 %v225
    %v963 = vunpack.c.h.b16 %v225
    %v964 = vunpack.c.l.b16 %v226
    %v965 = vunpack.c.h.b16 %v226
    %v966 = vunpack.c.l.b16 %v227
    %v967 = vunpack.c.h.b16 %v227
    %v968 = vunpack.c.l.b16 %v228
    %v969 = vunpack.c.h.b16 %v228
    %v970 = vunpack.c.l.b16 %v229
    %v971 = vunpack.c.h.b16 %v229
    %v972 = vunpack.c.l.b16 %v230
    %v973 = vunpack.c.h.b16 %v230
    %v974 = vunpack.c.l.b16 %v231
    %v975 = vunpack.c.h.b16 %v231
    %v976 = vunpack.c.l.b16 %v232
    %v977 = vunpack.c.h.b16 %v232
    %v978 = vunpack.c.l.b16 %v233
    %v979 = vunpack.c.h.b16 %v233
    %v980 = vunpack.c.l.b16 %v234
    %v981 = vunpack.c.h.b16 %v234
    %v982 = vunpack.c.l.b16 %v235
    %v983 = vunpack.c.h.b16 %v235
    %v984 = vunpack.c.l.b16 %v236
    %v985 = vunpack.c.h.b16 %v236
    %v986 = vunpack.c.l.b16 %v237
    %v987 = vunpack.c.h.b16 %v237
    %v988 = vunpack.c.l.b16 %v238
    %v989 = vunpack.c.h.b16 %v238
    %v990 = vunpack.c.l.b16 %v239
    %v991 = vunpack.c.h.b16 %v239
    %v992 = vunpack.c.l.b16 %v240
    %v993 = vunpack.c.h.b16 %v240
    %v994 = vunpack.c.l.b16 %v241
    %v995 = vunpack.c.h.b16 %v241
    %v996 = vunpack.c.l.b16 %v242
    %v997 = vunpack.c.h.b16 %v242
    %v998 = vunpack.c.l.b16 %v243
    %v999 = vunpack.c.h.b16 %v243
    %v1000 = vunpack.c.l.b16 %v244
    %v1001 = vunpack.c.h.b16 %v244
    %v1002 = vunpack.c.l.b16 %v245
    %v1003 = vunpack.c.h.b16 %v245
    %v1004 = vunpack.c.l.b16 %v246
    %v1005 = vunpack.c.h.b16 %v246
    %v1006 = vunpack.c.l.b16 %v247
    %v1007 = vunpack.c.h.b16 %v247
    %v1008 = vunpack.c.l.b16 %v248
    %v1009 = vunpack.c.h.b16 %v248
    %v1010 = vunpack.c.l.b16 %v249
    %v1011 = vunpack.c.h.b16 %v249
    %v1012 = vunpack.c.l.b16 %v250
    %v1013 = vunpack.c.h.b16 %v250
    %v1014 = vunpack.c.l.b16 %v251
    %v1015 = vunpack.c.h.b16 %v251
    %v1016 = vunpack.c.l.b16 %v252
    %v1017 = vunpack.c.h.b16 %v252
    %v1018 = vunpack.c.l.b16 %v253
    %v1019 = vunpack.c.h.b16 %v253
    %v1020 = vunpack.c.l.b16 %v254
    %v1021 = vunpack.c.h.b16 %v254
    %v1022 = vunpack.c.l.b16 %v255
    %v1023 = vunpack.c.h.b16 %v255
    %v1024 = vunpack.c.l.b16 %v256
    %v1025 = vunpack.c.h.b16 %v256
    %v1026 = vunpack.c.l.b16 %v257
    %v1027 = vunpack.c.h.b16 %v257
    %v1028 = vunpack.c.l.b16 %v258
    %v1029 = vunpack.c.h.b16 %v258
    %v1030 = vunpack.c.l.b16 %v259
    %v1031 = vunpack.c.h.b16 %v259
    %v1032 = vunpack.c.l.b16 %v260
    %v1033 = vunpack.c.h.b16 %v260
    %v1034 = vunpack.c.l.b16 %v261
    %v1035 = vunpack.c.h.b16 %v261
    %v1036 = vunpack.c.l.b16 %v262
    %v1037 = vunpack.c.h.b16 %v262
    %v1038 = vunpack.c.l.b16 %v263
    %v1039 = vunpack.c.h.b16 %v263
    %v1040 = vunpack.c.l.b16 %v264
    %v1041 = vunpack.c.h.b16 %v264
    %v1042 = vunpack.c.l.b16 %v265
    %v1043 = vunpack.c.h.b16 %v265
    %v1044 = vunpack.c.l.b16 %v266
    %v1045 = vunpack.c.h.b16 %v266
    %v1046 = vunpack.c.l.b16 %v267
    %v1047 = vunpack.c.h.b16 %v267
    %v1048 = vunpack.c.l.b16 %v268
    %v1049 = vunpack.c.h.b16 %v268
    %v1050 = vunpack.c.l.b16 %v269
    %v1051 = vunpack.c.h.b16 %v269
    %v1052 = vunpack.c.l.b16 %v270
    %v1053 = vunpack.c.h.b16 %v270
    %v1054 = vunpack.c.l.b16 %v271
    %v1055 = vunpack.c.h.b16 %v271
    %v1056 = vunpack.c.l.b16 %v272
    %v1057 = vunpack.c.h.b16 %v272
    %v1058 = vunpack.c.l.b16 %v273
    %v1059 = vunpack.c.h.b16 %v273
    %v1060 = vunpack.c.l.b16 %v274
    %v1061 = vunpack.c.h.b16 %v274
    %v1062 = vunpack.c.l.b16 %v275
    %v1063 = vunpack.c.h.b16 %v275
    %v1064 = vunpack.c.l.b16 %v276
    %v1065 = vunpack.c.h.b16 %v276
    %v1066 = vunpack.c.l.b16 %v277
    %v1067 = vunpack.c.h.b16 %v277
    %v1068 = vunpack.c.l.b16 %v278
    %v1069 = vunpack.c.h.b16 %v278
    %v1070 = vunpack.c.l.b16 %v279
    %v1071 = vunpack.c.h.b16 %v279
    %v1072 = vunpack.c.l.b16 %v280
    %v1073 = vunpack.c.h.b16 %v280
    %v1074 = vunpack.c.l.b16 %v281
    %v1075 = vunpack.c.h.b16 %v281
    %v1076 = vunpack.c.l.b16 %v282
    %v1077 = vunpack.c.h.b16 %v282
    %v1078 = vunpack.c.l.b16 %v283
    %v1079 = vunpack.c.h.b16 %v283
    %v1080 = vunpack.c.l.b16 %v284
    %v1081 = vunpack.c.h.b16 %v284
    %v1082 = vunpack.c.l.b16 %v285
    %v1083 = vunpack.c.h.b16 %v285
    %v1084 = vunpack.c.l.b16 %v286
    %v1085 = vunpack.c.h.b16 %v286
    %v1086 = vunpack.c.l.b16 %v287
    %v1087 = vunpack.c.h.b16 %v287
    %v1088 = vunpack.c.l.b16 %v288
    %v1089 = vunpack.c.h.b16 %v288
    %v1090 = vunpack.c.l.b16 %v289
    %v1091 = vunpack.c.h.b16 %v289
    %v1092 = vunpack.c.l.b16 %v290
    %v1093 = vunpack.c.h.b16 %v290
    %v1094 = vunpack.c.l.b16 %v291
    %v1095 = vunpack.c.h.b16 %v291
    %v1096 = vunpack.c.l.b16 %v292
    %v1097 = vunpack.c.h.b16 %v292
    %v1098 = vunpack.c.l.b16 %v293
    %v1099 = vunpack.c.h.b16 %v293
    %v1100 = vunpack.c.l.b16 %v294
    %v1101 = vunpack.c.h.b16 %v294
    %v1102 = vunpack.c.l.b16 %v295
    %v1103 = vunpack.c.h.b16 %v295
    %v1104 = vunpack.c.l.b16 %v296
    %v1105 = vunpack.c.h.b16 %v296
    %v1106 = vunpack.c.l.b16 %v297
    %v1107 = vunpack.c.h.b16 %v297
    %v1108 = vunpack.c.l.b16 %v298
    %v1109 = vunpack.c.h.b16 %v298
    %v1110 = vunpack.c.l.b16 %v299
    %v1111 = vunpack.c.h.b16 %v299
    %v1112 = vunpack.c.l.b16 %v300
    %v1113 = vunpack.c.h.b16 %v300
    %v1114 = vunpack.c.l.b16 %v301
    %v1115 = vunpack.c.h.b16 %v301
    %v1116 = vunpack.c.l.b16 %v302
    %v1117 = vunpack.c.h.b16 %v302
    %v1118 = vunpack.c.l.b16 %v303
    %v1119 = vunpack.c.h.b16 %v303
    %v1120 = vunpack.c.l.b16 %v304
    %v1121 = vunpack.c.h.b16 %v304
    %v1122 = vunpack.c.l.b16 %v305
    %v1123 = vunpack.c.h.b16 %v305
    %v1124 = vunpack.c.l.b16 %v306
    %v1125 = vunpack.c.h.b16 %v306
    %v1126 = vunpack.c.l.b16 %v307
    %v1127 = vunpack.c.h.b16 %v307
    %v1128 = vunpack.c.l.b16 %v308
    %v1129 = vunpack.c.h.b16 %v308
    %v1130 = vunpack.c.l.b16 %v309
    %v1131 = vunpack.c.h.b16 %v309
    %v1132 = vunpack.c.l.b16 %v310
    %v1133 = vunpack.c.h.b16 %v310
    %v1134 = vunpack.c.l.b16 %v311
    %v1135 = vunpack.c.h.b16 %v311
    %v1136 = vunpack.c.l.b16 %v312
    %v1137 = vunpack.c.h.b16 %v312
    %v1138 = vunpack.c.l.b16 %v313
    %v1139 = vunpack.c.h.b16 %v313
    %v1140 = vunpack.c.l.b16 %v314
    %v1141 = vunpack.c.h.b16 %v314
    %v1142 = vunpack.c.l.b16 %v315
    %v1143 = vunpack.c.h.b16 %v315
    %v1144 = vunpack.c.l.b16 %v316
    %v1145 = vunpack.c.h.b16 %v316
    %v1146 = vunpack.c.l.b16 %v317
    %v1147 = vunpack.c.h.b16 %v317
    %v1148 = vunpack.c.l.b16 %v318
    %v1149 = vunpack.c.h.b16 %v318
    %v1150 = vunpack.c.l.b16 %v319
    %v1151 = vunpack.c.h.b16 %v319
    %v1152 = vunpack.c.l.b16 %v320
    %v1153 = vunpack.c.h.b16 %v320
    %v1154 = vunpack.c.l.b16 %v321
    %v1155 = vunpack.c.h.b16 %v321
    %v1156 = vunpack.c.l.b16 %v322
    %v1157 = vunpack.c.h.b16 %v322
    %v1158 = vunpack.c.l.b16 %v323
    %v1159 = vunpack.c.h.b16 %v323
    %v1160 = vunpack.c.l.b16 %v324
    %v1161 = vunpack.c.h.b16 %v324
    %v1162 = vunpack.c.l.b16 %v325
    %v1163 = vunpack.c.h.b16 %v325
    %v1164 = vunpack.c.l.b16 %v326
    %v1165 = vunpack.c.h.b16 %v326
    %v1166 = vunpack.c.l.b16 %v327
    %v1167 = vunpack.c.h.b16 %v327
    %v1168 = vunpack.c.l.b16 %v328
    %v1169 = vunpack.c.h.b16 %v328
    %v1170 = vunpack.c.l.b16 %v329
    %v1171 = vunpack.c.h.b16 %v329
    %v1172 = vunpack.c.l.b16 %v330
    %v1173 = vunpack.c.h.b16 %v330
    %v1174 = vunpack.c.l.b16 %v331
    %v1175 = vunpack.c.h.b16 %v331
    %v1176 = vunpack.c.l.b16 %v332
    %v1177 = vunpack.c.h.b16 %v332
    %v1178 = vunpack.c.l.b16 %v333
    %v1179 = vunpack.c.h.b16 %v333
    %v1180 = vunpack.c.l.b16 %v334
    %v1181 = vunpack.c.h.b16 %v334
    %v1182 = vunpack.c.l.b16 %v335
    %v1183 = vunpack.c.h.b16 %v335
    %v1184 = vunpack.c.l.b16 %v336
    %v1185 = vunpack.c.h.b16 %v336
    %v1186 = vunpack.c.l.b16 %v337
    %v1187 = vunpack.c.h.b16 %v337
    %v1188 = vunpack.c.l.b16 %v338
    %v1189 = vunpack.c.h.b16 %v338
    %v1190 = vunpack.c.l.b16 %v339
    %v1191 = vunpack.c.h.b16 %v339
    %v1192 = vunpack.c.l.b16 %v340
    %v1193 = vunpack.c.h.b16 %v340
    %v1194 = vunpack.c.l.b16 %v341
    %v1195 = vunpack.c.h.b16 %v341
    %v1196 = vunpack.c.l.b16 %v342
    %v1197 = vunpack.c.h.b16 %v342
    %v1198 = vunpack.c.l.b16 %v343
    %v1199 = vunpack.c.h.b16 %v343
    %v1200 = vunpack.c.l.b16 %v344
    %v1201 = vunpack.c.h.b16 %v344
    %v1202 = vunpack.c.l.b16 %v345
    %v1203 = vunpack.c.h.b16 %v345
    %v1204 = vunpack.c.l.b16 %v346
    %v1205 = vunpack.c.h.b16 %v346
    %v1206 = vunpack.c.l.b16 %v347
    %v1207 = vunpack.c.h.b16 %v347
    %v1208 = vunpack.c.l.b16 %v348
    %v1209 = vunpack.c.h.b16 %v348
    %v1210 = vunpack.c.l.b16 %v349
    %v1211 = vunpack.c.h.b16 %v349
    %v1212 = vunpack.c.l.b16 %v350
    %v1213 = vunpack.c.h.b16 %v350
    %v1214 = vunpack.c.l.b16 %v351
    %v1215 = vunpack.c.h.b16 %v351
    %v1216 = vunpack.c.l.b16 %v352
    %v1217 = vunpack.c.h.b16 %v352
    %v1218 = vunpack.c.l.b16 %v353
    %v1219 = vunpack.c.h.b16 %v353
    %v1220 = vunpack.c.l.b16 %v354
    %v1221 = vunpack.c.h.b16 %v354
    %v1222 = vunpack.c.l.b16 %v355
    %v1223 = vunpack.c.h.b16 %v355
    %v1224 = vunpack.c.l.b16 %v356
    %v1225 = vunpack.c.h.b16 %v356
    %v1226 = vunpack.c.l.b16 %v357
    %v1227 = vunpack.c.h.b16 %v357
    %v1228 = vunpack.c.l.b16 %v358
    %v1229 = vunpack.c.h.b16 %v358
    %v1230 = vunpack.c.l.b16 %v359
    %v1231 = vunpack.c.h.b16 %v359
    %v1232 = vunpack.c.l.b16 %v360
    %v1233 = vunpack.c.h.b16 %v360
    %v1234 = vunpack.c.l.b16 %v361
    %v1235 = vunpack.c.h.b16 %v361
    %v1236 = vunpack.c.l.b16 %v362
    %v1237 = vunpack.c.h.b16 %v362
    %v1238 = vunpack.c.l.b16 %v363
    %v1239 = vunpack.c.h.b16 %v363
    %v1240 = vunpack.c.l.b16 %v364
    %v1241 = vunpack.c.h.b16 %v364
    %v1242 = vunpack.c.l.b16 %v365
    %v1243 = vunpack.c.h.b16 %v365
    %v1244 = vunpack.c.l.b16 %v366
    %v1245 = vunpack.c.h.b16 %v366
    %v1246 = vunpack.c.l.b16 %v367
    %v1247 = vunpack.c.h.b16 %v367
    %v1248 = vunpack.c.l.b16 %v368
    %v1249 = vunpack.c.h.b16 %v368
    %v1250 = vunpack.c.l.b16 %v369
    %v1251 = vunpack.c.h.b16 %v369
    %v1252 = vunpack.c.l.b16 %v370
    %v1253 = vunpack.c.h.b16 %v370
    %v1254 = vunpack.c.l.b16 %v371
    %v1255 = vunpack.c.h.b16 %v371
    %v1256 = vunpack.c.l.b16 %v372
    %v1257 = vunpack.c.h.b16 %v372
    %v1258 = vunpack.c.l.b16 %v373
    %v1259 = vunpack.c.h.b16 %v373
    %v1260 = vunpack.c.l.b16 %v374
    %v1261 = vunpack.c.h.b16 %v374
    %v1262 = vunpack.c.l.b16 %v375
    %v1263 = vunpack.c.h.b16 %v375
    %v1264 = vunpack.c.l.b16 %v376
    %v1265 = vunpack.c.h.b16 %v376
    %v1266 = vunpack.c.l.b16 %v377
    %v1267 = vunpack.c.h.b16 %v377
    %v1268 = vunpack.c.l.b16 %v378
    %v1269 = vunpack.c.h.b16 %v378
    %v1270 = vunpack.c.l.b16 %v379
    %v1271 = vunpack.c.h.b16 %v379
    %v1272 = vunpack.c.l.b16 %v380
    %v1273 = vunpack.c.h.b16 %v380
    %v1274 = vunpack.c.l.b16 %v381
    %v1275 = vunpack.c.h.b16 %v381
    %v1276 = vunpack.c.l.b16 %v382
    %v1277 = vunpack.c.h.b16 %v382
    %v1278 = vunpack.c.l.b16 %v383
    %v1279 = vunpack.c.h.b16 %v383
    %v1280 = vunpack.c.l.b16 %v384
    %v1281 = vunpack.c.h.b16 %v384
    %v1282 = vunpack.c.l.b16 %v385
    %v1283 = vunpack.c.h.b16 %v385
    %v1284 = vunpack.c.l.b16 %v386
    %v1285 = vunpack.c.h.b16 %v386
    %v1286 = vunpack.c.l.b16 %v387
    %v1287 = vunpack.c.h.b16 %v387
    %v1288 = vunpack.c.l.b16 %v388
    %v1289 = vunpack.c.h.b16 %v388
    %v1290 = vunpack.c.l.b16 %v389
    %v1291 = vunpack.c.h.b16 %v389
    %v1292 = vunpack.c.l.b16 %v390
    %v1293 = vunpack.c.h.b16 %v390
    %v1294 = vunpack.c.l.b16 %v391
    %v1295 = vunpack.c.h.b16 %v391
    %v1296 = vunpack.c.l.b16 %v392
    %v1297 = vunpack.c.h.b16 %v392
    %v1298 = vunpack.c.l.b16 %v393
    %v1299 = vunpack.c.h.b16 %v393
    %v1300 = vunpack.c.l.b16 %v394
    %v1301 = vunpack.c.h.b16 %v394
    %v1302 = vunpack.c.l.b16 %v395
    %v1303 = vunpack.c.h.b16 %v395
    %v1304 = vunpack.c.l.b16 %v396
    %v1305 = vunpack.c.h.b16 %v396
    %v1306 = vunpack.c.l.b16 %v397
    %v1307 = vunpack.c.h.b16 %v397
    %v1308 = vunpack.c.l.b16 %v398
    %v1309 = vunpack.c.h.b16 %v398
    %v1310 = vunpack.c.l.b16 %v399
    %v1311 = vunpack.c.h.b16 %v399
    %v1312 = vunpack.c.l.b16 %v400
    %v1313 = vunpack.c.h.b16 %v400
    %v1314 = vunpack.c.l.b16 %v401
    %v1315 = vunpack.c.h.b16 %v401
    %v1316 = vunpack.c.l.b16 %v402
    %v1317 = vunpack.c.h.b16 %v402
    %v1318 = vunpack.c.l.b16 %v403
    %v1319 = vunpack.c.h.b16 %v403
    %v1320 = vunpack.c.l.b16 %v404
    %v1321 = vunpack.c.h.b16 %v404
    %v1322 = vunpack.c.l.b16 %v405
    %v1323 = vunpack.c.h.b16 %v405
    %v1324 = vunpack.c.l.b16 %v406
    %v1325 = vunpack.c.h.b16 %v406
    %v1326 = vunpack.c.l.b16 %v407
    %v1327 = vunpack.c.h.b16 %v407
    %v1328 = vunpack.c.l.b16 %v408
    %v1329 = vunpack.c.h.b16 %v408
    %v1330 = vunpack.c.l.b16 %v409
    %v1331 = vunpack.c.h.b16 %v409
    %v1332 = vunpack.c.l.b16 %v410
    %v1333 = vunpack.c.h.b16 %v410
    %v1334 = vunpack.c.l.b16 %v411
    %v1335 = vunpack.c.h.b16 %v411
    %v1336 = vunpack.c.l.b16 %v412
    %v1337 = vunpack.c.h.b16 %v412
    %v1338 = vunpack.c.l.b16 %v413
    %v1339 = vunpack.c.h.b16 %v413
    %v1340 = vunpack.c.l.b16 %v414
    %v1341 = vunpack.c.h.b16 %v414
    %v1342 = vunpack.c.l.b16 %v415
    %v1343 = vunpack.c.h.b16 %v415
    %v1344 = vunpack.c.l.b16 %v416
    %v1345 = vunpack.c.h.b16 %v416
    %v1346 = vunpack.c.l.b16 %v417
    %v1347 = vunpack.c.h.b16 %v417
    %v1348 = vunpack.c.l.b16 %v418
    %v1349 = vunpack.c.h.b16 %v418
    %v1350 = vunpack.c.l.b16 %v419
    %v1351 = vunpack.c.h.b16 %v419
    %v1352 = vunpack.c.l.b16 %v420
    %v1353 = vunpack.c.h.b16 %v420
    %v1354 = vunpack.c.l.b16 %v421
    %v1355 = vunpack.c.h.b16 %v421
    %v1356 = vunpack.c.l.b16 %v422
    %v1357 = vunpack.c.h.b16 %v422
    %v1358 = vunpack.c.l.b16 %v423
    %v1359 = vunpack.c.h.b16 %v423
    %v1360 = vunpack.c.l.b16 %v424
    %v1361 = vunpack.c.h.b16 %v424
    %v1362 = vunpack.c.l.b16 %v425
    %v1363 = vunpack.c.h.b16 %v425
    %v1364 = vunpack.c.l.b16 %v426
    %v1365 = vunpack.c.h.b16 %v426
    %v1366 = vunpack.c.l.b16 %v427
    %v1367 = vunpack.c.h.b16 %v427
    %v1368 = vunpack.c.l.b16 %v428
    %v1369 = vunpack.c.h.b16 %v428
    %v1370 = vunpack.c.l.b16 %v429
    %v1371 = vunpack.c.h.b16 %v429
    %v1372 = vunpack.c.l.b16 %v430
    %v1373 = vunpack.c.h.b16 %v430
    %v1374 = vunpack.c.l.b16 %v431
    %v1375 = vunpack.c.h.b16 %v431
    %v1376 = vunpack.c.l.b16 %v432
    %v1377 = vunpack.c.h.b16 %v432
    %v1378 = vunpack.c.l.b16 %v433
    %v1379 = vunpack.c.h.b16 %v433
    %v1380 = vunpack.c.l.b16 %v434
    %v1381 = vunpack.c.h.b16 %v434
    %v1382 = vunpack.c.l.b16 %v435
    %v1383 = vunpack.c.h.b16 %v435
    %v1384 = vunpack.c.l.b16 %v436
    %v1385 = vunpack.c.h.b16 %v436
    %v1386 = vunpack.c.l.b16 %v437
    %v1387 = vunpack.c.h.b16 %v437
    %v1388 = vunpack.c.l.b16 %v438
    %v1389 = vunpack.c.h.b16 %v438
    %v1390 = vunpack.c.l.b16 %v439
    %v1391 = vunpack.c.h.b16 %v439
    %v1392 = vunpack.c.l.b16 %v440
    %v1393 = vunpack.c.h.b16 %v440
    %v1394 = vunpack.c.l.b16 %v441
    %v1395 = vunpack.c.h.b16 %v441
    %v1396 = vunpack.c.l.b16 %v442
    %v1397 = vunpack.c.h.b16 %v442
    %v1398 = vunpack.c.l.b16 %v443
    %v1399 = vunpack.c.h.b16 %v443
    %v1400 = vunpack.c.l.b16 %v444
    %v1401 = vunpack.c.h.b16 %v444
    %v1402 = vunpack.c.l.b16 %v445
    %v1403 = vunpack.c.h.b16 %v445
    %v1404 = vunpack.c.l.b16 %v446
    %v1405 = vunpack.c.h.b16 %v446
    %v1406 = vunpack.c.l.b16 %v447
    %v1407 = vunpack.c.h.b16 %v447
    %v1408 = vunpack.c.l.b16 %v448
    %v1409 = vunpack.c.h.b16 %v448
    %v1410 = vunpack.c.l.b16 %v449
    %v1411 = vunpack.c.h.b16 %v449
    %v1412 = vunpack.c.l.b16 %v450
    %v1413 = vunpack.c.h.b16 %v450
    %v1414 = vunpack.c.l.b16 %v451
    %v1415 = vunpack.c.h.b16 %v451
    %v1416 = vunpack.c.l.b16 %v452
    %v1417 = vunpack.c.h.b16 %v452
    %v1418 = vunpack.c.l.b16 %v453
    %v1419 = vunpack.c.h.b16 %v453
    %v1420 = vunpack.c.l.b16 %v454
    %v1421 = vunpack.c.h.b16 %v454
    %v1422 = vunpack.c.l.b16 %v455
    %v1423 = vunpack.c.h.b16 %v455
    %v1424 = vunpack.c.l.b16 %v456
    %v1425 = vunpack.c.h.b16 %v456
    %v1426 = vunpack.c.l.b16 %v457
    %v1427 = vunpack.c.h.b16 %v457
    %v1428 = vunpack.c.l.b16 %v458
    %v1429 = vunpack.c.h.b16 %v458
    %v1430 = vunpack.c.l.b16 %v459
    %v1431 = vunpack.c.h.b16 %v459
    %v1432 = vunpack.c.l.b16 %v460
    %v1433 = vunpack.c.h.b16 %v460
    %v1434 = vunpack.c.l.b16 %v461
    %v1435 = vunpack.c.h.b16 %v461
    %v1436 = vpack.c.b16 %v806, %v796
    %v1437 = vpack.c.b16 %v807, %v797
    %v1438 = vpack.c.b16 %v808, %v798
    %v1439 = vpack.c.b16 %v809, %v799
    %v1440 = vpack.c.b16 %v810, %v800
    %v1441 = vpack.c.b16 %v811, %v801
    %v1442 = vpack.c.b16 %v812, %v802
    %v1443 = vpack.c.b16 %v813, %v803
    %v1444 = vpack.c.b16 %v814, %v804
    %v1445 = vpack.c.b16 %v815, %v805
    %v1446 = vpack.c.b16 %v826, %v816
    %v1447 = vpack.c.b16 %v827, %v817
    %v1448 = vpack.c.b16 %v828, %v818
    %v1449 = vpack.c.b16 %v829, %v819
    %v1450 = vpack.c.b16 %v830, %v820
    %v1451 = vpack.c.b16 %v831, %v821
    %v1452 = vpack.c.b16 %v832, %v822
    %v1453 = vpack.c.b16 %v833, %v823
    %v1454 = vpack.c.b16 %v834, %v824
    %v1455 = vpack.c.b16 %v835, %v825
    %v1456 = vpack.c.b16 %v846, %v836
    %v1457 = vpack.c.b16 %v847, %v837
    %v1458 = vpack.c.b16 %v848, %v838
    %v1459 = vpack.c.b16 %v849, %v839
    %v1460 = vpack.c.b16 %v850, %v840
    %v1461 = vpack.c.b16 %v851, %v841
    %v1462 = vpack.c.b16 %v852, %v842
    %v1463 = vpack.c.b16 %v853, %v843
    %v1464 = vpack.c.b16 %v854, %v844
    %v1465 = vpack.c.b16 %v855, %v845
    %v1466 = vpack.c.b16 %v866, %v856
    %v1467 = vpack.c.b16 %v867, %v857
    %v1468 = vpack.c.b16 %v868, %v858
    %v1469 = vpack.c.b16 %v869, %v859
    %v1470 = vpack.c.b16 %v870, %v860
    %v1471 = vpack.c.b16 %v871, %v861
    %v1472 = vpack.c.b16 %v872, %v862
    %v1473 = vpack.c.b16 %v873, %v863
    %v1474 = vpack.c.b16 %v874, %v864
    %v1475 = vpack.c.b16 %v875, %v865
    %v1476 = vpack.c.b16 %v886, %v876
    %v1477 = vpack.c.b16 %v887, %v877
    %v1478 = vpack.c.b16 %v888, %v878
    %v1479 = vpack.c.b16 %v889, %v879
    %v1480 = vpack.c.b16 %v890, %v880
    %v1481 = vpack.c.b16 %v891, %v881
    %v1482 = vpack.c.b16 %v892, %v882
    %v1483 = vpack.c.b16 %v893, %v883
    %v1484 = vpack.c.b16 %v894, %v884
    %v1485 = vpack.c.b16 %v895, %v885
    %v1486 = vpack.c.b16 %v906, %v896
    %v1487 = vpack.c.b16 %v907, %v897
    %v1488 = vpack.c.b16 %v908, %v898
    %v1489 = vpack.c.b16 %v909, %v899
    %v1490 = vpack.c.b16 %v910, %v900
    %v1491 = vpack.c.b16 %v911, %v901
    %v1492 = vpack.c.b16 %v912, %v902
    %v1493 = vpack.c.b16 %v913, %v903
    %v1494 = vpack.c.b16 %v914, %v904
    %v1495 = vpack.c.b16 %v915, %v905
    %v1496 = vpack.c.b16 %v926, %v916
    %v1497 = vpack.c.b16 %v927, %v917
    %v1498 = vpack.c.b16 %v928, %v918
    %v1499 = vpack.c.b16 %v929, %v919
    %v1500 = vpack.c.b16 %v930, %v920
    %v1501 = vpack.c.b16 %v931, %v921
    %v1502 = vpack.c.b16 %v932, %v922
    %v1503 = vpack.c.b16 %v933, %v923
    %v1504 = vpack.c.b16 %v934, %v924
    %v1505 = vpack.c.b16 %v935, %v925
    %v1506 = vpack.c.b16 %v946, %v936
    %v1507 = vpack.c.b16 %v947, %v937
    %v1508 = vpack.c.b16 %v948, %v938
    %v1509 = vpack.c.b16 %v949, %v939
    %v1510 = vpack.c.b16 %v950, %v940
    %v1511 = vpack.c.b16 %v951, %v941
    %v1512 = vpack.c.b16 %v952, %v942
    %v1513 = vpack.c.b16 %v953, %v943
    %v1514 = vpack.c.b16 %v954, %v944
    %v1515 = vpack.c.b16 %v955, %v945
    %v1516 = vpack.c.b16 %v966, %v956
    %v1517 = vpack.c.b16 %v967, %v957
    %v1518 = vpack.c.b16 %v968, %v958
    %v1519 = vpack.c.b16 %v969, %v959
    %v1520 = vpack.c.b16 %v970, %v960
    %v1521 = vpack.c.b16 %v971, %v961
    %v1522 = vpack.c.b16 %v972, %v962
    %v1523 = vpack.c.b16 %v973, %v963
    %v1524 = vpack.c.b16 %v974, %v964
    %v1525 = vpack.c.b16 %v975, %v965
    %v1526 = vpack.c.b16 %v986, %v976
    %v1527 = vpack.c.b16 %v987, %v977
    %v1528 = vpack.c.b16 %v988, %v978
    %v1529 = vpack.c.b16 %v989, %v979
    %v1530 = vpack.c.b16 %v990, %v980
    %v1531 = vpack.c.b16 %v991, %v981
    %v1532 = vpack.c.b16 %v992, %v982
    %v1533 = vpack.c.b16 %v993, %v983
    %v1534 = vpack.c.b16 %v994, %v984
    %v1535 = vpack.c.b16 %v995, %v985
    %v1536 = vpack.c.b16 %v1006, %v996
    %v1537 = vpack.c.b16 %v1007, %v997
    %v1538 = vpack.c.b16 %v1008, %v998
    %v1539 = vpack.c.b16 %v1009, %v999
    %v1540 = vpack.c.b16 %v1010, %v1000
    %v1541 = vpack.c.b16 %v1011, %v1001
    %v1542 = vpack.c.b16 %v1012, %v1002
    %v1543 = vpack.c.b16 %v1013, %v1003
    %v1544 = vpack.c.b16 %v1014, %v1004
    %v1545 = vpack.c.b16 %v1015, %v1005
    %v1546 = vpack.c.b16 %v1026, %v1016
    %v1547 = vpack.c.b16 %v1027, %v1017
    %v1548 = vpack.c.b16 %v1028, %v1018
    %v1549 = vpack.c.b16 %v1029, %v1019
    %v1550 = vpack.c.b16 %v1030, %v1020
    %v1551 = vpack.c.b16 %v1031, %v1021
    %v1552 = vpack.c.b16 %v1032, %v1022
    %v1553 = vpack.c.b16 %v1033, %v1023
    %v1554 = vpack.c.b16 %v1034, %v1024
    %v1555 = vpack.c.b16 %v1035, %v1025
    %v1556 = vpack.c.b16 %v1046, %v1036
    %v1557 = vpack.c.b16 %v1047, %v1037
    %v1558 = vpack.c.b16 %v1048, %v1038
    %v1559 = vpack.c.b16 %v1049, %v1039
    %v1560 = vpack.c.b16 %v1050, %v1040
    %v1561 = vpack.c.b16 %v1051, %v1041
    %v1562 = vpack.c.b16 %v1052, %v1042
    %v1563 = vpack.c.b16 %v1053, %v1043
    %v1564 = vpack.c.b16 %v1054, %v1044
    %v1565 = vpack.c.b16 %v1055, %v1045
    %v1566 = vpack.c.b16 %v1066, %v1056
    %v1567 = vpack.c.b16 %v1067, %v1057
    %v1568 = vpack.c.b16 %v1068, %v1058
    %v1569 = vpack.c.b16 %v1069, %v1059
    %v1570 = vpack.c.b16 %v1070, %v1060
    %v1571 = vpack.c.b16 %v1071, %v1061
    %v1572 = vpack.c.b16 %v1072, %v1062
    %v1573 = vpack.c.b16 %v1073, %v1063
    %v1574 = vpack.c.b16 %v1074, %v1064
    %v1575 = vpack.c.b16 %v1075, %v1065
    %v1576 = vpack.c.b16 %v1086, %v1076
    %v1577 = vpack.c.b16 %v1087, %v1077
    %v1578 = vpack.c.b16 %v1088, %v1078
    %v1579 = vpack.c.b16 %v1089, %v1079
    %v1580 = vpack.c.b16 %v1090, %v1080
    %v1581 = vpack.c.b16 %v1091, %v1081
    %v1582 = vpack.c.b16 %v1092, %v1082
    %v1583 = vpack.c.b16 %v1093, %v1083
    %v1584 = vpack.c.b16 %v1094, %v1084
    %v1585 = vpack.c.b16 %v1095, %v1085
    %v1586 = vpack.c.b16 %v1106, %v1096
    %v1587 = vpack.c.b16 %v1107, %v1097
    %v1588 = vpack.c.b16 %v1108, %v1098
    %v1589 = vpack.c.b16 %v1109, %v1099
    %v1590 = vpack.c.b16 %v1110, %v1100
    %v1591 = vpack.c.b16 %v1111, %v1101
    %v1592 = vpack.c.b16 %v1112, %v1102
    %v1593 = vpack.c.b16 %v1113, %v1103
    %v1594 = vpack.c.b16 %v1114, %v1104
    %v1595 = vpack.c.b16 %v1115, %v1105
    %v1596 = vpack.c.b16 %v1126, %v1116
    %v1597 = vpack.c.b16 %v1127, %v1117
    %v1598 = vpack.c.b16 %v1128, %v1118
    %v1599 = vpack.c.b16 %v1129, %v1119
    %v1600 = vpack.c.b16 %v1130, %v1120
    %v1601 = vpack.c.b16 %v1131, %v1121
    %v1602 = vpack.c.b16 %v1132, %v1122
    %v1603 = vpack.c.b16 %v1133, %v1123
    %v1604 = vpack.c.b16 %v1134, %v1124
    %v1605 = vpack.c.b16 %v1135, %v1125
    %v1606 = vpack.c.b16 %v1146, %v1136
    %v1607 = vpack.c.b16 %v1147, %v1137
    %v1608 = vpack.c.b16 %v1148, %v1138
    %v1609 = vpack.c.b16 %v1149, %v1139
    %v1610 = vpack.c.b16 %v1150, %v1140
    %v1611 = vpack.c.b16 %v1151, %v1141
    %v1612 = vpack.c.b16 %v1152, %v1142
    %v1613 = vpack.c.b16 %v1153, %v1143
    %v1614 = vpack.c.b16 %v1154, %v1144
    %v1615 = vpack.c.b16 %v1155, %v1145
    %v1616 = vpack.c.b16 %v1166, %v1156
    %v1617 = vpack.c.b16 %v1167, %v1157
    %v1618 = vpack.c.b16 %v1168, %v1158
    %v1619 = vpack.c.b16 %v1169, %v1159
    %v1620 = vpack.c.b16 %v1170, %v1160
    %v1621 = vpack.c.b16 %v1171, %v1161
    %v1622 = vpack.c.b16 %v1172, %v1162
    %v1623 = vpack.c.b16 %v1173, %v1163
    %v1624 = vpack.c.b16 %v1174, %v1164
    %v1625 = vpack.c.b16 %v1175, %v1165
    %v1626 = vpack.c.b16 %v1186, %v1176
    %v1627 = vpack.c.b16 %v1187, %v1177
    %v1628 = vpack.c.b16 %v1188, %v1178
    %v1629 = vpack.c.b16 %v1189, %v1179
    %v1630 = vpack.c.b16 %v1190, %v1180
    %v1631 = vpack.c.b16 %v1191, %v1181
    %v1632 = vpack.c.b16 %v1192, %v1182
    %v1633 = vpack.c.b16 %v1193, %v1183
    %v1634 = vpack.c.b16 %v1194, %v1184
    %v1635 = vpack.c.b16 %v1195, %v1185
    %v1636 = vpack.c.b16 %v1206, %v1196
    %v1637 = vpack.c.b16 %v1207, %v1197
    %v1638 = vpack.c.b16 %v1208, %v1198
    %v1639 = vpack.c.b16 %v1209, %v1199
    %v1640 = vpack.c.b16 %v1210, %v1200
    %v1641 = vpack.c.b16 %v1211, %v1201
    %v1642 = vpack.c.b16 %v1212, %v1202
    %v1643 = vpack.c.b16 %v1213, %v1203
    %v1644 = vpack.c.b16 %v1214, %v1204
    %v1645 = vpack.c.b16 %v1215, %v1205
    %v1646 = vpack.c.b16 %v1226, %v1216
    %v1647 = vpack.c.b16 %v1227, %v1217
    %v1648 = vpack.c.b16 %v1228, %v1218
    %v1649 = vpack.c.b16 %v1229, %v1219
    %v1650 = vpack.c.b16 %v1230, %v1220
    %v1651 = vpack.c.b16 %v1231, %v1221
    %v1652 = vpack.c.b16 %v1232, %v1222
    %v1653 = vpack.c.b16 %v1233, %v1223
    %v1654 = vpack.c.b16 %v1234, %v1224
    %v1655 = vpack.c.b16 %v1235, %v1225
    %v1656 = vpack.c.b16 %v1246, %v1236
    %v1657 = vpack.c.b16 %v1247, %v1237
    %v1658 = vpack.c.b16 %v1248, %v1238
    %v1659 = vpack.c.b16 %v1249, %v1239
    %v1660 = vpack.c.b16 %v1250, %v1240
    %v1661 = vpack.c.b16 %v1251, %v1241
    %v1662 = vpack.c.b16 %v1252, %v1242
    %v1663 = vpack.c.b16 %v1253, %v1243
    %v1664 = vpack.c.b16 %v1254, %v1244
    %v1665 = vpack.c.b16 %v1255, %v1245
    %v1666 = vpack.c.b16 %v1266, %v1256
    %v1667 = vpack.c.b16 %v1267, %v1257
    %v1668 = vpack.c.b16 %v1268, %v1258
    %v1669 = vpack.c.b16 %v1269, %v1259
    %v1670 = vpack.c.b16 %v1270, %v1260
    %v1671 = vpack.c.b16 %v1271, %v1261
    %v1672 = vpack.c.b16 %v1272, %v1262
    %v1673 = vpack.c.b16 %v1273, %v1263
    %v1674 = vpack.c.b16 %v1274, %v1264
    %v1675 = vpack.c.b16 %v1275, %v1265
    %v1676 = vpack.c.b16 %v1286, %v1276
    %v1677 = vpack.c.b16 %v1287, %v1277
    %v1678 = vpack.c.b16 %v1288, %v1278
    %v1679 = vpack.c.b16 %v1289, %v1279
    %v1680 = vpack.c.b16 %v1290, %v1280
    %v1681 = vpack.c.b16 %v1291, %v1281
    %v1682 = vpack.c.b16 %v1292, %v1282
    %v1683 = vpack.c.b16 %v1293, %v1283
    %v1684 = vpack.c.b16 %v1294, %v1284
    %v1685 = vpack.c.b16 %v1295, %v1285
    %v1686 = vpack.c.b16 %v1306, %v1296
    %v1687 = vpack.c.b16 %v1307, %v1297
    %v1688 = vpack.c.b16 %v1308, %v1298
    %v1689 = vpack.c.b16 %v1309, %v1299
    %v1690 = vpack.c.b16 %v1310, %v1300
    %v1691 = vpack.c.b16 %v1311, %v1301
    %v1692 = vpack.c.b16 %v1312, %v1302
    %v1693 = vpack.c.b16 %v1313, %v1303
    %v1694 = vpack.c.b16 %v1314, %v1304
    %v1695 = vpack.c.b16 %v1315, %v1305
    %v1696 = vpack.c.b16 %v1326, %v1316
    %v1697 = vpack.c.b16 %v1327, %v1317
    %v1698 = vpack.c.b16 %v1328, %v1318
    %v1699 = vpack.c.b16 %v1329, %v1319
    %v1700 = vpack.c.b16 %v1330, %v1320
    %v1701 = vpack.c.b16 %v1331, %v1321
    %v1702 = vpack.c.b16 %v1332, %v1322
    %v1703 = vpack.c.b16 %v1333, %v1323
    %v1704 = vpack.c.b16 %v1334, %v1324
    %v1705 = vpack.c.b16 %v1335, %v1325
    %v1706 = vpack.c.b16 %v1346, %v1336
    %v1707 = vpack.c.b16 %v1347, %v1337
    %v1708 = vpack.c.b16 %v1348, %v1338
    %v1709 = vpack.c.b16 %v1349, %v1339
    %v1710 = vpack.c.b16 %v1350, %v1340
    %v1711 = vpack.c.b16 %v1351, %v1341
    %v1712 = vpack.c.b16 %v1352, %v1342
    %v1713 = vpack.c.b16 %v1353, %v1343
    %v1714 = vpack.c.b16 %v1354, %v1344
    %v1715 = vpack.c.b16 %v1355, %v1345
    %v1716 = vpack.c.b16 %v1366, %v1356
    %v1717 = vpack.c.b16 %v1367, %v1357
    %v1718 = vpack.c.b16 %v1368, %v1358
    %v1719 = vpack.c.b16 %v1369, %v1359
    %v1720 = vpack.c.b16 %v1370, %v1360
    %v1721 = vpack.c.b16 %v1371, %v1361
    %v1722 = vpack.c.b16 %v1372, %v1362
    %v1723 = vpack.c.b16 %v1373, %v1363
    %v1724 = vpack.c.b16 %v1374, %v1364
    %v1725 = vpack.c.b16 %v1375, %v1365
    %v1726 = vpack.c.b16 %v1386, %v1376
    %v1727 = vpack.c.b16 %v1387, %v1377
    %v1728 = vpack.c.b16 %v1388, %v1378
    %v1729 = vpack.c.b16 %v1389, %v1379
    %v1730 = vpack.c.b16 %v1390, %v1380
    %v1731 = vpack.c.b16 %v1391, %v1381
    %v1732 = vpack.c.b16 %v1392, %v1382
    %v1733 = vpack.c.b16 %v1393, %v1383
    %v1734 = vpack.c.b16 %v1394, %v1384
    %v1735 = vpack.c.b16 %v1395, %v1385
    %v1736 = vpack.c.b16 %v1406, %v1396
    %v1737 = vpack.c.b16 %v1407, %v1397
    %v1738 = vpack.c.b16 %v1408, %v1398
    %v1739 = vpack.c.b16 %v1409, %v1399
    %v1740 = vpack.c.b16 %v1410, %v1400
    %v1741 = vpack.c.b16 %v1411, %v1401
    %v1742 = vpack.c.b16 %v1412, %v1402
    %v1743 = vpack.c.b16 %v1413, %v1403
    %v1744 = vpack.c.b16 %v1414, %v1404
    %v1745 = vpack.c.b16 %v1415, %v1405
    %v1746 = vpack.c.b16 %v1426, %v1416
    %v1747 = vpack.c.b16 %v1427, %v1417
    %v1748 = vpack.c.b16 %v1428, %v1418
    %v1749 = vpack.c.b16 %v1429, %v1419
    %v1750 = vpack.c.b16 %v1430, %v1420
    %v1751 = vpack.c.b16 %v1431, %v1421
    %v1752 = vpack.c.b16 %v1432, %v1422
    %v1753 = vpack.c.b16 %v1433, %v1423
    %v1754 = vpack.c.b16 %v1434, %v1424
    %v1755 = vpack.c.b16 %v1435, %v1425
    %2076 = vmatprep.subr.bf16.mxu0 %v1437
    %2077 = vmatpush1.bf16.msra.mxu0 %v1436
    %2078 = vmatprep.subr.bf16.mxu0 %v1447
    %2079 = vmatpush1.bf16.msra.mxu0 %v1446
    %2080 = vmatprep.subr.bf16.mxu0 %v1457
    %2081 = vmatpush1.bf16.msra.mxu0 %v1456
    %2082 = vmatprep.subr.bf16.mxu0 %v1467
    %2083 = vmatpush1.bf16.msra.mxu0 %v1466
    %2084 = vmatprep.subr.bf16.mxu0 %v1477
    %2085 = vmatpush1.bf16.msra.mxu0 %v1476
    %2086 = vmatprep.subr.bf16.mxu0 %v1487
    %2087 = vmatpush1.bf16.msra.mxu0 %v1486
    %2088 = vmatprep.subr.bf16.mxu0 %v1497
    %2089 = vmatpush1.bf16.msra.mxu0 %v1496
    %2090 = vmatprep.subr.bf16.mxu0 %v1507
    %2091 = vmatpush1.bf16.msra.mxu0 %v1506
    %2092 = vmatprep.subr.bf16.mxu0 %v1517
    %2093 = vmatpush1.bf16.msra.mxu0 %v1516
    %2094 = vmatprep.subr.bf16.mxu0 %v1527
    %2095 = vmatpush1.bf16.msra.mxu0 %v1526
    %2096 = vmatprep.subr.bf16.mxu0 %v1537
    %2097 = vmatpush1.bf16.msra.mxu0 %v1536
    %2098 = vmatprep.subr.bf16.mxu0 %v1547
    %2099 = vmatpush1.bf16.msra.mxu0 %v1546
    %2100 = vmatprep.subr.bf16.mxu0 %v1557
    %2101 = vmatpush1.bf16.msra.mxu0 %v1556
    %2102 = vmatprep.subr.bf16.mxu0 %v1567
    %2103 = vmatpush1.bf16.msra.mxu0 %v1566
    %2104 = vmatprep.subr.bf16.mxu0 %v1577
    %2105 = vmatpush1.bf16.msra.mxu0 %v1576
    %2106 = vmatprep.subr.bf16.mxu0 %v1587
    %2107 = vmatpush1.bf16.msra.mxu0 %v1586
    %2108 = vmatprep.mubr.bf16.mxu0 %v469
    %2109 = vmatmul.mubr.bf16.gmra.mrb[0].mxu0 %v468
    %v2110 = vpop.f32.mrb[0].mxu0
    %v2111 = vadd.f32 0.0, %v2110
    %v2112 = vpop.f32.mrb[0].mxu0
    %v2113 = vadd.f32 0.0, %v2112
    %v2114 = vpop.f32.mrb[0].mxu0
    %v2115 = vpop.f32.mrb[0].mxu0
    %2116 = vdwg.mxu0
    %2117 = vmatprep.subr.bf16.mxu0 %v1597
    %2118 = vmatpush1.bf16.msra.mxu0 %v1596
    %2119 = vmatprep.subr.bf16.mxu0 %v1607
    %2120 = vmatpush1.bf16.msra.mxu0 %v1606
    %2121 = vmatprep.subr.bf16.mxu0 %v1617
    %2122 = vmatpush1.bf16.msra.mxu0 %v1616
    %2123 = vmatprep.subr.bf16.mxu0 %v1627
    %2124 = vmatpush1.bf16.msra.mxu0 %v1626
    %2125 = vmatprep.subr.bf16.mxu0 %v1637
    %2126 = vmatpush1.bf16.msra.mxu0 %v1636
    %2127 = vmatprep.subr.bf16.mxu0 %v1647
    %2128 = vmatpush1.bf16.msra.mxu0 %v1646
    %2129 = vmatprep.subr.bf16.mxu0 %v1657
    %2130 = vmatpush1.bf16.msra.mxu0 %v1656
    %2131 = vmatprep.subr.bf16.mxu0 %v1667
    %2132 = vmatpush1.bf16.msra.mxu0 %v1666
    %2133 = vmatprep.subr.bf16.mxu0 %v1677
    %2134 = vmatpush1.bf16.msra.mxu0 %v1676
    %2135 = vmatprep.subr.bf16.mxu0 %v1687
    %2136 = vmatpush1.bf16.msra.mxu0 %v1686
    %2137 = vmatprep.subr.bf16.mxu0 %v1697
    %2138 = vmatpush1.bf16.msra.mxu0 %v1696
    %2139 = vmatprep.subr.bf16.mxu0 %v1707
    %2140 = vmatpush1.bf16.msra.mxu0 %v1706
    %2141 = vmatprep.subr.bf16.mxu0 %v1717
    %2142 = vmatpush1.bf16.msra.mxu0 %v1716
    %2143 = vmatprep.subr.bf16.mxu0 %v1727
    %2144 = vmatpush1.bf16.msra.mxu0 %v1726
    %2145 = vmatprep.subr.bf16.mxu0 %v1737
    %2146 = vmatpush1.bf16.msra.mxu0 %v1736
    %2147 = vmatprep.subr.bf16.mxu0 %v1747
    %2148 = vmatpush1.bf16.msra.mxu0 %v1746
    %2149 = vmatprep.mubr.bf16.mxu0 %v471
    %2150 = vmatmul.mubr.bf16.gmra.mrb[0].mxu0 %v470
    %v2151 = vpop.f32.mrb[0].mxu0
    %v2152 = vadd.f32 %v2111, %v2151
    %v2153 = vpop.f32.mrb[0].mxu0
    %v2154 = vadd.f32 %v2113, %v2153
    %v2155 = vpop.f32.mrb[0].mxu0
    %v2156 = vpop.f32.mrb[0].mxu0
    %2157 = vdwg.mxu0
    %2158 = vmatprep.subr.bf16.mxu0 %v1439
    %2159 = vmatpush1.bf16.msra.mxu0 %v1438
    %2160 = vmatprep.subr.bf16.mxu0 %v1449
    %2161 = vmatpush1.bf16.msra.mxu0 %v1448
    %2162 = vmatprep.subr.bf16.mxu0 %v1459
    %2163 = vmatpush1.bf16.msra.mxu0 %v1458
    %2164 = vmatprep.subr.bf16.mxu0 %v1469
    %2165 = vmatpush1.bf16.msra.mxu0 %v1468
    %2166 = vmatprep.subr.bf16.mxu0 %v1479
    %2167 = vmatpush1.bf16.msra.mxu0 %v1478
    %2168 = vmatprep.subr.bf16.mxu0 %v1489
    %2169 = vmatpush1.bf16.msra.mxu0 %v1488
    %2170 = vmatprep.subr.bf16.mxu0 %v1499
    %2171 = vmatpush1.bf16.msra.mxu0 %v1498
    %2172 = vmatprep.subr.bf16.mxu0 %v1509
    %2173 = vmatpush1.bf16.msra.mxu0 %v1508
    %2174 = vmatprep.subr.bf16.mxu0 %v1519
    %2175 = vmatpush1.bf16.msra.mxu0 %v1518
    %2176 = vmatprep.subr.bf16.mxu0 %v1529
    %2177 = vmatpush1.bf16.msra.mxu0 %v1528
    %2178 = vmatprep.subr.bf16.mxu0 %v1539
    %2179 = vmatpush1.bf16.msra.mxu0 %v1538
    %2180 = vmatprep.subr.bf16.mxu0 %v1549
    %2181 = vmatpush1.bf16.msra.mxu0 %v1548
    %2182 = vmatprep.subr.bf16.mxu0 %v1559
    %2183 = vmatpush1.bf16.msra.mxu0 %v1558
    %2184 = vmatprep.subr.bf16.mxu0 %v1569
    %2185 = vmatpush1.bf16.msra.mxu0 %v1568
    %2186 = vmatprep.subr.bf16.mxu0 %v1579
    %2187 = vmatpush1.bf16.msra.mxu0 %v1578
    %2188 = vmatprep.subr.bf16.mxu0 %v1589
    %2189 = vmatpush1.bf16.msra.mxu0 %v1588
    %2190 = vmatprep.mubr.bf16.mxu0 %v469
    %2191 = vmatmul.mubr.bf16.gmra.mrb[0].mxu0 %v468
    %v2192 = vpop.f32.mrb[0].mxu0
    %v2193 = vadd.f32 0.0, %v2192
    %v2194 = vpop.f32.mrb[0].mxu0
    %v2195 = vadd.f32 0.0, %v2194
    %v2196 = vpop.f32.mrb[0].mxu0
    %v2197 = vpop.f32.mrb[0].mxu0
    %2198 = vdwg.mxu0
    %2199 = vmatprep.subr.bf16.mxu0 %v1599
    %2200 = vmatpush1.bf16.msra.mxu0 %v1598
    %2201 = vmatprep.subr.bf16.mxu0 %v1609
    %2202 = vmatpush1.bf16.msra.mxu0 %v1608
    %2203 = vmatprep.subr.bf16.mxu0 %v1619
    %2204 = vmatpush1.bf16.msra.mxu0 %v1618
    %2205 = vmatprep.subr.bf16.mxu0 %v1629
    %2206 = vmatpush1.bf16.msra.mxu0 %v1628
    %2207 = vmatprep.subr.bf16.mxu0 %v1639
    %2208 = vmatpush1.bf16.msra.mxu0 %v1638
    %2209 = vmatprep.subr.bf16.mxu0 %v1649
    %2210 = vmatpush1.bf16.msra.mxu0 %v1648
    %2211 = vmatprep.subr.bf16.mxu0 %v1659
    %2212 = vmatpush1.bf16.msra.mxu0 %v1658
    %2213 = vmatprep.subr.bf16.mxu0 %v1669
    %2214 = vmatpush1.bf16.msra.mxu0 %v1668
    %2215 = vmatprep.subr.bf16.mxu0 %v1679
    %2216 = vmatpush1.bf16.msra.mxu0 %v1678
    %2217 = vmatprep.subr.bf16.mxu0 %v1689
    %2218 = vmatpush1.bf16.msra.mxu0 %v1688
    %2219 = vmatprep.subr.bf16.mxu0 %v1699
    %2220 = vmatpush1.bf16.msra.mxu0 %v1698
    %2221 = vmatprep.subr.bf16.mxu0 %v1709
    %2222 = vmatpush1.bf16.msra.mxu0 %v1708
    %2223 = vmatprep.subr.bf16.mxu0 %v1719
    %2224 = vmatpush1.bf16.msra.mxu0 %v1718
    %2225 = vmatprep.subr.bf16.mxu0 %v1729
    %2226 = vmatpush1.bf16.msra.mxu0 %v1728
    %2227 = vmatprep.subr.bf16.mxu0 %v1739
    %2228 = vmatpush1.bf16.msra.mxu0 %v1738
    %2229 = vmatprep.subr.bf16.mxu0 %v1749
    %2230 = vmatpush1.bf16.msra.mxu0 %v1748
    %2231 = vmatprep.mubr.bf16.mxu0 %v471
    %2232 = vmatmul.mubr.bf16.gmra.mrb[0].mxu0 %v470
    %v2233 = vpop.f32.mrb[0].mxu0
    %v2234 = vadd.f32 %v2193, %v2233
    %v2235 = vpop.f32.mrb[0].mxu0
    %v2236 = vadd.f32 %v2195, %v2235
    %v2237 = vpop.f32.mrb[0].mxu0
    %v2238 = vpop.f32.mrb[0].mxu0
    %2239 = vdwg.mxu0
    %2240 = vmatprep.subr.bf16.mxu0 %v1441
    %2241 = vmatpush1.bf16.msra.mxu0 %v1440
    %2242 = vmatprep.subr.bf16.mxu0 %v1451
    %2243 = vmatpush1.bf16.msra.mxu0 %v1450
    %2244 = vmatprep.subr.bf16.mxu0 %v1461
    %2245 = vmatpush1.bf16.msra.mxu0 %v1460
    %2246 = vmatprep.subr.bf16.mxu0 %v1471
    %2247 = vmatpush1.bf16.msra.mxu0 %v1470
    %2248 = vmatprep.subr.bf16.mxu0 %v1481
    %2249 = vmatpush1.bf16.msra.mxu0 %v1480
    %2250 = vmatprep.subr.bf16.mxu0 %v1491
    %2251 = vmatpush1.bf16.msra.mxu0 %v1490
    %2252 = vmatprep.subr.bf16.mxu0 %v1501
    %2253 = vmatpush1.bf16.msra.mxu0 %v1500
    %2254 = vmatprep.subr.bf16.mxu0 %v1511
    %2255 = vmatpush1.bf16.msra.mxu0 %v1510
    %2256 = vmatprep.subr.bf16.mxu0 %v1521
    %2257 = vmatpush1.bf16.msra.mxu0 %v1520
    %2258 = vmatprep.subr.bf16.mxu0 %v1531
    %2259 = vmatpush1.bf16.msra.mxu0 %v1530
    %2260 = vmatprep.subr.bf16.mxu0 %v1541
    %2261 = vmatpush1.bf16.msra.mxu0 %v1540
    %2262 = vmatprep.subr.bf16.mxu0 %v1551
    %2263 = vmatpush1.bf16.msra.mxu0 %v1550
    %2264 = vmatprep.subr.bf16.mxu0 %v1561
    %2265 = vmatpush1.bf16.msra.mxu0 %v1560
    %2266 = vmatprep.subr.bf16.mxu0 %v1571
    %2267 = vmatpush1.bf16.msra.mxu0 %v1570
    %2268 = vmatprep.subr.bf16.mxu0 %v1581
    %2269 = vmatpush1.bf16.msra.mxu0 %v1580
    %2270 = vmatprep.subr.bf16.mxu0 %v1591
    %2271 = vmatpush1.bf16.msra.mxu0 %v1590
    %2272 = vmatprep.mubr.bf16.mxu0 %v469
    %2273 = vmatmul.mubr.bf16.gmra.mrb[0].mxu0 %v468
    %v2274 = vpop.f32.mrb[0].mxu0
    %v2275 = vadd.f32 0.0, %v2274
    %v2276 = vpop.f32.mrb[0].mxu0
    %v2277 = vadd.f32 0.0, %v2276
    %v2278 = vpop.f32.mrb[0].mxu0
    %v2279 = vpop.f32.mrb[0].mxu0
    %2280 = vdwg.mxu0
    %2281 = vmatprep.subr.bf16.mxu0 %v1601
    %2282 = vmatpush1.bf16.msra.mxu0 %v1600
    %2283 = vmatprep.subr.bf16.mxu0 %v1611
    %2284 = vmatpush1.bf16.msra.mxu0 %v1610
    %2285 = vmatprep.subr.bf16.mxu0 %v1621
    %2286 = vmatpush1.bf16.msra.mxu0 %v1620
    %2287 = vmatprep.subr.bf16.mxu0 %v1631
    %2288 = vmatpush1.bf16.msra.mxu0 %v1630
    %2289 = vmatprep.subr.bf16.mxu0 %v1641
    %2290 = vmatpush1.bf16.msra.mxu0 %v1640
    %2291 = vmatprep.subr.bf16.mxu0 %v1651
    %2292 = vmatpush1.bf16.msra.mxu0 %v1650
    %2293 = vmatprep.subr.bf16.mxu0 %v1661
    %2294 = vmatpush1.bf16.msra.mxu0 %v1660
    %2295 = vmatprep.subr.bf16.mxu0 %v1671
    %2296 = vmatpush1.bf16.msra.mxu0 %v1670
    %2297 = vmatprep.subr.bf16.mxu0 %v1681
    %2298 = vmatpush1.bf16.msra.mxu0 %v1680
    %2299 = vmatprep.subr.bf16.mxu0 %v1691
    %2300 = vmatpush1.bf16.msra.mxu0 %v1690
    %2301 = vmatprep.subr.bf16.mxu0 %v1701
    %2302 = vmatpush1.bf16.msra.mxu0 %v1700
    %2303 = vmatprep.subr.bf16.mxu0 %v1711
    %2304 = vmatpush1.bf16.msra.mxu0 %v1710
    %2305 = vmatprep.subr.bf16.mxu0 %v1721
    %2306 = vmatpush1.bf16.msra.mxu0 %v1720
    %2307 = vmatprep.subr.bf16.mxu0 %v1731
    %2308 = vmatpush1.bf16.msra.mxu0 %v1730
    %2309 = vmatprep.subr.bf16.mxu0 %v1741
    %2310 = vmatpush1.bf16.msra.mxu0 %v1740
    %2311 = vmatprep.subr.bf16.mxu0 %v1751
    %2312 = vmatpush1.bf16.msra.mxu0 %v1750
    %2313 = vmatprep.mubr.bf16.mxu0 %v471
    %2314 = vmatmul.mubr.bf16.gmra.mrb[0].mxu0 %v470
    %v2315 = vpop.f32.mrb[0].mxu0
    %v2316 = vadd.f32 %v2275, %v2315
    %v2317 = vpop.f32.mrb[0].mxu0
    %v2318 = vadd.f32 %v2277, %v2317
    %v2319 = vpop.f32.mrb[0].mxu0
    %v2320 = vpop.f32.mrb[0].mxu0
    %2321 = vdwg.mxu0
    %2322 = vmatprep.subr.bf16.mxu0 %v1443
    %2323 = vmatpush1.bf16.msra.mxu0 %v1442
    %2324 = vmatprep.subr.bf16.mxu0 %v1453
    %2325 = vmatpush1.bf16.msra.mxu0 %v1452
    %2326 = vmatprep.subr.bf16.mxu0 %v1463
    %2327 = vmatpush1.bf16.msra.mxu0 %v1462
    %2328 = vmatprep.subr.bf16.mxu0 %v1473
    %2329 = vmatpush1.bf16.msra.mxu0 %v1472
    %2330 = vmatprep.subr.bf16.mxu0 %v1483
    %2331 = vmatpush1.bf16.msra.mxu0 %v1482
    %2332 = vmatprep.subr.bf16.mxu0 %v1493
    %2333 = vmatpush1.bf16.msra.mxu0 %v1492
    %2334 = vmatprep.subr.bf16.mxu0 %v1503
    %2335 = vmatpush1.bf16.msra.mxu0 %v1502
    %2336 = vmatprep.subr.bf16.mxu0 %v1513
    %2337 = vmatpush1.bf16.msra.mxu0 %v1512
    %2338 = vmatprep.subr.bf16.mxu0 %v1523
    %2339 = vmatpush1.bf16.msra.mxu0 %v1522
    %2340 = vmatprep.subr.bf16.mxu0 %v1533
    %2341 = vmatpush1.bf16.msra.mxu0 %v1532
    %2342 = vmatprep.subr.bf16.mxu0 %v1543
    %2343 = vmatpush1.bf16.msra.mxu0 %v1542
    %2344 = vmatprep.subr.bf16.mxu0 %v1553
    %2345 = vmatpush1.bf16.msra.mxu0 %v1552
    %2346 = vmatprep.subr.bf16.mxu0 %v1563
    %2347 = vmatpush1.bf16.msra.mxu0 %v1562
    %2348 = vmatprep.subr.bf16.mxu0 %v1573
    %2349 = vmatpush1.bf16.msra.mxu0 %v1572
    %2350 = vmatprep.subr.bf16.mxu0 %v1583
    %2351 = vmatpush1.bf16.msra.mxu0 %v1582
    %2352 = vmatprep.subr.bf16.mxu0 %v1593
    %2353 = vmatpush1.bf16.msra.mxu0 %v1592
    %2354 = vmatprep.mubr.bf16.mxu0 %v469
    %2355 = vmatmul.mubr.bf16.gmra.mrb[0].mxu0 %v468
    %v2356 = vpop.f32.mrb[0].mxu0
    %v2357 = vadd.f32 0.0, %v2356
    %v2358 = vpop.f32.mrb[0].mxu0
    %v2359 = vadd.f32 0.0, %v2358
    %v2360 = vpop.f32.mrb[0].mxu0
    %v2361 = vpop.f32.mrb[0].mxu0
    %2362 = vdwg.mxu0
    %2363 = vmatprep.subr.bf16.mxu0 %v1603
    %2364 = vmatpush1.bf16.msra.mxu0 %v1602
    %2365 = vmatprep.subr.bf16.mxu0 %v1613
    %2366 = vmatpush1.bf16.msra.mxu0 %v1612
    %2367 = vmatprep.subr.bf16.mxu0 %v1623
    %2368 = vmatpush1.bf16.msra.mxu0 %v1622
    %2369 = vmatprep.subr.bf16.mxu0 %v1633
    %2370 = vmatpush1.bf16.msra.mxu0 %v1632
    %2371 = vmatprep.subr.bf16.mxu0 %v1643
    %2372 = vmatpush1.bf16.msra.mxu0 %v1642
    %2373 = vmatprep.subr.bf16.mxu0 %v1653
    %2374 = vmatpush1.bf16.msra.mxu0 %v1652
    %2375 = vmatprep.subr.bf16.mxu0 %v1663
    %2376 = vmatpush1.bf16.msra.mxu0 %v1662
    %2377 = vmatprep.subr.bf16.mxu0 %v1673
    %2378 = vmatpush1.bf16.msra.mxu0 %v1672
    %2379 = vmatprep.subr.bf16.mxu0 %v1683
    %2380 = vmatpush1.bf16.msra.mxu0 %v1682
    %2381 = vmatprep.subr.bf16.mxu0 %v1693
    %2382 = vmatpush1.bf16.msra.mxu0 %v1692
    %2383 = vmatprep.subr.bf16.mxu0 %v1703
    %2384 = vmatpush1.bf16.msra.mxu0 %v1702
    %2385 = vmatprep.subr.bf16.mxu0 %v1713
    %2386 = vmatpush1.bf16.msra.mxu0 %v1712
    %2387 = vmatprep.subr.bf16.mxu0 %v1723
    %2388 = vmatpush1.bf16.msra.mxu0 %v1722
    %2389 = vmatprep.subr.bf16.mxu0 %v1733
    %2390 = vmatpush1.bf16.msra.mxu0 %v1732
    %2391 = vmatprep.subr.bf16.mxu0 %v1743
    %2392 = vmatpush1.bf16.msra.mxu0 %v1742
    %2393 = vmatprep.subr.bf16.mxu0 %v1753
    %2394 = vmatpush1.bf16.msra.mxu0 %v1752
    %2395 = vmatprep.mubr.bf16.mxu0 %v471
    %2396 = vmatmul.mubr.bf16.gmra.mrb[0].mxu0 %v470
    %v2397 = vpop.f32.mrb[0].mxu0
    %v2398 = vadd.f32 %v2357, %v2397
    %v2399 = vpop.f32.mrb[0].mxu0
    %v2400 = vadd.f32 %v2359, %v2399
    %v2401 = vpop.f32.mrb[0].mxu0
    %v2402 = vpop.f32.mrb[0].mxu0
    %2403 = vdwg.mxu0
    %2404 = vmatprep.subr.bf16.mxu0 %v1445
    %2405 = vmatpush1.bf16.msra.mxu0 %v1444
    %2406 = vmatprep.subr.bf16.mxu0 %v1455
    %2407 = vmatpush1.bf16.msra.mxu0 %v1454
    %2408 = vmatprep.subr.bf16.mxu0 %v1465
    %2409 = vmatpush1.bf16.msra.mxu0 %v1464
    %2410 = vmatprep.subr.bf16.mxu0 %v1475
    %2411 = vmatpush1.bf16.msra.mxu0 %v1474
    %2412 = vmatprep.subr.bf16.mxu0 %v1485
    %2413 = vmatpush1.bf16.msra.mxu0 %v1484
    %2414 = vmatprep.subr.bf16.mxu0 %v1495
    %2415 = vmatpush1.bf16.msra.mxu0 %v1494
    %2416 = vmatprep.subr.bf16.mxu0 %v1505
    %2417 = vmatpush1.bf16.msra.mxu0 %v1504
    %2418 = vmatprep.subr.bf16.mxu0 %v1515
    %2419 = vmatpush1.bf16.msra.mxu0 %v1514
    %2420 = vmatprep.subr.bf16.mxu0 %v1525
    %2421 = vmatpush1.bf16.msra.mxu0 %v1524
    %2422 = vmatprep.subr.bf16.mxu0 %v1535
    %2423 = vmatpush1.bf16.msra.mxu0 %v1534
    %2424 = vmatprep.subr.bf16.mxu0 %v1545
    %2425 = vmatpush1.bf16.msra.mxu0 %v1544
    %2426 = vmatprep.subr.bf16.mxu0 %v1555
    %2427 = vmatpush1.bf16.msra.mxu0 %v1554
    %2428 = vmatprep.subr.bf16.mxu0 %v1565
    %2429 = vmatpush1.bf16.msra.mxu0 %v1564
    %2430 = vmatprep.subr.bf16.mxu0 %v1575
    %2431 = vmatpush1.bf16.msra.mxu0 %v1574
    %2432 = vmatprep.subr.bf16.mxu0 %v1585
    %2433 = vmatpush1.bf16.msra.mxu0 %v1584
    %2434 = vmatprep.subr.bf16.mxu0 %v1595
    %2435 = vmatpush1.bf16.msra.mxu0 %v1594
    %2436 = vmatprep.mubr.bf16.mxu0 %v469
    %2437 = vmatmul.mubr.bf16.gmra.mrb[0].mxu0 %v468
    %v2438 = vpop.f32.mrb[0].mxu0
    %v2439 = vadd.f32 0.0, %v2438
    %v2440 = vpop.f32.mrb[0].mxu0
    %v2441 = vadd.f32 0.0, %v2440
    %v2442 = vpop.f32.mrb[0].mxu0
    %v2443 = vpop.f32.mrb[0].mxu0
    %2444 = vdwg.mxu0
    %2445 = vmatprep.subr.bf16.mxu0 %v1605
    %2446 = vmatpush1.bf16.msra.mxu0 %v1604
    %2447 = vmatprep.subr.bf16.mxu0 %v1615
    %2448 = vmatpush1.bf16.msra.mxu0 %v1614
    %2449 = vmatprep.subr.bf16.mxu0 %v1625
    %2450 = vmatpush1.bf16.msra.mxu0 %v1624
    %2451 = vmatprep.subr.bf16.mxu0 %v1635
    %2452 = vmatpush1.bf16.msra.mxu0 %v1634
    %2453 = vmatprep.subr.bf16.mxu0 %v1645
    %2454 = vmatpush1.bf16.msra.mxu0 %v1644
    %2455 = vmatprep.subr.bf16.mxu0 %v1655
    %2456 = vmatpush1.bf16.msra.mxu0 %v1654
    %2457 = vmatprep.subr.bf16.mxu0 %v1665
    %2458 = vmatpush1.bf16.msra.mxu0 %v1664
    %2459 = vmatprep.subr.bf16.mxu0 %v1675
    %2460 = vmatpush1.bf16.msra.mxu0 %v1674
    %2461 = vmatprep.subr.bf16.mxu0 %v1685
    %2462 = vmatpush1.bf16.msra.mxu0 %v1684
    %2463 = vmatprep.subr.bf16.mxu0 %v1695
    %2464 = vmatpush1.bf16.msra.mxu0 %v1694
    %2465 = vmatprep.subr.bf16.mxu0 %v1705
    %2466 = vmatpush1.bf16.msra.mxu0 %v1704
    %2467 = vmatprep.subr.bf16.mxu0 %v1715
    %2468 = vmatpush1.bf16.msra.mxu0 %v1714
    %2469 = vmatprep.subr.bf16.mxu0 %v1725
    %2470 = vmatpush1.bf16.msra.mxu0 %v1724
    %2471 = vmatprep.subr.bf16.mxu0 %v1735
    %2472 = vmatpush1.bf16.msra.mxu0 %v1734
    %2473 = vmatprep.subr.bf16.mxu0 %v1745
    %2474 = vmatpush1.bf16.msra.mxu0 %v1744
    %2475 = vmatprep.subr.bf16.mxu0 %v1755
    %2476 = vmatpush1.bf16.msra.mxu0 %v1754
    %2477 = vmatprep.mubr.bf16.mxu0 %v471
    %2478 = vmatmul.mubr.bf16.gmra.mrb[0].mxu0 %v470
    %v2479 = vpop.f32.mrb[0].mxu0
    %v2480 = vadd.f32 %v2439, %v2479
    %v2481 = vpop.f32.mrb[0].mxu0
    %v2482 = vadd.f32 %v2441, %v2481
    %v2483 = vpop.f32.mrb[0].mxu0
    %v2484 = vpop.f32.mrb[0].mxu0
    %2485 = vdwg.mxu0
    %v2486 = vld [vmem:[#allocation5] sm:$0x3f]
    %v2488 = vlaneseq
    %v2489 = vshrl.u32 %v2488, 7
    %v2490 = vsub.s32 0, %v2489
    %v2491 = vrot.slane %v2486, %v2490
    %v2492 = vlaneseq
    %v2493 = vshrl.u32 %v2492, 7
    %v2494 = vsub.s32 1, %v2493
    %v2495 = vrot.slane %v2486, %v2494
    %v2496 = vlaneseq
    %v2497 = vshrl.u32 %v2496, 7
    %v2498 = vsub.s32 2, %v2497
    %v2499 = vrot.slane %v2486, %v2498
    %v2500 = vlaneseq
    %v2501 = vshrl.u32 %v2500, 7
    %v2502 = vsub.s32 3, %v2501
    %v2503 = vrot.slane %v2486, %v2502
    %v2504 = vlaneseq
    %v2505 = vshrl.u32 %v2504, 7
    %v2506 = vsub.s32 4, %v2505
    %v2507 = vrot.slane %v2486, %v2506
    %v2508 = vlaneseq
    %v2509 = vshrl.u32 %v2508, 7
    %v2510 = vsub.s32 5, %v2509
    %v2511 = vrot.slane %v2486, %v2510
    %v2518 = vadd.f32 %v2152, %v2491
    %v2519 = vadd.f32 %v2154, %v2495
    %v2520 = vadd.f32 %v2234, %v2499
    %v2521 = vadd.f32 %v2236, %v2503
    %v2522 = vadd.f32 %v2316, %v2507
    %v2523 = vadd.f32 %v2318, %v2511
    %v2524 = vxor.u32 %v2518, 2147483648
    %v2525 = vxor.u32 %v2519, 2147483648
    %v2526 = vmul.f32 %v2524, 1.442695
    %v2527 = vpow.pop %v2526
    %v2528 = vmul.f32 %v2525, 1.442695
    %v2529 = vpow.pop %v2528
    %v2530 = vadd.f32 %v2527, 1.0
    %v2531 = vadd.f32 %v2529, 1.0
    %v2532 = vrcp.pop %v2530
    %v2533 = vmul.f32 1.0, %v2532
    %v2534 = vrcp.pop %v2531
    %v2535 = vmul.f32 1.0, %v2534
    %v2536 = vtanh.pop %v2520
    %v2537 = vtanh.pop %v2521
    %v2538 = vxor.u32 %v2522, 2147483648
    %v2539 = vxor.u32 %v2523, 2147483648
    %v2540 = vmul.f32 %v2538, 1.442695
    %v2541 = vpow.pop %v2540
    %v2542 = vmul.f32 %v2539, 1.442695
    %v2543 = vpow.pop %v2542
    %v2544 = vadd.f32 %v2541, 1.0
    %v2545 = vadd.f32 %v2543, 1.0
    %v2546 = vrcp.pop %v2544
    %v2547 = vmul.f32 1.0, %v2546
    %v2548 = vrcp.pop %v2545
    %v2549 = vmul.f32 1.0, %v2548
    %v2550 = vmul.f32 %v2533, %v2536
    %v2551 = vmul.f32 %v2535, %v2537
    %v2552 = vtanh.pop %v2550
    %v2553 = vtanh.pop %v2551
    %v2554 = vmul.f32 %v2547, %v2552
    %v2555 = vmul.f32 %v2549, %v2553
    %v2556 = vpack.c.bf16 %v2554, %v2554
    %v2557 = vpack.c.bf16 %v2555, %v2555
    %v2558 = vld [vmem:[#allocation7] sm:$0xff]
    %v2559 = vld [vmem:[#allocation7 + $0x8] sm:$0xff]
    %v2560 = vld [vmem:[#allocation7 + $0x10] sm:$0xff]
    %v2561 = vld [vmem:[#allocation7 + $0x18] sm:$0xff]
    %v2562 = vld [vmem:[#allocation7 + $0x20] sm:$0xff]
    %v2563 = vld [vmem:[#allocation7 + $0x28] sm:$0xff]
    %v2564 = vld [vmem:[#allocation7 + $0x30] sm:$0xff]
    %v2565 = vld [vmem:[#allocation7 + $0x38] sm:$0xff]
    %v2566 = vld [vmem:[#allocation7 + $0x40] sm:$0xff]
    %v2567 = vld [vmem:[#allocation7 + $0x48] sm:$0xff]
    %v2568 = vld [vmem:[#allocation7 + $0x50] sm:$0xff]
    %v2569 = vld [vmem:[#allocation7 + $0x58] sm:$0xff]
    %v2570 = vld [vmem:[#allocation7 + $0x60] sm:$0xff]
    %v2571 = vld [vmem:[#allocation7 + $0x68] sm:$0xff]
    %v2572 = vld [vmem:[#allocation7 + $0x70] sm:$0xff]
    %v2573 = vld [vmem:[#allocation7 + $0x78] sm:$0xff]
    %v2574 = vld [vmem:[#allocation7 + $0x80] sm:$0xff]
    %v2575 = vld [vmem:[#allocation7 + $0x88] sm:$0xff]
    %v2576 = vld [vmem:[#allocation7 + $0x90] sm:$0xff]
    %v2577 = vld [vmem:[#allocation7 + $0x98] sm:$0xff]
    %v2578 = vld [vmem:[#allocation7 + $0xa0] sm:$0xff]
    %v2579 = vld [vmem:[#allocation7 + $0xa8] sm:$0xff]
    %v2580 = vld [vmem:[#allocation7 + $0xb0] sm:$0xff]
    %v2581 = vld [vmem:[#allocation7 + $0xb8] sm:$0xff]
    %v2582 = vld [vmem:[#allocation7 + $0xc0] sm:$0xff]
    %v2583 = vld [vmem:[#allocation7 + $0xc8] sm:$0xff]
    %v2584 = vld [vmem:[#allocation7 + $0xd0] sm:$0xff]
    %v2585 = vld [vmem:[#allocation7 + $0xd8] sm:$0xff]
    %v2586 = vld [vmem:[#allocation7 + $0xe0] sm:$0xff]
    %v2587 = vld [vmem:[#allocation7 + $0xe8] sm:$0xff]
    %v2588 = vld [vmem:[#allocation7 + $0xf0] sm:$0xff]
    %v2589 = vld [vmem:[#allocation7 + $0xf8] sm:$0xff]
    %v2590 = vld [vmem:[#allocation7 + $0x100] sm:$0xff]
    %v2591 = vld [vmem:[#allocation7 + $0x108] sm:$0xff]
    %v2592 = vld [vmem:[#allocation7 + $0x110] sm:$0xff]
    %v2593 = vld [vmem:[#allocation7 + $0x118] sm:$0xff]
    %v2594 = vld [vmem:[#allocation7 + $0x120] sm:$0xff]
    %v2595 = vld [vmem:[#allocation7 + $0x128] sm:$0xff]
    %v2596 = vld [vmem:[#allocation7 + $0x130] sm:$0xff]
    %v2597 = vld [vmem:[#allocation7 + $0x138] sm:$0xff]
    %v2598 = vld [vmem:[#allocation7 + $0x140] sm:$0xff]
    %v2599 = vld [vmem:[#allocation7 + $0x148] sm:$0xff]
    %v2600 = vld [vmem:[#allocation7 + $0x150] sm:$0xff]
    %v2601 = vld [vmem:[#allocation7 + $0x158] sm:$0xff]
    %v2602 = vld [vmem:[#allocation7 + $0x160] sm:$0xff]
    %v2603 = vld [vmem:[#allocation7 + $0x168] sm:$0xff]
    %v2604 = vld [vmem:[#allocation7 + $0x170] sm:$0xff]
    %v2605 = vld [vmem:[#allocation7 + $0x178] sm:$0xff]
    %v2606 = vld [vmem:[#allocation7 + $0x180] sm:$0xff]
    %v2607 = vld [vmem:[#allocation7 + $0x188] sm:$0xff]
    %v2608 = vld [vmem:[#allocation7 + $0x190] sm:$0xff]
    %v2609 = vld [vmem:[#allocation7 + $0x198] sm:$0xff]
    %v2610 = vld [vmem:[#allocation7 + $0x1a0] sm:$0xff]
    %v2611 = vld [vmem:[#allocation7 + $0x1a8] sm:$0xff]
    %v2612 = vld [vmem:[#allocation7 + $0x1b0] sm:$0xff]
    %v2613 = vld [vmem:[#allocation7 + $0x1b8] sm:$0xff]
    %v2614 = vld [vmem:[#allocation7 + $0x1c0] sm:$0xff]
    %v2615 = vld [vmem:[#allocation7 + $0x1c8] sm:$0xff]
    %v2616 = vld [vmem:[#allocation7 + $0x1d0] sm:$0xff]
    %v2617 = vld [vmem:[#allocation7 + $0x1d8] sm:$0xff]
    %v2618 = vld [vmem:[#allocation7 + $0x1e0] sm:$0xff]
    %v2619 = vld [vmem:[#allocation7 + $0x1e8] sm:$0xff]
    %v2620 = vld [vmem:[#allocation7 + $0x1f0] sm:$0xff]
    %v2621 = vld [vmem:[#allocation7 + $0x1f8] sm:$0xff]
    %v2622 = vld [vmem:[#allocation7 + $0x200] sm:$0xff]
    %v2623 = vld [vmem:[#allocation7 + $0x208] sm:$0xff]
    %v2624 = vld [vmem:[#allocation7 + $0x210] sm:$0xff]
    %v2625 = vld [vmem:[#allocation7 + $0x218] sm:$0xff]
    %v2626 = vld [vmem:[#allocation7 + $0x220] sm:$0xff]
    %v2627 = vld [vmem:[#allocation7 + $0x228] sm:$0xff]
    %v2628 = vld [vmem:[#allocation7 + $0x230] sm:$0xff]
    %v2629 = vld [vmem:[#allocation7 + $0x238] sm:$0xff]
    %v2630 = vld [vmem:[#allocation7 + $0x240] sm:$0xff]
    %v2631 = vld [vmem:[#allocation7 + $0x248] sm:$0xff]
    %v2632 = vld [vmem:[#allocation7 + $0x250] sm:$0xff]
    %v2633 = vld [vmem:[#allocation7 + $0x258] sm:$0xff]
    %v2634 = vld [vmem:[#allocation7 + $0x260] sm:$0xff]
    %v2635 = vld [vmem:[#allocation7 + $0x268] sm:$0xff]
    %v2636 = vld [vmem:[#allocation7 + $0x270] sm:$0xff]
    %v2637 = vld [vmem:[#allocation7 + $0x278] sm:$0xff]
    %v2638 = vld [vmem:[#allocation7 + $0x280] sm:$0xff]
    %v2639 = vld [vmem:[#allocation7 + $0x288] sm:$0xff]
    %v2640 = vld [vmem:[#allocation7 + $0x290] sm:$0xff]
    %v2641 = vld [vmem:[#allocation7 + $0x298] sm:$0xff]
    %v2642 = vld [vmem:[#allocation7 + $0x2a0] sm:$0xff]
    %v2643 = vld [vmem:[#allocation7 + $0x2a8] sm:$0xff]
    %v2644 = vld [vmem:[#allocation7 + $0x2b0] sm:$0xff]
    %v2645 = vld [vmem:[#allocation7 + $0x2b8] sm:$0xff]
    %v2646 = vld [vmem:[#allocation7 + $0x2c0] sm:$0xff]
    %v2647 = vld [vmem:[#allocation7 + $0x2c8] sm:$0xff]
    %v2648 = vld [vmem:[#allocation7 + $0x2d0] sm:$0xff]
    %v2649 = vld [vmem:[#allocation7 + $0x2d8] sm:$0xff]
    %v2650 = vld [vmem:[#allocation7 + $0x2e0] sm:$0xff]
    %v2651 = vld [vmem:[#allocation7 + $0x2e8] sm:$0xff]
    %v2652 = vld [vmem:[#allocation7 + $0x2f0] sm:$0xff]
    %v2653 = vld [vmem:[#allocation7 + $0x2f8] sm:$0xff]
    %v2654 = vld [vmem:[#allocation7 + $0x300] sm:$0xff]
    %v2655 = vld [vmem:[#allocation7 + $0x308] sm:$0xff]
    %v2656 = vld [vmem:[#allocation7 + $0x310] sm:$0xff]
    %v2657 = vld [vmem:[#allocation7 + $0x318] sm:$0xff]
    %v2658 = vld [vmem:[#allocation7 + $0x320] sm:$0xff]
    %v2659 = vld [vmem:[#allocation7 + $0x328] sm:$0xff]
    %v2660 = vld [vmem:[#allocation7 + $0x330] sm:$0xff]
    %v2661 = vld [vmem:[#allocation7 + $0x338] sm:$0xff]
    %v2662 = vld [vmem:[#allocation7 + $0x340] sm:$0xff]
    %v2663 = vld [vmem:[#allocation7 + $0x348] sm:$0xff]
    %v2664 = vld [vmem:[#allocation7 + $0x350] sm:$0xff]
    %v2665 = vld [vmem:[#allocation7 + $0x358] sm:$0xff]
    %v2666 = vld [vmem:[#allocation7 + $0x360] sm:$0xff]
    %v2667 = vld [vmem:[#allocation7 + $0x368] sm:$0xff]
    %v2668 = vld [vmem:[#allocation7 + $0x370] sm:$0xff]
    %v2669 = vld [vmem:[#allocation7 + $0x378] sm:$0xff]
    %v2670 = vld [vmem:[#allocation7 + $0x380] sm:$0xff]
    %v2671 = vld [vmem:[#allocation7 + $0x388] sm:$0xff]
    %v2672 = vld [vmem:[#allocation7 + $0x390] sm:$0xff]
    %v2673 = vld [vmem:[#allocation7 + $0x398] sm:$0xff]
    %v2674 = vld [vmem:[#allocation7 + $0x3a0] sm:$0xff]
    %v2675 = vld [vmem:[#allocation7 + $0x3a8] sm:$0xff]
    %v2676 = vld [vmem:[#allocation7 + $0x3b0] sm:$0xff]
    %v2677 = vld [vmem:[#allocation7 + $0x3b8] sm:$0xff]
    %v2678 = vld [vmem:[#allocation7 + $0x3c0] sm:$0xff]
    %v2679 = vld [vmem:[#allocation7 + $0x3c8] sm:$0xff]
    %v2680 = vld [vmem:[#allocation7 + $0x3d0] sm:$0xff]
    %v2681 = vld [vmem:[#allocation7 + $0x3d8] sm:$0xff]
    %v2682 = vld [vmem:[#allocation7 + $0x3e0] sm:$0xff]
    %v2683 = vld [vmem:[#allocation7 + $0x3e8] sm:$0xff]
    %v2684 = vld [vmem:[#allocation7 + $0x3f0] sm:$0xff]
    %v2685 = vld [vmem:[#allocation7 + $0x3f8] sm:$0xff]
    %v2688 = vunpack.c.l.b16 %v138
    %v2689 = vunpack.c.h.b16 %v138
    %v2690 = vunpack.c.l.b16 %v139
    %v2691 = vunpack.c.h.b16 %v139
    %v2692 = vpack.c.b16 %v2688, %v2688
    %v2693 = vpack.c.b16 %v2689, %v2689
    %v2694 = vpack.c.b16 %v2690, %v2690
    %v2695 = vpack.c.b16 %v2691, %v2691
    %v2828 = vunpack.c.l.b16 %v2558
    %v2829 = vunpack.c.h.b16 %v2558
    %v2830 = vunpack.c.l.b16 %v2559
    %v2831 = vunpack.c.h.b16 %v2559
    %v2832 = vunpack.c.l.b16 %v2560
    %v2833 = vunpack.c.h.b16 %v2560
    %v2834 = vunpack.c.l.b16 %v2561
    %v2835 = vunpack.c.h.b16 %v2561
    %v2836 = vunpack.c.l.b16 %v2562
    %v2837 = vunpack.c.h.b16 %v2562
    %v2838 = vunpack.c.l.b16 %v2563
    %v2839 = vunpack.c.h.b16 %v2563
    %v2840 = vunpack.c.l.b16 %v2564
    %v2841 = vunpack.c.h.b16 %v2564
    %v2842 = vunpack.c.l.b16 %v2565
    %v2843 = vunpack.c.h.b16 %v2565
    %v2844 = vunpack.c.l.b16 %v2566
    %v2845 = vunpack.c.h.b16 %v2566
    %v2846 = vunpack.c.l.b16 %v2567
    %v2847 = vunpack.c.h.b16 %v2567
    %v2848 = vunpack.c.l.b16 %v2568
    %v2849 = vunpack.c.h.b16 %v2568
    %v2850 = vunpack.c.l.b16 %v2569
    %v2851 = vunpack.c.h.b16 %v2569
    %v2852 = vunpack.c.l.b16 %v2570
    %v2853 = vunpack.c.h.b16 %v2570
    %v2854 = vunpack.c.l.b16 %v2571
    %v2855 = vunpack.c.h.b16 %v2571
    %v2856 = vunpack.c.l.b16 %v2572
    %v2857 = vunpack.c.h.b16 %v2572
    %v2858 = vunpack.c.l.b16 %v2573
    %v2859 = vunpack.c.h.b16 %v2573
    %v2860 = vunpack.c.l.b16 %v2574
    %v2861 = vunpack.c.h.b16 %v2574
    %v2862 = vunpack.c.l.b16 %v2575
    %v2863 = vunpack.c.h.b16 %v2575
    %v2864 = vunpack.c.l.b16 %v2576
    %v2865 = vunpack.c.h.b16 %v2576
    %v2866 = vunpack.c.l.b16 %v2577
    %v2867 = vunpack.c.h.b16 %v2577
    %v2868 = vunpack.c.l.b16 %v2578
    %v2869 = vunpack.c.h.b16 %v2578
    %v2870 = vunpack.c.l.b16 %v2579
    %v2871 = vunpack.c.h.b16 %v2579
    %v2872 = vunpack.c.l.b16 %v2580
    %v2873 = vunpack.c.h.b16 %v2580
    %v2874 = vunpack.c.l.b16 %v2581
    %v2875 = vunpack.c.h.b16 %v2581
    %v2876 = vunpack.c.l.b16 %v2582
    %v2877 = vunpack.c.h.b16 %v2582
    %v2878 = vunpack.c.l.b16 %v2583
    %v2879 = vunpack.c.h.b16 %v2583
    %v2880 = vunpack.c.l.b16 %v2584
    %v2881 = vunpack.c.h.b16 %v2584
    %v2882 = vunpack.c.l.b16 %v2585
    %v2883 = vunpack.c.h.b16 %v2585
    %v2884 = vunpack.c.l.b16 %v2586
    %v2885 = vunpack.c.h.b16 %v2586
    %v2886 = vunpack.c.l.b16 %v2587
    %v2887 = vunpack.c.h.b16 %v2587
    %v2888 = vunpack.c.l.b16 %v2588
    %v2889 = vunpack.c.h.b16 %v2588
    %v2890 = vunpack.c.l.b16 %v2589
    %v2891 = vunpack.c.h.b16 %v2589
    %v2892 = vunpack.c.l.b16 %v2590
    %v2893 = vunpack.c.h.b16 %v2590
    %v2894 = vunpack.c.l.b16 %v2591
    %v2895 = vunpack.c.h.b16 %v2591
    %v2896 = vunpack.c.l.b16 %v2592
    %v2897 = vunpack.c.h.b16 %v2592
    %v2898 = vunpack.c.l.b16 %v2593
    %v2899 = vunpack.c.h.b16 %v2593
    %v2900 = vunpack.c.l.b16 %v2594
    %v2901 = vunpack.c.h.b16 %v2594
    %v2902 = vunpack.c.l.b16 %v2595
    %v2903 = vunpack.c.h.b16 %v2595
    %v2904 = vunpack.c.l.b16 %v2596
    %v2905 = vunpack.c.h.b16 %v2596
    %v2906 = vunpack.c.l.b16 %v2597
    %v2907 = vunpack.c.h.b16 %v2597
    %v2908 = vunpack.c.l.b16 %v2598
    %v2909 = vunpack.c.h.b16 %v2598
    %v2910 = vunpack.c.l.b16 %v2599
    %v2911 = vunpack.c.h.b16 %v2599
    %v2912 = vunpack.c.l.b16 %v2600
    %v2913 = vunpack.c.h.b16 %v2600
    %v2914 = vunpack.c.l.b16 %v2601
    %v2915 = vunpack.c.h.b16 %v2601
    %v2916 = vunpack.c.l.b16 %v2602
    %v2917 = vunpack.c.h.b16 %v2602
    %v2918 = vunpack.c.l.b16 %v2603
    %v2919 = vunpack.c.h.b16 %v2603
    %v2920 = vunpack.c.l.b16 %v2604
    %v2921 = vunpack.c.h.b16 %v2604
    %v2922 = vunpack.c.l.b16 %v2605
    %v2923 = vunpack.c.h.b16 %v2605
    %v2924 = vunpack.c.l.b16 %v2606
    %v2925 = vunpack.c.h.b16 %v2606
    %v2926 = vunpack.c.l.b16 %v2607
    %v2927 = vunpack.c.h.b16 %v2607
    %v2928 = vunpack.c.l.b16 %v2608
    %v2929 = vunpack.c.h.b16 %v2608
    %v2930 = vunpack.c.l.b16 %v2609
    %v2931 = vunpack.c.h.b16 %v2609
    %v2932 = vunpack.c.l.b16 %v2610
    %v2933 = vunpack.c.h.b16 %v2610
    %v2934 = vunpack.c.l.b16 %v2611
    %v2935 = vunpack.c.h.b16 %v2611
    %v2936 = vunpack.c.l.b16 %v2612
    %v2937 = vunpack.c.h.b16 %v2612
    %v2938 = vunpack.c.l.b16 %v2613
    %v2939 = vunpack.c.h.b16 %v2613
    %v2940 = vunpack.c.l.b16 %v2614
    %v2941 = vunpack.c.h.b16 %v2614
    %v2942 = vunpack.c.l.b16 %v2615
    %v2943 = vunpack.c.h.b16 %v2615
    %v2944 = vunpack.c.l.b16 %v2616
    %v2945 = vunpack.c.h.b16 %v2616
    %v2946 = vunpack.c.l.b16 %v2617
    %v2947 = vunpack.c.h.b16 %v2617
    %v2948 = vunpack.c.l.b16 %v2618
    %v2949 = vunpack.c.h.b16 %v2618
    %v2950 = vunpack.c.l.b16 %v2619
    %v2951 = vunpack.c.h.b16 %v2619
    %v2952 = vunpack.c.l.b16 %v2620
    %v2953 = vunpack.c.h.b16 %v2620
    %v2954 = vunpack.c.l.b16 %v2621
    %v2955 = vunpack.c.h.b16 %v2621
    %v2956 = vunpack.c.l.b16 %v2622
    %v2957 = vunpack.c.h.b16 %v2622
    %v2958 = vunpack.c.l.b16 %v2623
    %v2959 = vunpack.c.h.b16 %v2623
    %v2960 = vunpack.c.l.b16 %v2624
    %v2961 = vunpack.c.h.b16 %v2624
    %v2962 = vunpack.c.l.b16 %v2625
    %v2963 = vunpack.c.h.b16 %v2625
    %v2964 = vunpack.c.l.b16 %v2626
    %v2965 = vunpack.c.h.b16 %v2626
    %v2966 = vunpack.c.l.b16 %v2627
    %v2967 = vunpack.c.h.b16 %v2627
    %v2968 = vunpack.c.l.b16 %v2628
    %v2969 = vunpack.c.h.b16 %v2628
    %v2970 = vunpack.c.l.b16 %v2629
    %v2971 = vunpack.c.h.b16 %v2629
    %v2972 = vunpack.c.l.b16 %v2630
    %v2973 = vunpack.c.h.b16 %v2630
    %v2974 = vunpack.c.l.b16 %v2631
    %v2975 = vunpack.c.h.b16 %v2631
    %v2976 = vunpack.c.l.b16 %v2632
    %v2977 = vunpack.c.h.b16 %v2632
    %v2978 = vunpack.c.l.b16 %v2633
    %v2979 = vunpack.c.h.b16 %v2633
    %v2980 = vunpack.c.l.b16 %v2634
    %v2981 = vunpack.c.h.b16 %v2634
    %v2982 = vunpack.c.l.b16 %v2635
    %v2983 = vunpack.c.h.b16 %v2635
    %v2984 = vunpack.c.l.b16 %v2636
    %v2985 = vunpack.c.h.b16 %v2636
    %v2986 = vunpack.c.l.b16 %v2637
    %v2987 = vunpack.c.h.b16 %v2637
    %v2988 = vunpack.c.l.b16 %v2638
    %v2989 = vunpack.c.h.b16 %v2638
    %v2990 = vunpack.c.l.b16 %v2639
    %v2991 = vunpack.c.h.b16 %v2639
    %v2992 = vunpack.c.l.b16 %v2640
    %v2993 = vunpack.c.h.b16 %v2640
    %v2994 = vunpack.c.l.b16 %v2641
    %v2995 = vunpack.c.h.b16 %v2641
    %v2996 = vunpack.c.l.b16 %v2642
    %v2997 = vunpack.c.h.b16 %v2642
    %v2998 = vunpack.c.l.b16 %v2643
    %v2999 = vunpack.c.h.b16 %v2643
    %v3000 = vunpack.c.l.b16 %v2644
    %v3001 = vunpack.c.h.b16 %v2644
    %v3002 = vunpack.c.l.b16 %v2645
    %v3003 = vunpack.c.h.b16 %v2645
    %v3004 = vunpack.c.l.b16 %v2646
    %v3005 = vunpack.c.h.b16 %v2646
    %v3006 = vunpack.c.l.b16 %v2647
    %v3007 = vunpack.c.h.b16 %v2647
    %v3008 = vunpack.c.l.b16 %v2648
    %v3009 = vunpack.c.h.b16 %v2648
    %v3010 = vunpack.c.l.b16 %v2649
    %v3011 = vunpack.c.h.b16 %v2649
    %v3012 = vunpack.c.l.b16 %v2650
    %v3013 = vunpack.c.h.b16 %v2650
    %v3014 = vunpack.c.l.b16 %v2651
    %v3015 = vunpack.c.h.b16 %v2651
    %v3016 = vunpack.c.l.b16 %v2652
    %v3017 = vunpack.c.h.b16 %v2652
    %v3018 = vunpack.c.l.b16 %v2653
    %v3019 = vunpack.c.h.b16 %v2653
    %v3020 = vunpack.c.l.b16 %v2654
    %v3021 = vunpack.c.h.b16 %v2654
    %v3022 = vunpack.c.l.b16 %v2655
    %v3023 = vunpack.c.h.b16 %v2655
    %v3024 = vunpack.c.l.b16 %v2656
    %v3025 = vunpack.c.h.b16 %v2656
    %v3026 = vunpack.c.l.b16 %v2657
    %v3027 = vunpack.c.h.b16 %v2657
    %v3028 = vunpack.c.l.b16 %v2658
    %v3029 = vunpack.c.h.b16 %v2658
    %v3030 = vunpack.c.l.b16 %v2659
    %v3031 = vunpack.c.h.b16 %v2659
    %v3032 = vunpack.c.l.b16 %v2660
    %v3033 = vunpack.c.h.b16 %v2660
    %v3034 = vunpack.c.l.b16 %v2661
    %v3035 = vunpack.c.h.b16 %v2661
    %v3036 = vunpack.c.l.b16 %v2662
    %v3037 = vunpack.c.h.b16 %v2662
    %v3038 = vunpack.c.l.b16 %v2663
    %v3039 = vunpack.c.h.b16 %v2663
    %v3040 = vunpack.c.l.b16 %v2664
    %v3041 = vunpack.c.h.b16 %v2664
    %v3042 = vunpack.c.l.b16 %v2665
    %v3043 = vunpack.c.h.b16 %v2665
    %v3044 = vunpack.c.l.b16 %v2666
    %v3045 = vunpack.c.h.b16 %v2666
    %v3046 = vunpack.c.l.b16 %v2667
    %v3047 = vunpack.c.h.b16 %v2667
    %v3048 = vunpack.c.l.b16 %v2668
    %v3049 = vunpack.c.h.b16 %v2668
    %v3050 = vunpack.c.l.b16 %v2669
    %v3051 = vunpack.c.h.b16 %v2669
    %v3052 = vunpack.c.l.b16 %v2670
    %v3053 = vunpack.c.h.b16 %v2670
    %v3054 = vunpack.c.l.b16 %v2671
    %v3055 = vunpack.c.h.b16 %v2671
    %v3056 = vunpack.c.l.b16 %v2672
    %v3057 = vunpack.c.h.b16 %v2672
    %v3058 = vunpack.c.l.b16 %v2673
    %v3059 = vunpack.c.h.b16 %v2673
    %v3060 = vunpack.c.l.b16 %v2674
    %v3061 = vunpack.c.h.b16 %v2674
    %v3062 = vunpack.c.l.b16 %v2675
    %v3063 = vunpack.c.h.b16 %v2675
    %v3064 = vunpack.c.l.b16 %v2676
    %v3065 = vunpack.c.h.b16 %v2676
    %v3066 = vunpack.c.l.b16 %v2677
    %v3067 = vunpack.c.h.b16 %v2677
    %v3068 = vunpack.c.l.b16 %v2678
    %v3069 = vunpack.c.h.b16 %v2678
    %v3070 = vunpack.c.l.b16 %v2679
    %v3071 = vunpack.c.h.b16 %v2679
    %v3072 = vunpack.c.l.b16 %v2680
    %v3073 = vunpack.c.h.b16 %v2680
    %v3074 = vunpack.c.l.b16 %v2681
    %v3075 = vunpack.c.h.b16 %v2681
    %v3076 = vunpack.c.l.b16 %v2682
    %v3077 = vunpack.c.h.b16 %v2682
    %v3078 = vunpack.c.l.b16 %v2683
    %v3079 = vunpack.c.h.b16 %v2683
    %v3080 = vunpack.c.l.b16 %v2684
    %v3081 = vunpack.c.h.b16 %v2684
    %v3082 = vunpack.c.l.b16 %v2685
    %v3083 = vunpack.c.h.b16 %v2685
    %v3084 = vpack.c.b16 %v2832, %v2828
    %v3085 = vpack.c.b16 %v2833, %v2829
    %v3086 = vpack.c.b16 %v2834, %v2830
    %v3087 = vpack.c.b16 %v2835, %v2831
    %v3088 = vpack.c.b16 %v2840, %v2836
    %v3089 = vpack.c.b16 %v2841, %v2837
    %v3090 = vpack.c.b16 %v2842, %v2838
    %v3091 = vpack.c.b16 %v2843, %v2839
    %v3092 = vpack.c.b16 %v2848, %v2844
    %v3093 = vpack.c.b16 %v2849, %v2845
    %v3094 = vpack.c.b16 %v2850, %v2846
    %v3095 = vpack.c.b16 %v2851, %v2847
    %v3096 = vpack.c.b16 %v2856, %v2852
    %v3097 = vpack.c.b16 %v2857, %v2853
    %v3098 = vpack.c.b16 %v2858, %v2854
    %v3099 = vpack.c.b16 %v2859, %v2855
    %v3100 = vpack.c.b16 %v2864, %v2860
    %v3101 = vpack.c.b16 %v2865, %v2861
    %v3102 = vpack.c.b16 %v2866, %v2862
    %v3103 = vpack.c.b16 %v2867, %v2863
    %v3104 = vpack.c.b16 %v2872, %v2868
    %v3105 = vpack.c.b16 %v2873, %v2869
    %v3106 = vpack.c.b16 %v2874, %v2870
    %v3107 = vpack.c.b16 %v2875, %v2871
    %v3108 = vpack.c.b16 %v2880, %v2876
    %v3109 = vpack.c.b16 %v2881, %v2877
    %v3110 = vpack.c.b16 %v2882, %v2878
    %v3111 = vpack.c.b16 %v2883, %v2879
    %v3112 = vpack.c.b16 %v2888, %v2884
    %v3113 = vpack.c.b16 %v2889, %v2885
    %v3114 = vpack.c.b16 %v2890, %v2886
    %v3115 = vpack.c.b16 %v2891, %v2887
    %v3116 = vpack.c.b16 %v2896, %v2892
    %v3117 = vpack.c.b16 %v2897, %v2893
    %v3118 = vpack.c.b16 %v2898, %v2894
    %v3119 = vpack.c.b16 %v2899, %v2895
    %v3120 = vpack.c.b16 %v2904, %v2900
    %v3121 = vpack.c.b16 %v2905, %v2901
    %v3122 = vpack.c.b16 %v2906, %v2902
    %v3123 = vpack.c.b16 %v2907, %v2903
    %v3124 = vpack.c.b16 %v2912, %v2908
    %v3125 = vpack.c.b16 %v2913, %v2909
    %v3126 = vpack.c.b16 %v2914, %v2910
    %v3127 = vpack.c.b16 %v2915, %v2911
    %v3128 = vpack.c.b16 %v2920, %v2916
    %v3129 = vpack.c.b16 %v2921, %v2917
    %v3130 = vpack.c.b16 %v2922, %v2918
    %v3131 = vpack.c.b16 %v2923, %v2919
    %v3132 = vpack.c.b16 %v2928, %v2924
    %v3133 = vpack.c.b16 %v2929, %v2925
    %v3134 = vpack.c.b16 %v2930, %v2926
    %v3135 = vpack.c.b16 %v2931, %v2927
    %v3136 = vpack.c.b16 %v2936, %v2932
    %v3137 = vpack.c.b16 %v2937, %v2933
    %v3138 = vpack.c.b16 %v2938, %v2934
    %v3139 = vpack.c.b16 %v2939, %v2935
    %v3140 = vpack.c.b16 %v2944, %v2940
    %v3141 = vpack.c.b16 %v2945, %v2941
    %v3142 = vpack.c.b16 %v2946, %v2942
    %v3143 = vpack.c.b16 %v2947, %v2943
    %v3144 = vpack.c.b16 %v2952, %v2948
    %v3145 = vpack.c.b16 %v2953, %v2949
    %v3146 = vpack.c.b16 %v2954, %v2950
    %v3147 = vpack.c.b16 %v2955, %v2951
    %v3148 = vpack.c.b16 %v2960, %v2956
    %v3149 = vpack.c.b16 %v2961, %v2957
    %v3150 = vpack.c.b16 %v2962, %v2958
    %v3151 = vpack.c.b16 %v2963, %v2959
    %v3152 = vpack.c.b16 %v2968, %v2964
    %v3153 = vpack.c.b16 %v2969, %v2965
    %v3154 = vpack.c.b16 %v2970, %v2966
    %v3155 = vpack.c.b16 %v2971, %v2967
    %v3156 = vpack.c.b16 %v2976, %v2972
    %v3157 = vpack.c.b16 %v2977, %v2973
    %v3158 = vpack.c.b16 %v2978, %v2974
    %v3159 = vpack.c.b16 %v2979, %v2975
    %v3160 = vpack.c.b16 %v2984, %v2980
    %v3161 = vpack.c.b16 %v2985, %v2981
    %v3162 = vpack.c.b16 %v2986, %v2982
    %v3163 = vpack.c.b16 %v2987, %v2983
    %v3164 = vpack.c.b16 %v2992, %v2988
    %v3165 = vpack.c.b16 %v2993, %v2989
    %v3166 = vpack.c.b16 %v2994, %v2990
    %v3167 = vpack.c.b16 %v2995, %v2991
    %v3168 = vpack.c.b16 %v3000, %v2996
    %v3169 = vpack.c.b16 %v3001, %v2997
    %v3170 = vpack.c.b16 %v3002, %v2998
    %v3171 = vpack.c.b16 %v3003, %v2999
    %v3172 = vpack.c.b16 %v3008, %v3004
    %v3173 = vpack.c.b16 %v3009, %v3005
    %v3174 = vpack.c.b16 %v3010, %v3006
    %v3175 = vpack.c.b16 %v3011, %v3007
    %v3176 = vpack.c.b16 %v3016, %v3012
    %v3177 = vpack.c.b16 %v3017, %v3013
    %v3178 = vpack.c.b16 %v3018, %v3014
    %v3179 = vpack.c.b16 %v3019, %v3015
    %v3180 = vpack.c.b16 %v3024, %v3020
    %v3181 = vpack.c.b16 %v3025, %v3021
    %v3182 = vpack.c.b16 %v3026, %v3022
    %v3183 = vpack.c.b16 %v3027, %v3023
    %v3184 = vpack.c.b16 %v3032, %v3028
    %v3185 = vpack.c.b16 %v3033, %v3029
    %v3186 = vpack.c.b16 %v3034, %v3030
    %v3187 = vpack.c.b16 %v3035, %v3031
    %v3188 = vpack.c.b16 %v3040, %v3036
    %v3189 = vpack.c.b16 %v3041, %v3037
    %v3190 = vpack.c.b16 %v3042, %v3038
    %v3191 = vpack.c.b16 %v3043, %v3039
    %v3192 = vpack.c.b16 %v3048, %v3044
    %v3193 = vpack.c.b16 %v3049, %v3045
    %v3194 = vpack.c.b16 %v3050, %v3046
    %v3195 = vpack.c.b16 %v3051, %v3047
    %v3196 = vpack.c.b16 %v3056, %v3052
    %v3197 = vpack.c.b16 %v3057, %v3053
    %v3198 = vpack.c.b16 %v3058, %v3054
    %v3199 = vpack.c.b16 %v3059, %v3055
    %v3200 = vpack.c.b16 %v3064, %v3060
    %v3201 = vpack.c.b16 %v3065, %v3061
    %v3202 = vpack.c.b16 %v3066, %v3062
    %v3203 = vpack.c.b16 %v3067, %v3063
    %v3204 = vpack.c.b16 %v3072, %v3068
    %v3205 = vpack.c.b16 %v3073, %v3069
    %v3206 = vpack.c.b16 %v3074, %v3070
    %v3207 = vpack.c.b16 %v3075, %v3071
    %v3208 = vpack.c.b16 %v3080, %v3076
    %v3209 = vpack.c.b16 %v3081, %v3077
    %v3210 = vpack.c.b16 %v3082, %v3078
    %v3211 = vpack.c.b16 %v3083, %v3079
    %3340 = vmatprep.subr.bf16.mxu0 %v3085
    %3341 = vmatpush1.bf16.msra.mxu0 %v3084
    %3342 = vmatprep.subr.bf16.mxu0 %v3089
    %3343 = vmatpush1.bf16.msra.mxu0 %v3088
    %3344 = vmatprep.subr.bf16.mxu0 %v3093
    %3345 = vmatpush1.bf16.msra.mxu0 %v3092
    %3346 = vmatprep.subr.bf16.mxu0 %v3097
    %3347 = vmatpush1.bf16.msra.mxu0 %v3096
    %3348 = vmatprep.subr.bf16.mxu0 %v3101
    %3349 = vmatpush1.bf16.msra.mxu0 %v3100
    %3350 = vmatprep.subr.bf16.mxu0 %v3105
    %3351 = vmatpush1.bf16.msra.mxu0 %v3104
    %3352 = vmatprep.subr.bf16.mxu0 %v3109
    %3353 = vmatpush1.bf16.msra.mxu0 %v3108
    %3354 = vmatprep.subr.bf16.mxu0 %v3113
    %3355 = vmatpush1.bf16.msra.mxu0 %v3112
    %3356 = vmatprep.subr.bf16.mxu0 %v3117
    %3357 = vmatpush1.bf16.msra.mxu0 %v3116
    %3358 = vmatprep.subr.bf16.mxu0 %v3121
    %3359 = vmatpush1.bf16.msra.mxu0 %v3120
    %3360 = vmatprep.subr.bf16.mxu0 %v3125
    %3361 = vmatpush1.bf16.msra.mxu0 %v3124
    %3362 = vmatprep.subr.bf16.mxu0 %v3129
    %3363 = vmatpush1.bf16.msra.mxu0 %v3128
    %3364 = vmatprep.subr.bf16.mxu0 %v3133
    %3365 = vmatpush1.bf16.msra.mxu0 %v3132
    %3366 = vmatprep.subr.bf16.mxu0 %v3137
    %3367 = vmatpush1.bf16.msra.mxu0 %v3136
    %3368 = vmatprep.subr.bf16.mxu0 %v3141
    %3369 = vmatpush1.bf16.msra.mxu0 %v3140
    %3370 = vmatprep.subr.bf16.mxu0 %v3145
    %3371 = vmatpush1.bf16.msra.mxu0 %v3144
    %3372 = vmatprep.mubr.bf16.mxu0 %v2693
    %3373 = vmatmul.mubr.bf16.gmra.mrb[0].mxu0 %v2692
    %v3374 = vpop.f32.mrb[0].mxu0
    %v3375 = vadd.f32 %v2398, %v3374
    %v3376 = vpop.f32.mrb[0].mxu0
    %v3377 = vadd.f32 %v2400, %v3376
    %v3378 = vpop.f32.mrb[0].mxu0
    %v3379 = vpop.f32.mrb[0].mxu0
    %3380 = vdwg.mxu0
    %3381 = vmatprep.subr.bf16.mxu0 %v3149
    %3382 = vmatpush1.bf16.msra.mxu0 %v3148
    %3383 = vmatprep.subr.bf16.mxu0 %v3153
    %3384 = vmatpush1.bf16.msra.mxu0 %v3152
    %3385 = vmatprep.subr.bf16.mxu0 %v3157
    %3386 = vmatpush1.bf16.msra.mxu0 %v3156
    %3387 = vmatprep.subr.bf16.mxu0 %v3161
    %3388 = vmatpush1.bf16.msra.mxu0 %v3160
    %3389 = vmatprep.subr.bf16.mxu0 %v3165
    %3390 = vmatpush1.bf16.msra.mxu0 %v3164
    %3391 = vmatprep.subr.bf16.mxu0 %v3169
    %3392 = vmatpush1.bf16.msra.mxu0 %v3168
    %3393 = vmatprep.subr.bf16.mxu0 %v3173
    %3394 = vmatpush1.bf16.msra.mxu0 %v3172
    %3395 = vmatprep.subr.bf16.mxu0 %v3177
    %3396 = vmatpush1.bf16.msra.mxu0 %v3176
    %3397 = vmatprep.subr.bf16.mxu0 %v3181
    %3398 = vmatpush1.bf16.msra.mxu0 %v3180
    %3399 = vmatprep.subr.bf16.mxu0 %v3185
    %3400 = vmatpush1.bf16.msra.mxu0 %v3184
    %3401 = vmatprep.subr.bf16.mxu0 %v3189
    %3402 = vmatpush1.bf16.msra.mxu0 %v3188
    %3403 = vmatprep.subr.bf16.mxu0 %v3193
    %3404 = vmatpush1.bf16.msra.mxu0 %v3192
    %3405 = vmatprep.subr.bf16.mxu0 %v3197
    %3406 = vmatpush1.bf16.msra.mxu0 %v3196
    %3407 = vmatprep.subr.bf16.mxu0 %v3201
    %3408 = vmatpush1.bf16.msra.mxu0 %v3200
    %3409 = vmatprep.subr.bf16.mxu0 %v3205
    %3410 = vmatpush1.bf16.msra.mxu0 %v3204
    %3411 = vmatprep.subr.bf16.mxu0 %v3209
    %3412 = vmatpush1.bf16.msra.mxu0 %v3208
    %3413 = vmatprep.mubr.bf16.mxu0 %v2695
    %3414 = vmatmul.mubr.bf16.gmra.mrb[0].mxu0 %v2694
    %v3415 = vpop.f32.mrb[0].mxu0
    %v3416 = vadd.f32 %v3375, %v3415
    %v3417 = vpop.f32.mrb[0].mxu0
    %v3418 = vadd.f32 %v3377, %v3417
    %v3419 = vpop.f32.mrb[0].mxu0
    %v3420 = vpop.f32.mrb[0].mxu0
    %3421 = vdwg.mxu0
    %3422 = vmatprep.subr.bf16.mxu0 %v3087
    %3423 = vmatpush1.bf16.msra.mxu0 %v3086
    %3424 = vmatprep.subr.bf16.mxu0 %v3091
    %3425 = vmatpush1.bf16.msra.mxu0 %v3090
    %3426 = vmatprep.subr.bf16.mxu0 %v3095
    %3427 = vmatpush1.bf16.msra.mxu0 %v3094
    %3428 = vmatprep.subr.bf16.mxu0 %v3099
    %3429 = vmatpush1.bf16.msra.mxu0 %v3098
    %3430 = vmatprep.subr.bf16.mxu0 %v3103
    %3431 = vmatpush1.bf16.msra.mxu0 %v3102
    %3432 = vmatprep.subr.bf16.mxu0 %v3107
    %3433 = vmatpush1.bf16.msra.mxu0 %v3106
    %3434 = vmatprep.subr.bf16.mxu0 %v3111
    %3435 = vmatpush1.bf16.msra.mxu0 %v3110
    %3436 = vmatprep.subr.bf16.mxu0 %v3115
    %3437 = vmatpush1.bf16.msra.mxu0 %v3114
    %3438 = vmatprep.subr.bf16.mxu0 %v3119
    %3439 = vmatpush1.bf16.msra.mxu0 %v3118
    %3440 = vmatprep.subr.bf16.mxu0 %v3123
    %3441 = vmatpush1.bf16.msra.mxu0 %v3122
    %3442 = vmatprep.subr.bf16.mxu0 %v3127
    %3443 = vmatpush1.bf16.msra.mxu0 %v3126
    %3444 = vmatprep.subr.bf16.mxu0 %v3131
    %3445 = vmatpush1.bf16.msra.mxu0 %v3130
    %3446 = vmatprep.subr.bf16.mxu0 %v3135
    %3447 = vmatpush1.bf16.msra.mxu0 %v3134
    %3448 = vmatprep.subr.bf16.mxu0 %v3139
    %3449 = vmatpush1.bf16.msra.mxu0 %v3138
    %3450 = vmatprep.subr.bf16.mxu0 %v3143
    %3451 = vmatpush1.bf16.msra.mxu0 %v3142
    %3452 = vmatprep.subr.bf16.mxu0 %v3147
    %3453 = vmatpush1.bf16.msra.mxu0 %v3146
    %3454 = vmatprep.mubr.bf16.mxu0 %v2693
    %3455 = vmatmul.mubr.bf16.gmra.mrb[0].mxu0 %v2692
    %v3456 = vpop.f32.mrb[0].mxu0
    %v3457 = vadd.f32 %v2480, %v3456
    %v3458 = vpop.f32.mrb[0].mxu0
    %v3459 = vadd.f32 %v2482, %v3458
    %v3460 = vpop.f32.mrb[0].mxu0
    %v3461 = vpop.f32.mrb[0].mxu0
    %3462 = vdwg.mxu0
    %3463 = vmatprep.subr.bf16.mxu0 %v3151
    %3464 = vmatpush1.bf16.msra.mxu0 %v3150
    %3465 = vmatprep.subr.bf16.mxu0 %v3155
    %3466 = vmatpush1.bf16.msra.mxu0 %v3154
    %3467 = vmatprep.subr.bf16.mxu0 %v3159
    %3468 = vmatpush1.bf16.msra.mxu0 %v3158
    %3469 = vmatprep.subr.bf16.mxu0 %v3163
    %3470 = vmatpush1.bf16.msra.mxu0 %v3162
    %3471 = vmatprep.subr.bf16.mxu0 %v3167
    %3472 = vmatpush1.bf16.msra.mxu0 %v3166
    %3473 = vmatprep.subr.bf16.mxu0 %v3171
    %3474 = vmatpush1.bf16.msra.mxu0 %v3170
    %3475 = vmatprep.subr.bf16.mxu0 %v3175
    %3476 = vmatpush1.bf16.msra.mxu0 %v3174
    %3477 = vmatprep.subr.bf16.mxu0 %v3179
    %3478 = vmatpush1.bf16.msra.mxu0 %v3178
    %3479 = vmatprep.subr.bf16.mxu0 %v3183
    %3480 = vmatpush1.bf16.msra.mxu0 %v3182
    %3481 = vmatprep.subr.bf16.mxu0 %v3187
    %3482 = vmatpush1.bf16.msra.mxu0 %v3186
    %3483 = vmatprep.subr.bf16.mxu0 %v3191
    %3484 = vmatpush1.bf16.msra.mxu0 %v3190
    %3485 = vmatprep.subr.bf16.mxu0 %v3195
    %3486 = vmatpush1.bf16.msra.mxu0 %v3194
    %3487 = vmatprep.subr.bf16.mxu0 %v3199
    %3488 = vmatpush1.bf16.msra.mxu0 %v3198
    %3489 = vmatprep.subr.bf16.mxu0 %v3203
    %3490 = vmatpush1.bf16.msra.mxu0 %v3202
    %3491 = vmatprep.subr.bf16.mxu0 %v3207
    %3492 = vmatpush1.bf16.msra.mxu0 %v3206
    %3493 = vmatprep.subr.bf16.mxu0 %v3211
    %3494 = vmatpush1.bf16.msra.mxu0 %v3210
    %3495 = vmatprep.mubr.bf16.mxu0 %v2695
    %3496 = vmatmul.mubr.bf16.gmra.mrb[0].mxu0 %v2694
    %v3497 = vpop.f32.mrb[0].mxu0
    %v3498 = vadd.f32 %v3457, %v3497
    %v3499 = vpop.f32.mrb[0].mxu0
    %v3500 = vadd.f32 %v3459, %v3499
    %v3501 = vpop.f32.mrb[0].mxu0
    %v3502 = vpop.f32.mrb[0].mxu0
    %3503 = vdwg.mxu0
    %v3504 = vld [vmem:[#allocation8] sm:$0xff]
    %v3505 = vld [vmem:[#allocation8 + $0x8] sm:$0xff]
    %v3506 = vld [vmem:[#allocation8 + $0x10] sm:$0xff]
    %v3507 = vld [vmem:[#allocation8 + $0x18] sm:$0xff]
    %v3508 = vld [vmem:[#allocation8 + $0x20] sm:$0xff]
    %v3509 = vld [vmem:[#allocation8 + $0x28] sm:$0xff]
    %v3510 = vld [vmem:[#allocation8 + $0x30] sm:$0xff]
    %v3511 = vld [vmem:[#allocation8 + $0x38] sm:$0xff]
    %v3512 = vld [vmem:[#allocation8 + $0x40] sm:$0xff]
    %v3513 = vld [vmem:[#allocation8 + $0x48] sm:$0xff]
    %v3514 = vld [vmem:[#allocation8 + $0x50] sm:$0xff]
    %v3515 = vld [vmem:[#allocation8 + $0x58] sm:$0xff]
    %v3516 = vld [vmem:[#allocation8 + $0x60] sm:$0xff]
    %v3517 = vld [vmem:[#allocation8 + $0x68] sm:$0xff]
    %v3518 = vld [vmem:[#allocation8 + $0x70] sm:$0xff]
    %v3519 = vld [vmem:[#allocation8 + $0x78] sm:$0xff]
    %v3520 = vld [vmem:[#allocation8 + $0x80] sm:$0xff]
    %v3521 = vld [vmem:[#allocation8 + $0x88] sm:$0xff]
    %v3522 = vld [vmem:[#allocation8 + $0x90] sm:$0xff]
    %v3523 = vld [vmem:[#allocation8 + $0x98] sm:$0xff]
    %v3524 = vld [vmem:[#allocation8 + $0xa0] sm:$0xff]
    %v3525 = vld [vmem:[#allocation8 + $0xa8] sm:$0xff]
    %v3526 = vld [vmem:[#allocation8 + $0xb0] sm:$0xff]
    %v3527 = vld [vmem:[#allocation8 + $0xb8] sm:$0xff]
    %v3528 = vld [vmem:[#allocation8 + $0xc0] sm:$0xff]
    %v3529 = vld [vmem:[#allocation8 + $0xc8] sm:$0xff]
    %v3530 = vld [vmem:[#allocation8 + $0xd0] sm:$0xff]
    %v3531 = vld [vmem:[#allocation8 + $0xd8] sm:$0xff]
    %v3532 = vld [vmem:[#allocation8 + $0xe0] sm:$0xff]
    %v3533 = vld [vmem:[#allocation8 + $0xe8] sm:$0xff]
    %v3534 = vld [vmem:[#allocation8 + $0xf0] sm:$0xff]
    %v3535 = vld [vmem:[#allocation8 + $0xf8] sm:$0xff]
    %v3536 = vld [vmem:[#allocation8 + $0x100] sm:$0xff]
    %v3537 = vld [vmem:[#allocation8 + $0x108] sm:$0xff]
    %v3538 = vld [vmem:[#allocation8 + $0x110] sm:$0xff]
    %v3539 = vld [vmem:[#allocation8 + $0x118] sm:$0xff]
    %v3540 = vld [vmem:[#allocation8 + $0x120] sm:$0xff]
    %v3541 = vld [vmem:[#allocation8 + $0x128] sm:$0xff]
    %v3542 = vld [vmem:[#allocation8 + $0x130] sm:$0xff]
    %v3543 = vld [vmem:[#allocation8 + $0x138] sm:$0xff]
    %v3544 = vld [vmem:[#allocation8 + $0x140] sm:$0xff]
    %v3545 = vld [vmem:[#allocation8 + $0x148] sm:$0xff]
    %v3546 = vld [vmem:[#allocation8 + $0x150] sm:$0xff]
    %v3547 = vld [vmem:[#allocation8 + $0x158] sm:$0xff]
    %v3548 = vld [vmem:[#allocation8 + $0x160] sm:$0xff]
    %v3549 = vld [vmem:[#allocation8 + $0x168] sm:$0xff]
    %v3550 = vld [vmem:[#allocation8 + $0x170] sm:$0xff]
    %v3551 = vld [vmem:[#allocation8 + $0x178] sm:$0xff]
    %v3552 = vld [vmem:[#allocation8 + $0x180] sm:$0xff]
    %v3553 = vld [vmem:[#allocation8 + $0x188] sm:$0xff]
    %v3554 = vld [vmem:[#allocation8 + $0x190] sm:$0xff]
    %v3555 = vld [vmem:[#allocation8 + $0x198] sm:$0xff]
    %v3556 = vld [vmem:[#allocation8 + $0x1a0] sm:$0xff]
    %v3557 = vld [vmem:[#allocation8 + $0x1a8] sm:$0xff]
    %v3558 = vld [vmem:[#allocation8 + $0x1b0] sm:$0xff]
    %v3559 = vld [vmem:[#allocation8 + $0x1b8] sm:$0xff]
    %v3560 = vld [vmem:[#allocation8 + $0x1c0] sm:$0xff]
    %v3561 = vld [vmem:[#allocation8 + $0x1c8] sm:$0xff]
    %v3562 = vld [vmem:[#allocation8 + $0x1d0] sm:$0xff]
    %v3563 = vld [vmem:[#allocation8 + $0x1d8] sm:$0xff]
    %v3564 = vld [vmem:[#allocation8 + $0x1e0] sm:$0xff]
    %v3565 = vld [vmem:[#allocation8 + $0x1e8] sm:$0xff]
    %v3566 = vld [vmem:[#allocation8 + $0x1f0] sm:$0xff]
    %v3567 = vld [vmem:[#allocation8 + $0x1f8] sm:$0xff]
    %v3632 = vunpack.c.l.b16 %v3504
    %v3633 = vunpack.c.h.b16 %v3504
    %v3634 = vunpack.c.l.b16 %v3505
    %v3635 = vunpack.c.h.b16 %v3505
    %v3636 = vunpack.c.l.b16 %v3506
    %v3637 = vunpack.c.h.b16 %v3506
    %v3638 = vunpack.c.l.b16 %v3507
    %v3639 = vunpack.c.h.b16 %v3507
    %v3640 = vunpack.c.l.b16 %v3508
    %v3641 = vunpack.c.h.b16 %v3508
    %v3642 = vunpack.c.l.b16 %v3509
    %v3643 = vunpack.c.h.b16 %v3509
    %v3644 = vunpack.c.l.b16 %v3510
    %v3645 = vunpack.c.h.b16 %v3510
    %v3646 = vunpack.c.l.b16 %v3511
    %v3647 = vunpack.c.h.b16 %v3511
    %v3648 = vunpack.c.l.b16 %v3512
    %v3649 = vunpack.c.h.b16 %v3512
    %v3650 = vunpack.c.l.b16 %v3513
    %v3651 = vunpack.c.h.b16 %v3513
    %v3652 = vunpack.c.l.b16 %v3514
    %v3653 = vunpack.c.h.b16 %v3514
    %v3654 = vunpack.c.l.b16 %v3515
    %v3655 = vunpack.c.h.b16 %v3515
    %v3656 = vunpack.c.l.b16 %v3516
    %v3657 = vunpack.c.h.b16 %v3516
    %v3658 = vunpack.c.l.b16 %v3517
    %v3659 = vunpack.c.h.b16 %v3517
    %v3660 = vunpack.c.l.b16 %v3518
    %v3661 = vunpack.c.h.b16 %v3518
    %v3662 = vunpack.c.l.b16 %v3519
    %v3663 = vunpack.c.h.b16 %v3519
    %v3664 = vunpack.c.l.b16 %v3520
    %v3665 = vunpack.c.h.b16 %v3520
    %v3666 = vunpack.c.l.b16 %v3521
    %v3667 = vunpack.c.h.b16 %v3521
    %v3668 = vunpack.c.l.b16 %v3522
    %v3669 = vunpack.c.h.b16 %v3522
    %v3670 = vunpack.c.l.b16 %v3523
    %v3671 = vunpack.c.h.b16 %v3523
    %v3672 = vunpack.c.l.b16 %v3524
    %v3673 = vunpack.c.h.b16 %v3524
    %v3674 = vunpack.c.l.b16 %v3525
    %v3675 = vunpack.c.h.b16 %v3525
    %v3676 = vunpack.c.l.b16 %v3526
    %v3677 = vunpack.c.h.b16 %v3526
    %v3678 = vunpack.c.l.b16 %v3527
    %v3679 = vunpack.c.h.b16 %v3527
    %v3680 = vunpack.c.l.b16 %v3528
    %v3681 = vunpack.c.h.b16 %v3528
    %v3682 = vunpack.c.l.b16 %v3529
    %v3683 = vunpack.c.h.b16 %v3529
    %v3684 = vunpack.c.l.b16 %v3530
    %v3685 = vunpack.c.h.b16 %v3530
    %v3686 = vunpack.c.l.b16 %v3531
    %v3687 = vunpack.c.h.b16 %v3531
    %v3688 = vunpack.c.l.b16 %v3532
    %v3689 = vunpack.c.h.b16 %v3532
    %v3690 = vunpack.c.l.b16 %v3533
    %v3691 = vunpack.c.h.b16 %v3533
    %v3692 = vunpack.c.l.b16 %v3534
    %v3693 = vunpack.c.h.b16 %v3534
    %v3694 = vunpack.c.l.b16 %v3535
    %v3695 = vunpack.c.h.b16 %v3535
    %v3696 = vunpack.c.l.b16 %v3536
    %v3697 = vunpack.c.h.b16 %v3536
    %v3698 = vunpack.c.l.b16 %v3537
    %v3699 = vunpack.c.h.b16 %v3537
    %v3700 = vunpack.c.l.b16 %v3538
    %v3701 = vunpack.c.h.b16 %v3538
    %v3702 = vunpack.c.l.b16 %v3539
    %v3703 = vunpack.c.h.b16 %v3539
    %v3704 = vunpack.c.l.b16 %v3540
    %v3705 = vunpack.c.h.b16 %v3540
    %v3706 = vunpack.c.l.b16 %v3541
    %v3707 = vunpack.c.h.b16 %v3541
    %v3708 = vunpack.c.l.b16 %v3542
    %v3709 = vunpack.c.h.b16 %v3542
    %v3710 = vunpack.c.l.b16 %v3543
    %v3711 = vunpack.c.h.b16 %v3543
    %v3712 = vunpack.c.l.b16 %v3544
    %v3713 = vunpack.c.h.b16 %v3544
    %v3714 = vunpack.c.l.b16 %v3545
    %v3715 = vunpack.c.h.b16 %v3545
    %v3716 = vunpack.c.l.b16 %v3546
    %v3717 = vunpack.c.h.b16 %v3546
    %v3718 = vunpack.c.l.b16 %v3547
    %v3719 = vunpack.c.h.b16 %v3547
    %v3720 = vunpack.c.l.b16 %v3548
    %v3721 = vunpack.c.h.b16 %v3548
    %v3722 = vunpack.c.l.b16 %v3549
    %v3723 = vunpack.c.h.b16 %v3549
    %v3724 = vunpack.c.l.b16 %v3550
    %v3725 = vunpack.c.h.b16 %v3550
    %v3726 = vunpack.c.l.b16 %v3551
    %v3727 = vunpack.c.h.b16 %v3551
    %v3728 = vunpack.c.l.b16 %v3552
    %v3729 = vunpack.c.h.b16 %v3552
    %v3730 = vunpack.c.l.b16 %v3553
    %v3731 = vunpack.c.h.b16 %v3553
    %v3732 = vunpack.c.l.b16 %v3554
    %v3733 = vunpack.c.h.b16 %v3554
    %v3734 = vunpack.c.l.b16 %v3555
    %v3735 = vunpack.c.h.b16 %v3555
    %v3736 = vunpack.c.l.b16 %v3556
    %v3737 = vunpack.c.h.b16 %v3556
    %v3738 = vunpack.c.l.b16 %v3557
    %v3739 = vunpack.c.h.b16 %v3557
    %v3740 = vunpack.c.l.b16 %v3558
    %v3741 = vunpack.c.h.b16 %v3558
    %v3742 = vunpack.c.l.b16 %v3559
    %v3743 = vunpack.c.h.b16 %v3559
    %v3744 = vunpack.c.l.b16 %v3560
    %v3745 = vunpack.c.h.b16 %v3560
    %v3746 = vunpack.c.l.b16 %v3561
    %v3747 = vunpack.c.h.b16 %v3561
    %v3748 = vunpack.c.l.b16 %v3562
    %v3749 = vunpack.c.h.b16 %v3562
    %v3750 = vunpack.c.l.b16 %v3563
    %v3751 = vunpack.c.h.b16 %v3563
    %v3752 = vunpack.c.l.b16 %v3564
    %v3753 = vunpack.c.h.b16 %v3564
    %v3754 = vunpack.c.l.b16 %v3565
    %v3755 = vunpack.c.h.b16 %v3565
    %v3756 = vunpack.c.l.b16 %v3566
    %v3757 = vunpack.c.h.b16 %v3566
    %v3758 = vunpack.c.l.b16 %v3567
    %v3759 = vunpack.c.h.b16 %v3567
    %v3760 = vpack.c.b16 %v3636, %v3632
    %v3761 = vpack.c.b16 %v3637, %v3633
    %v3762 = vpack.c.b16 %v3638, %v3634
    %v3763 = vpack.c.b16 %v3639, %v3635
    %v3764 = vpack.c.b16 %v3644, %v3640
    %v3765 = vpack.c.b16 %v3645, %v3641
    %v3766 = vpack.c.b16 %v3646, %v3642
    %v3767 = vpack.c.b16 %v3647, %v3643
    %v3768 = vpack.c.b16 %v3652, %v3648
    %v3769 = vpack.c.b16 %v3653, %v3649
    %v3770 = vpack.c.b16 %v3654, %v3650
    %v3771 = vpack.c.b16 %v3655, %v3651
    %v3772 = vpack.c.b16 %v3660, %v3656
    %v3773 = vpack.c.b16 %v3661, %v3657
    %v3774 = vpack.c.b16 %v3662, %v3658
    %v3775 = vpack.c.b16 %v3663, %v3659
    %v3776 = vpack.c.b16 %v3668, %v3664
    %v3777 = vpack.c.b16 %v3669, %v3665
    %v3778 = vpack.c.b16 %v3670, %v3666
    %v3779 = vpack.c.b16 %v3671, %v3667
    %v3780 = vpack.c.b16 %v3676, %v3672
    %v3781 = vpack.c.b16 %v3677, %v3673
    %v3782 = vpack.c.b16 %v3678, %v3674
    %v3783 = vpack.c.b16 %v3679, %v3675
    %v3784 = vpack.c.b16 %v3684, %v3680
    %v3785 = vpack.c.b16 %v3685, %v3681
    %v3786 = vpack.c.b16 %v3686, %v3682
    %v3787 = vpack.c.b16 %v3687, %v3683
    %v3788 = vpack.c.b16 %v3692, %v3688
    %v3789 = vpack.c.b16 %v3693, %v3689
    %v3790 = vpack.c.b16 %v3694, %v3690
    %v3791 = vpack.c.b16 %v3695, %v3691
    %v3792 = vpack.c.b16 %v3700, %v3696
    %v3793 = vpack.c.b16 %v3701, %v3697
    %v3794 = vpack.c.b16 %v3702, %v3698
    %v3795 = vpack.c.b16 %v3703, %v3699
    %v3796 = vpack.c.b16 %v3708, %v3704
    %v3797 = vpack.c.b16 %v3709, %v3705
    %v3798 = vpack.c.b16 %v3710, %v3706
    %v3799 = vpack.c.b16 %v3711, %v3707
    %v3800 = vpack.c.b16 %v3716, %v3712
    %v3801 = vpack.c.b16 %v3717, %v3713
    %v3802 = vpack.c.b16 %v3718, %v3714
    %v3803 = vpack.c.b16 %v3719, %v3715
    %v3804 = vpack.c.b16 %v3724, %v3720
    %v3805 = vpack.c.b16 %v3725, %v3721
    %v3806 = vpack.c.b16 %v3726, %v3722
    %v3807 = vpack.c.b16 %v3727, %v3723
    %v3808 = vpack.c.b16 %v3732, %v3728
    %v3809 = vpack.c.b16 %v3733, %v3729
    %v3810 = vpack.c.b16 %v3734, %v3730
    %v3811 = vpack.c.b16 %v3735, %v3731
    %v3812 = vpack.c.b16 %v3740, %v3736
    %v3813 = vpack.c.b16 %v3741, %v3737
    %v3814 = vpack.c.b16 %v3742, %v3738
    %v3815 = vpack.c.b16 %v3743, %v3739
    %v3816 = vpack.c.b16 %v3748, %v3744
    %v3817 = vpack.c.b16 %v3749, %v3745
    %v3818 = vpack.c.b16 %v3750, %v3746
    %v3819 = vpack.c.b16 %v3751, %v3747
    %v3820 = vpack.c.b16 %v3756, %v3752
    %v3821 = vpack.c.b16 %v3757, %v3753
    %v3822 = vpack.c.b16 %v3758, %v3754
    %v3823 = vpack.c.b16 %v3759, %v3755
    %3888 = vmatprep.subr.bf16.mxu0 %v3761
    %3889 = vmatpush1.bf16.msra.mxu0 %v3760
    %3890 = vmatprep.subr.bf16.mxu0 %v3765
    %3891 = vmatpush1.bf16.msra.mxu0 %v3764
    %3892 = vmatprep.subr.bf16.mxu0 %v3769
    %3893 = vmatpush1.bf16.msra.mxu0 %v3768
    %3894 = vmatprep.subr.bf16.mxu0 %v3773
    %3895 = vmatpush1.bf16.msra.mxu0 %v3772
    %3896 = vmatprep.subr.bf16.mxu0 %v3777
    %3897 = vmatpush1.bf16.msra.mxu0 %v3776
    %3898 = vmatprep.subr.bf16.mxu0 %v3781
    %3899 = vmatpush1.bf16.msra.mxu0 %v3780
    %3900 = vmatprep.subr.bf16.mxu0 %v3785
    %3901 = vmatpush1.bf16.msra.mxu0 %v3784
    %3902 = vmatprep.subr.bf16.mxu0 %v3789
    %3903 = vmatpush1.bf16.msra.mxu0 %v3788
    %3904 = vmatprep.subr.bf16.mxu0 %v3793
    %3905 = vmatpush1.bf16.msra.mxu0 %v3792
    %3906 = vmatprep.subr.bf16.mxu0 %v3797
    %3907 = vmatpush1.bf16.msra.mxu0 %v3796
    %3908 = vmatprep.subr.bf16.mxu0 %v3801
    %3909 = vmatpush1.bf16.msra.mxu0 %v3800
    %3910 = vmatprep.subr.bf16.mxu0 %v3805
    %3911 = vmatpush1.bf16.msra.mxu0 %v3804
    %3912 = vmatprep.subr.bf16.mxu0 %v3809
    %3913 = vmatpush1.bf16.msra.mxu0 %v3808
    %3914 = vmatprep.subr.bf16.mxu0 %v3813
    %3915 = vmatpush1.bf16.msra.mxu0 %v3812
    %3916 = vmatprep.subr.bf16.mxu0 %v3817
    %3917 = vmatpush1.bf16.msra.mxu0 %v3816
    %3918 = vmatprep.subr.bf16.mxu0 %v3821
    %3919 = vmatpush1.bf16.msra.mxu0 %v3820
    %3920 = vmatprep.mubr.bf16.mxu0 %v2557
    %3921 = vmatmul.mubr.bf16.gmra.mrb[0].mxu0 %v2556
    %v3922 = vpop.f32.mrb[0].mxu0
    %v3923 = vadd.f32 0.0, %v3922
    %v3924 = vpop.f32.mrb[0].mxu0
    %v3925 = vadd.f32 0.0, %v3924
    %v3926 = vpop.f32.mrb[0].mxu0
    %v3927 = vpop.f32.mrb[0].mxu0
    %3928 = vdwg.mxu0
    %3929 = vmatprep.subr.bf16.mxu0 %v3763
    %3930 = vmatpush1.bf16.msra.mxu0 %v3762
    %3931 = vmatprep.subr.bf16.mxu0 %v3767
    %3932 = vmatpush1.bf16.msra.mxu0 %v3766
    %3933 = vmatprep.subr.bf16.mxu0 %v3771
    %3934 = vmatpush1.bf16.msra.mxu0 %v3770
    %3935 = vmatprep.subr.bf16.mxu0 %v3775
    %3936 = vmatpush1.bf16.msra.mxu0 %v3774
    %3937 = vmatprep.subr.bf16.mxu0 %v3779
    %3938 = vmatpush1.bf16.msra.mxu0 %v3778
    %3939 = vmatprep.subr.bf16.mxu0 %v3783
    %3940 = vmatpush1.bf16.msra.mxu0 %v3782
    %3941 = vmatprep.subr.bf16.mxu0 %v3787
    %3942 = vmatpush1.bf16.msra.mxu0 %v3786
    %3943 = vmatprep.subr.bf16.mxu0 %v3791
    %3944 = vmatpush1.bf16.msra.mxu0 %v3790
    %3945 = vmatprep.subr.bf16.mxu0 %v3795
    %3946 = vmatpush1.bf16.msra.mxu0 %v3794
    %3947 = vmatprep.subr.bf16.mxu0 %v3799
    %3948 = vmatpush1.bf16.msra.mxu0 %v3798
    %3949 = vmatprep.subr.bf16.mxu0 %v3803
    %3950 = vmatpush1.bf16.msra.mxu0 %v3802
    %3951 = vmatprep.subr.bf16.mxu0 %v3807
    %3952 = vmatpush1.bf16.msra.mxu0 %v3806
    %3953 = vmatprep.subr.bf16.mxu0 %v3811
    %3954 = vmatpush1.bf16.msra.mxu0 %v3810
    %3955 = vmatprep.subr.bf16.mxu0 %v3815
    %3956 = vmatpush1.bf16.msra.mxu0 %v3814
    %3957 = vmatprep.subr.bf16.mxu0 %v3819
    %3958 = vmatpush1.bf16.msra.mxu0 %v3818
    %3959 = vmatprep.subr.bf16.mxu0 %v3823
    %3960 = vmatpush1.bf16.msra.mxu0 %v3822
    %3961 = vmatprep.mubr.bf16.mxu0 %v2557
    %3962 = vmatmul.mubr.bf16.gmra.mrb[0].mxu0 %v2556
    %v3963 = vpop.f32.mrb[0].mxu0
    %v3964 = vadd.f32 0.0, %v3963
    %v3965 = vpop.f32.mrb[0].mxu0
    %v3966 = vadd.f32 0.0, %v3965
    %v3967 = vpop.f32.mrb[0].mxu0
    %v3968 = vpop.f32.mrb[0].mxu0
    %3969 = vdwg.mxu0
    %v3970 = vadd.f32 %v3416, %v3923
    %v3971 = vadd.f32 %v3418, %v3925
    %v3972 = vadd.f32 %v3498, %v3964
    %v3973 = vadd.f32 %v3500, %v3966
    %v3974 = vld [vmem:[#allocation10] sm:$0xf]
    %v3976 = vlaneseq
    %v3977 = vshrl.u32 %v3976, 7
    %v3978 = vsub.s32 0, %v3977
    %v3979 = vrot.slane %v3974, %v3978
    %v3980 = vlaneseq
    %v3981 = vshrl.u32 %v3980, 7
    %v3982 = vsub.s32 1, %v3981
    %v3983 = vrot.slane %v3974, %v3982
    %v3984 = vlaneseq
    %v3985 = vshrl.u32 %v3984, 7
    %v3986 = vsub.s32 2, %v3985
    %v3987 = vrot.slane %v3974, %v3986
    %v3988 = vlaneseq
    %v3989 = vshrl.u32 %v3988, 7
    %v3990 = vsub.s32 3, %v3989
    %v3991 = vrot.slane %v3974, %v3990
    %v3996 = vadd.f32 %v3970, %v3979
    %v3997 = vadd.f32 %v3971, %v3983
    %v3998 = vadd.f32 %v3972, %v3987
    %v3999 = vadd.f32 %v3973, %v3991
    %v4000 = vmax.f32 %v3996, 0.0
    %v4001 = vmax.f32 %v3997, 0.0
    %v4002 = vmax.f32 %v3998, 0.0
    %v4003 = vmax.f32 %v3999, 0.0
    %v4004 = vpack.c.bf16 %v4000, %v4000
    %v4005 = vpack.c.bf16 %v4001, %v4001
    %v4006 = vpack.c.bf16 %v4002, %v4002
    %v4007 = vpack.c.bf16 %v4003, %v4003
    %v4008 = vld [vmem:[#allocation11] sm:$0xff]
    %v4009 = vld [vmem:[#allocation11 + $0x8] sm:$0xff]
    %v4010 = vld [vmem:[#allocation11 + $0x10] sm:$0xff]
    %v4011 = vld [vmem:[#allocation11 + $0x18] sm:$0xff]
    %v4012 = vld [vmem:[#allocation11 + $0x20] sm:$0xff]
    %v4013 = vld [vmem:[#allocation11 + $0x28] sm:$0xff]
    %v4014 = vld [vmem:[#allocation11 + $0x30] sm:$0xff]
    %v4015 = vld [vmem:[#allocation11 + $0x38] sm:$0xff]
    %v4016 = vld [vmem:[#allocation11 + $0x40] sm:$0xff]
    %v4017 = vld [vmem:[#allocation11 + $0x48] sm:$0xff]
    %v4018 = vld [vmem:[#allocation11 + $0x50] sm:$0xff]
    %v4019 = vld [vmem:[#allocation11 + $0x58] sm:$0xff]
    %v4020 = vld [vmem:[#allocation11 + $0x60] sm:$0xff]
    %v4021 = vld [vmem:[#allocation11 + $0x68] sm:$0xff]
    %v4022 = vld [vmem:[#allocation11 + $0x70] sm:$0xff]
    %v4023 = vld [vmem:[#allocation11 + $0x78] sm:$0xff]
    %v4024 = vld [vmem:[#allocation11 + $0x80] sm:$0xff]
    %v4025 = vld [vmem:[#allocation11 + $0x88] sm:$0xff]
    %v4026 = vld [vmem:[#allocation11 + $0x90] sm:$0xff]
    %v4027 = vld [vmem:[#allocation11 + $0x98] sm:$0xff]
    %v4028 = vld [vmem:[#allocation11 + $0xa0] sm:$0xff]
    %v4029 = vld [vmem:[#allocation11 + $0xa8] sm:$0xff]
    %v4030 = vld [vmem:[#allocation11 + $0xb0] sm:$0xff]
    %v4031 = vld [vmem:[#allocation11 + $0xb8] sm:$0xff]
    %v4032 = vld [vmem:[#allocation11 + $0xc0] sm:$0xff]
    %v4033 = vld [vmem:[#allocation11 + $0xc8] sm:$0xff]
    %v4034 = vld [vmem:[#allocation11 + $0xd0] sm:$0xff]
    %v4035 = vld [vmem:[#allocation11 + $0xd8] sm:$0xff]
    %v4036 = vld [vmem:[#allocation11 + $0xe0] sm:$0xff]
    %v4037 = vld [vmem:[#allocation11 + $0xe8] sm:$0xff]
    %v4038 = vld [vmem:[#allocation11 + $0xf0] sm:$0xff]
    %v4039 = vld [vmem:[#allocation11 + $0xf8] sm:$0xff]
    %v4040 = vld [vmem:[#allocation11 + $0x100] sm:$0xff]
    %v4041 = vld [vmem:[#allocation11 + $0x108] sm:$0xff]
    %v4042 = vld [vmem:[#allocation11 + $0x110] sm:$0xff]
    %v4043 = vld [vmem:[#allocation11 + $0x118] sm:$0xff]
    %v4044 = vld [vmem:[#allocation11 + $0x120] sm:$0xff]
    %v4045 = vld [vmem:[#allocation11 + $0x128] sm:$0xff]
    %v4046 = vld [vmem:[#allocation11 + $0x130] sm:$0xff]
    %v4047 = vld [vmem:[#allocation11 + $0x138] sm:$0xff]
    %v4048 = vld [vmem:[#allocation11 + $0x140] sm:$0xff]
    %v4049 = vld [vmem:[#allocation11 + $0x148] sm:$0xff]
    %v4050 = vld [vmem:[#allocation11 + $0x150] sm:$0xff]
    %v4051 = vld [vmem:[#allocation11 + $0x158] sm:$0xff]
    %v4052 = vld [vmem:[#allocation11 + $0x160] sm:$0xff]
    %v4053 = vld [vmem:[#allocation11 + $0x168] sm:$0xff]
    %v4054 = vld [vmem:[#allocation11 + $0x170] sm:$0xff]
    %v4055 = vld [vmem:[#allocation11 + $0x178] sm:$0xff]
    %v4056 = vld [vmem:[#allocation11 + $0x180] sm:$0xff]
    %v4057 = vld [vmem:[#allocation11 + $0x188] sm:$0xff]
    %v4058 = vld [vmem:[#allocation11 + $0x190] sm:$0xff]
    %v4059 = vld [vmem:[#allocation11 + $0x198] sm:$0xff]
    %v4060 = vld [vmem:[#allocation11 + $0x1a0] sm:$0xff]
    %v4061 = vld [vmem:[#allocation11 + $0x1a8] sm:$0xff]
    %v4062 = vld [vmem:[#allocation11 + $0x1b0] sm:$0xff]
    %v4063 = vld [vmem:[#allocation11 + $0x1b8] sm:$0xff]
    %v4064 = vld [vmem:[#allocation11 + $0x1c0] sm:$0xff]
    %v4065 = vld [vmem:[#allocation11 + $0x1c8] sm:$0xff]
    %v4066 = vld [vmem:[#allocation11 + $0x1d0] sm:$0xff]
    %v4067 = vld [vmem:[#allocation11 + $0x1d8] sm:$0xff]
    %v4068 = vld [vmem:[#allocation11 + $0x1e0] sm:$0xff]
    %v4069 = vld [vmem:[#allocation11 + $0x1e8] sm:$0xff]
    %v4070 = vld [vmem:[#allocation11 + $0x1f0] sm:$0xff]
    %v4071 = vld [vmem:[#allocation11 + $0x1f8] sm:$0xff]
    %v4072 = vld [vmem:[#allocation13] sm:$0x3]
    %v4074 = vlaneseq
    %v4075 = vshrl.u32 %v4074, 7
    %v4076 = vsub.s32 0, %v4075
    %v4077 = vrot.slane %v4072, %v4076
    %v4078 = vlaneseq
    %v4079 = vshrl.u32 %v4078, 7
    %v4080 = vsub.s32 1, %v4079
    %v4081 = vrot.slane %v4072, %v4080
    %v4148 = vunpack.c.l.b16 %v4008
    %v4149 = vunpack.c.h.b16 %v4008
    %v4150 = vunpack.c.l.b16 %v4009
    %v4151 = vunpack.c.h.b16 %v4009
    %v4152 = vunpack.c.l.b16 %v4010
    %v4153 = vunpack.c.h.b16 %v4010
    %v4154 = vunpack.c.l.b16 %v4011
    %v4155 = vunpack.c.h.b16 %v4011
    %v4156 = vunpack.c.l.b16 %v4012
    %v4157 = vunpack.c.h.b16 %v4012
    %v4158 = vunpack.c.l.b16 %v4013
    %v4159 = vunpack.c.h.b16 %v4013
    %v4160 = vunpack.c.l.b16 %v4014
    %v4161 = vunpack.c.h.b16 %v4014
    %v4162 = vunpack.c.l.b16 %v4015
    %v4163 = vunpack.c.h.b16 %v4015
    %v4164 = vunpack.c.l.b16 %v4016
    %v4165 = vunpack.c.h.b16 %v4016
    %v4166 = vunpack.c.l.b16 %v4017
    %v4167 = vunpack.c.h.b16 %v4017
    %v4168 = vunpack.c.l.b16 %v4018
    %v4169 = vunpack.c.h.b16 %v4018
    %v4170 = vunpack.c.l.b16 %v4019
    %v4171 = vunpack.c.h.b16 %v4019
    %v4172 = vunpack.c.l.b16 %v4020
    %v4173 = vunpack.c.h.b16 %v4020
    %v4174 = vunpack.c.l.b16 %v4021
    %v4175 = vunpack.c.h.b16 %v4021
    %v4176 = vunpack.c.l.b16 %v4022
    %v4177 = vunpack.c.h.b16 %v4022
    %v4178 = vunpack.c.l.b16 %v4023
    %v4179 = vunpack.c.h.b16 %v4023
    %v4180 = vunpack.c.l.b16 %v4024
    %v4181 = vunpack.c.h.b16 %v4024
    %v4182 = vunpack.c.l.b16 %v4025
    %v4183 = vunpack.c.h.b16 %v4025
    %v4184 = vunpack.c.l.b16 %v4026
    %v4185 = vunpack.c.h.b16 %v4026
    %v4186 = vunpack.c.l.b16 %v4027
    %v4187 = vunpack.c.h.b16 %v4027
    %v4188 = vunpack.c.l.b16 %v4028
    %v4189 = vunpack.c.h.b16 %v4028
    %v4190 = vunpack.c.l.b16 %v4029
    %v4191 = vunpack.c.h.b16 %v4029
    %v4192 = vunpack.c.l.b16 %v4030
    %v4193 = vunpack.c.h.b16 %v4030
    %v4194 = vunpack.c.l.b16 %v4031
    %v4195 = vunpack.c.h.b16 %v4031
    %v4196 = vunpack.c.l.b16 %v4032
    %v4197 = vunpack.c.h.b16 %v4032
    %v4198 = vunpack.c.l.b16 %v4033
    %v4199 = vunpack.c.h.b16 %v4033
    %v4200 = vunpack.c.l.b16 %v4034
    %v4201 = vunpack.c.h.b16 %v4034
    %v4202 = vunpack.c.l.b16 %v4035
    %v4203 = vunpack.c.h.b16 %v4035
    %v4204 = vunpack.c.l.b16 %v4036
    %v4205 = vunpack.c.h.b16 %v4036
    %v4206 = vunpack.c.l.b16 %v4037
    %v4207 = vunpack.c.h.b16 %v4037
    %v4208 = vunpack.c.l.b16 %v4038
    %v4209 = vunpack.c.h.b16 %v4038
    %v4210 = vunpack.c.l.b16 %v4039
    %v4211 = vunpack.c.h.b16 %v4039
    %v4212 = vunpack.c.l.b16 %v4040
    %v4213 = vunpack.c.h.b16 %v4040
    %v4214 = vunpack.c.l.b16 %v4041
    %v4215 = vunpack.c.h.b16 %v4041
    %v4216 = vunpack.c.l.b16 %v4042
    %v4217 = vunpack.c.h.b16 %v4042
    %v4218 = vunpack.c.l.b16 %v4043
    %v4219 = vunpack.c.h.b16 %v4043
    %v4220 = vunpack.c.l.b16 %v4044
    %v4221 = vunpack.c.h.b16 %v4044
    %v4222 = vunpack.c.l.b16 %v4045
    %v4223 = vunpack.c.h.b16 %v4045
    %v4224 = vunpack.c.l.b16 %v4046
    %v4225 = vunpack.c.h.b16 %v4046
    %v4226 = vunpack.c.l.b16 %v4047
    %v4227 = vunpack.c.h.b16 %v4047
    %v4228 = vunpack.c.l.b16 %v4048
    %v4229 = vunpack.c.h.b16 %v4048
    %v4230 = vunpack.c.l.b16 %v4049
    %v4231 = vunpack.c.h.b16 %v4049
    %v4232 = vunpack.c.l.b16 %v4050
    %v4233 = vunpack.c.h.b16 %v4050
    %v4234 = vunpack.c.l.b16 %v4051
    %v4235 = vunpack.c.h.b16 %v4051
    %v4236 = vunpack.c.l.b16 %v4052
    %v4237 = vunpack.c.h.b16 %v4052
    %v4238 = vunpack.c.l.b16 %v4053
    %v4239 = vunpack.c.h.b16 %v4053
    %v4240 = vunpack.c.l.b16 %v4054
    %v4241 = vunpack.c.h.b16 %v4054
    %v4242 = vunpack.c.l.b16 %v4055
    %v4243 = vunpack.c.h.b16 %v4055
    %v4244 = vunpack.c.l.b16 %v4056
    %v4245 = vunpack.c.h.b16 %v4056
    %v4246 = vunpack.c.l.b16 %v4057
    %v4247 = vunpack.c.h.b16 %v4057
    %v4248 = vunpack.c.l.b16 %v4058
    %v4249 = vunpack.c.h.b16 %v4058
    %v4250 = vunpack.c.l.b16 %v4059
    %v4251 = vunpack.c.h.b16 %v4059
    %v4252 = vunpack.c.l.b16 %v4060
    %v4253 = vunpack.c.h.b16 %v4060
    %v4254 = vunpack.c.l.b16 %v4061
    %v4255 = vunpack.c.h.b16 %v4061
    %v4256 = vunpack.c.l.b16 %v4062
    %v4257 = vunpack.c.h.b16 %v4062
    %v4258 = vunpack.c.l.b16 %v4063
    %v4259 = vunpack.c.h.b16 %v4063
    %v4260 = vunpack.c.l.b16 %v4064
    %v4261 = vunpack.c.h.b16 %v4064
    %v4262 = vunpack.c.l.b16 %v4065
    %v4263 = vunpack.c.h.b16 %v4065
    %v4264 = vunpack.c.l.b16 %v4066
    %v4265 = vunpack.c.h.b16 %v4066
    %v4266 = vunpack.c.l.b16 %v4067
    %v4267 = vunpack.c.h.b16 %v4067
    %v4268 = vunpack.c.l.b16 %v4068
    %v4269 = vunpack.c.h.b16 %v4068
    %v4270 = vunpack.c.l.b16 %v4069
    %v4271 = vunpack.c.h.b16 %v4069
    %v4272 = vunpack.c.l.b16 %v4070
    %v4273 = vunpack.c.h.b16 %v4070
    %v4274 = vunpack.c.l.b16 %v4071
    %v4275 = vunpack.c.h.b16 %v4071
    %v4276 = vpack.c.b16 %v4150, %v4148
    %v4277 = vpack.c.b16 %v4151, %v4149
    %v4278 = vpack.c.b16 %v4154, %v4152
    %v4279 = vpack.c.b16 %v4155, %v4153
    %v4280 = vpack.c.b16 %v4158, %v4156
    %v4281 = vpack.c.b16 %v4159, %v4157
    %v4282 = vpack.c.b16 %v4162, %v4160
    %v4283 = vpack.c.b16 %v4163, %v4161
    %v4284 = vpack.c.b16 %v4166, %v4164
    %v4285 = vpack.c.b16 %v4167, %v4165
    %v4286 = vpack.c.b16 %v4170, %v4168
    %v4287 = vpack.c.b16 %v4171, %v4169
    %v4288 = vpack.c.b16 %v4174, %v4172
    %v4289 = vpack.c.b16 %v4175, %v4173
    %v4290 = vpack.c.b16 %v4178, %v4176
    %v4291 = vpack.c.b16 %v4179, %v4177
    %v4292 = vpack.c.b16 %v4182, %v4180
    %v4293 = vpack.c.b16 %v4183, %v4181
    %v4294 = vpack.c.b16 %v4186, %v4184
    %v4295 = vpack.c.b16 %v4187, %v4185
    %v4296 = vpack.c.b16 %v4190, %v4188
    %v4297 = vpack.c.b16 %v4191, %v4189
    %v4298 = vpack.c.b16 %v4194, %v4192
    %v4299 = vpack.c.b16 %v4195, %v4193
    %v4300 = vpack.c.b16 %v4198, %v4196
    %v4301 = vpack.c.b16 %v4199, %v4197
    %v4302 = vpack.c.b16 %v4202, %v4200
    %v4303 = vpack.c.b16 %v4203, %v4201
    %v4304 = vpack.c.b16 %v4206, %v4204
    %v4305 = vpack.c.b16 %v4207, %v4205
    %v4306 = vpack.c.b16 %v4210, %v4208
    %v4307 = vpack.c.b16 %v4211, %v4209
    %v4308 = vpack.c.b16 %v4214, %v4212
    %v4309 = vpack.c.b16 %v4215, %v4213
    %v4310 = vpack.c.b16 %v4218, %v4216
    %v4311 = vpack.c.b16 %v4219, %v4217
    %v4312 = vpack.c.b16 %v4222, %v4220
    %v4313 = vpack.c.b16 %v4223, %v4221
    %v4314 = vpack.c.b16 %v4226, %v4224
    %v4315 = vpack.c.b16 %v4227, %v4225
    %v4316 = vpack.c.b16 %v4230, %v4228
    %v4317 = vpack.c.b16 %v4231, %v4229
    %v4318 = vpack.c.b16 %v4234, %v4232
    %v4319 = vpack.c.b16 %v4235, %v4233
    %v4320 = vpack.c.b16 %v4238, %v4236
    %v4321 = vpack.c.b16 %v4239, %v4237
    %v4322 = vpack.c.b16 %v4242, %v4240
    %v4323 = vpack.c.b16 %v4243, %v4241
    %v4324 = vpack.c.b16 %v4246, %v4244
    %v4325 = vpack.c.b16 %v4247, %v4245
    %v4326 = vpack.c.b16 %v4250, %v4248
    %v4327 = vpack.c.b16 %v4251, %v4249
    %v4328 = vpack.c.b16 %v4254, %v4252
    %v4329 = vpack.c.b16 %v4255, %v4253
    %v4330 = vpack.c.b16 %v4258, %v4256
    %v4331 = vpack.c.b16 %v4259, %v4257
    %v4332 = vpack.c.b16 %v4262, %v4260
    %v4333 = vpack.c.b16 %v4263, %v4261
    %v4334 = vpack.c.b16 %v4266, %v4264
    %v4335 = vpack.c.b16 %v4267, %v4265
    %v4336 = vpack.c.b16 %v4270, %v4268
    %v4337 = vpack.c.b16 %v4271, %v4269
    %v4338 = vpack.c.b16 %v4274, %v4272
    %v4339 = vpack.c.b16 %v4275, %v4273
    %4404 = vmatprep.subr.bf16.mxu0 %v4277
    %4405 = vmatpush1.bf16.msra.mxu0 %v4276
    %4406 = vmatprep.subr.bf16.mxu0 %v4279
    %4407 = vmatpush1.bf16.msra.mxu0 %v4278
    %4408 = vmatprep.subr.bf16.mxu0 %v4281
    %4409 = vmatpush1.bf16.msra.mxu0 %v4280
    %4410 = vmatprep.subr.bf16.mxu0 %v4283
    %4411 = vmatpush1.bf16.msra.mxu0 %v4282
    %4412 = vmatprep.subr.bf16.mxu0 %v4285
    %4413 = vmatpush1.bf16.msra.mxu0 %v4284
    %4414 = vmatprep.subr.bf16.mxu0 %v4287
    %4415 = vmatpush1.bf16.msra.mxu0 %v4286
    %4416 = vmatprep.subr.bf16.mxu0 %v4289
    %4417 = vmatpush1.bf16.msra.mxu0 %v4288
    %4418 = vmatprep.subr.bf16.mxu0 %v4291
    %4419 = vmatpush1.bf16.msra.mxu0 %v4290
    %4420 = vmatprep.subr.bf16.mxu0 %v4293
    %4421 = vmatpush1.bf16.msra.mxu0 %v4292
    %4422 = vmatprep.subr.bf16.mxu0 %v4295
    %4423 = vmatpush1.bf16.msra.mxu0 %v4294
    %4424 = vmatprep.subr.bf16.mxu0 %v4297
    %4425 = vmatpush1.bf16.msra.mxu0 %v4296
    %4426 = vmatprep.subr.bf16.mxu0 %v4299
    %4427 = vmatpush1.bf16.msra.mxu0 %v4298
    %4428 = vmatprep.subr.bf16.mxu0 %v4301
    %4429 = vmatpush1.bf16.msra.mxu0 %v4300
    %4430 = vmatprep.subr.bf16.mxu0 %v4303
    %4431 = vmatpush1.bf16.msra.mxu0 %v4302
    %4432 = vmatprep.subr.bf16.mxu0 %v4305
    %4433 = vmatpush1.bf16.msra.mxu0 %v4304
    %4434 = vmatprep.subr.bf16.mxu0 %v4307
    %4435 = vmatpush1.bf16.msra.mxu0 %v4306
    %4436 = vmatprep.mubr.bf16.mxu0 %v4005
    %4437 = vmatmul.mubr.bf16.gmra.mrb[0].mxu0 %v4004
    %v4438 = vpop.f32.mrb[0].mxu0
    %v4439 = vadd.f32 %v4077, %v4438
    %v4440 = vpop.f32.mrb[0].mxu0
    %v4441 = vadd.f32 %v4081, %v4440
    %v4442 = vpop.f32.mrb[0].mxu0
    %v4443 = vpop.f32.mrb[0].mxu0
    %4444 = vdwg.mxu0
    %4445 = vmatprep.subr.bf16.mxu0 %v4309
    %4446 = vmatpush1.bf16.msra.mxu0 %v4308
    %4447 = vmatprep.subr.bf16.mxu0 %v4311
    %4448 = vmatpush1.bf16.msra.mxu0 %v4310
    %4449 = vmatprep.subr.bf16.mxu0 %v4313
    %4450 = vmatpush1.bf16.msra.mxu0 %v4312
    %4451 = vmatprep.subr.bf16.mxu0 %v4315
    %4452 = vmatpush1.bf16.msra.mxu0 %v4314
    %4453 = vmatprep.subr.bf16.mxu0 %v4317
    %4454 = vmatpush1.bf16.msra.mxu0 %v4316
    %4455 = vmatprep.subr.bf16.mxu0 %v4319
    %4456 = vmatpush1.bf16.msra.mxu0 %v4318
    %4457 = vmatprep.subr.bf16.mxu0 %v4321
    %4458 = vmatpush1.bf16.msra.mxu0 %v4320
    %4459 = vmatprep.subr.bf16.mxu0 %v4323
    %4460 = vmatpush1.bf16.msra.mxu0 %v4322
    %4461 = vmatprep.subr.bf16.mxu0 %v4325
    %4462 = vmatpush1.bf16.msra.mxu0 %v4324
    %4463 = vmatprep.subr.bf16.mxu0 %v4327
    %4464 = vmatpush1.bf16.msra.mxu0 %v4326
    %4465 = vmatprep.subr.bf16.mxu0 %v4329
    %4466 = vmatpush1.bf16.msra.mxu0 %v4328
    %4467 = vmatprep.subr.bf16.mxu0 %v4331
    %4468 = vmatpush1.bf16.msra.mxu0 %v4330
    %4469 = vmatprep.subr.bf16.mxu0 %v4333
    %4470 = vmatpush1.bf16.msra.mxu0 %v4332
    %4471 = vmatprep.subr.bf16.mxu0 %v4335
    %4472 = vmatpush1.bf16.msra.mxu0 %v4334
    %4473 = vmatprep.subr.bf16.mxu0 %v4337
    %4474 = vmatpush1.bf16.msra.mxu0 %v4336
    %4475 = vmatprep.subr.bf16.mxu0 %v4339
    %4476 = vmatpush1.bf16.msra.mxu0 %v4338
    %4477 = vmatprep.mubr.bf16.mxu0 %v4007
    %4478 = vmatmul.mubr.bf16.gmra.mrb[0].mxu0 %v4006
    %v4479 = vpop.f32.mrb[0].mxu0
    %v4480 = vadd.f32 %v4439, %v4479
    %v4481 = vpop.f32.mrb[0].mxu0
    %v4482 = vadd.f32 %v4441, %v4481
    %v4483 = vpop.f32.mrb[0].mxu0
    %v4484 = vpop.f32.mrb[0].mxu0
    %4485 = vdwg.mxu0
    %v4486 = vmax.f32 %v4480, 0.0
    %v4487 = vmax.f32 %v4482, 0.0
    %v4488 = vld [vmem:[#allocation14] sm:$0x3]
    %v4489 = vld [vmem:[#allocation2] sm:$0x1]
    %4491 = vset.pattern.permute.xlu0 0
    %4492 = vperm.xlu0 %4491, %v4489
    %v4493 = vpop.permute.xlu0 %4492
    %v4495 = vlaneseq
    %v4496 = vshrl.u32 %v4495, 7
    %v4497 = vsub.s32 0, %v4496
    %v4498 = vrot.slane %v4493, %v4497
    %v4500 = vlaneseq
    %v4501 = vshrl.u32 %v4500, 7
    %v4502 = vsub.s32 0, %v4501
    %v4503 = vrot.slane %v4488, %v4502
    %v4504 = vlaneseq
    %v4505 = vshrl.u32 %v4504, 7
    %v4506 = vsub.s32 1, %v4505
    %v4507 = vrot.slane %v4488, %v4506
    %4510 = vmatprep.subr.mxu0 %v4487
    %4511 = vmatpush1.xpose.msra.mxu0 %v4486
    %4512 = vmatprep.subr.mxu0 0.0
    %4513 = vmatpush1.xpose.msra.mxu0 0.0
    %4514 = vmatprep.subr.mxu0 0.0
    %4515 = vmatpush1.xpose.msra.mxu0 0.0
    %4516 = vmatprep.subr.mxu0 0.0
    %4517 = vmatpush1.xpose.msra.mxu0 0.0
    %4518 = vmatprep.subr.mxu0 0.0
    %4519 = vmatpush1.xpose.msra.mxu0 0.0
    %4520 = vmatprep.subr.mxu0 0.0
    %4521 = vmatpush1.xpose.msra.mxu0 0.0
    %4522 = vmatprep.subr.mxu0 0.0
    %4523 = vmatpush1.xpose.msra.mxu0 0.0
    %4524 = vmatprep.subr.mxu0 0.0
    %4525 = vmatpush1.xpose.msra.mxu0 0.0
    %4526 = vmatprep.subr.mxu0 0.0
    %4527 = vmatpush1.xpose.msra.mxu0 0.0
    %4528 = vmatprep.subr.mxu0 0.0
    %4529 = vmatpush1.xpose.msra.mxu0 0.0
    %4530 = vmatprep.subr.mxu0 0.0
    %4531 = vmatpush1.xpose.msra.mxu0 0.0
    %4532 = vmatprep.subr.mxu0 0.0
    %4533 = vmatpush1.xpose.msra.mxu0 0.0
    %4534 = vmatprep.subr.mxu0 0.0
    %4535 = vmatpush1.xpose.msra.mxu0 0.0
    %4536 = vmatprep.subr.mxu0 0.0
    %4537 = vmatpush1.xpose.msra.mxu0 0.0
    %4538 = vmatprep.subr.mxu0 0.0
    %4539 = vmatpush1.xpose.msra.mxu0 0.0
    %4540 = vmatprep.subr.mxu0 0.0
    %4541 = vmatpush1.xpose.msra.mxu0 0.0
    %4542 = vmatprep.subr.mxu0 0.0
    %4543 = vmatpush1.xpose.msra.mxu0 0.0
    %4544 = vmatprep.subr.mxu0 0.0
    %4545 = vmatpush1.xpose.msra.mxu0 0.0
    %4546 = vmatprep.subr.mxu0 0.0
    %4547 = vmatpush1.xpose.msra.mxu0 0.0
    %4548 = vmatprep.subr.mxu0 0.0
    %4549 = vmatpush1.xpose.msra.mxu0 0.0
    %4550 = vmatprep.subr.mxu0 0.0
    %4551 = vmatpush1.xpose.msra.mxu0 0.0
    %4552 = vmatprep.subr.mxu0 0.0
    %4553 = vmatpush1.xpose.msra.mxu0 0.0
    %4554 = vmatprep.subr.mxu0 0.0
    %4555 = vmatpush1.xpose.msra.mxu0 0.0
    %4556 = vmatprep.subr.mxu0 0.0
    %4557 = vmatpush1.xpose.msra.mxu0 0.0
    %4558 = vmatprep.subr.mxu0 0.0
    %4559 = vmatpush1.xpose.msra.mxu0 0.0
    %4560 = vmatprep.subr.mxu0 0.0
    %4561 = vmatpush1.xpose.msra.mxu0 0.0
    %4562 = vmatprep.subr.mxu0 0.0
    %4563 = vmatpush1.xpose.msra.mxu0 0.0
    %4564 = vmatprep.subr.mxu0 0.0
    %4565 = vmatpush1.xpose.msra.mxu0 0.0
    %4566 = vmatprep.subr.mxu0 0.0
    %4567 = vmatpush1.xpose.msra.mxu0 0.0
    %4568 = vmatprep.subr.mxu0 0.0
    %4569 = vmatpush1.xpose.msra.mxu0 0.0
    %4570 = vmatprep.subr.mxu0 0.0
    %4571 = vmatpush1.xpose.msra.mxu0 0.0
    %4572 = vmatprep.subr.mxu0 0.0
    %4573 = vmatpush1.xpose.msra.mxu0 0.0
    %4574 = vmatprep.mubr.f32.mxu0 %v4507
    %4575 = vmatmul.mubr.f32.gmra.mrb[0].mxu0 %v4503
    %v4576 = vpop.f32.mrb[0].mxu0
    %v4577 = vadd.f32 %v4498, %v4576
    %v4578 = vpop.f32.mrb[0].mxu0
    %4579 = vdwg.mxu0
    %vm4580 = vcmask 57344
    %4581 = vst.msk [vmem:[%s10] sm:$0x1] %vm4580, %v4577
    // Predicated region
    $region74: #{disdrive_forward.1} parent=1 // pred_check
      _
    $region75: #{disdrive_forward.1} parent=1 // pred_check_branch
      %4583 = sbr.rel (0) target = $region77
    $region76: #{disdrive_forward.1} parent=1 // pred_region
      _
    $region77: #{disdrive_forward.1} parent=1 // pred_fallthru
      _
    // Predicated region
    $region78: #{disdrive_forward.1} parent=1 // pred_check
      _
    $region79: #{disdrive_forward.1} parent=1 // pred_check_branch
      %4585 = sbr.rel (0) target = $region81
    $region80: #{disdrive_forward.1} parent=1 // pred_region
      _
    $region81: #{disdrive_forward.1} parent=1 // pred_fallthru
      _
    %4586 = vsyncpa [#allocation4], 1
    %4587 = vsyncpa [#allocation6], 1
    %4588 = vsyncpa [#allocation9], 1
    %4589 = vsyncpa [#allocation12], 1
    %4590 = vsyncpa [#allocation15], 1

</llo_original>
